<compile_context>
chip_gen: v6e
topology: v6e:2x2x1
jax: 0.10.0
libtpu: 0.0.40
codegen_flags: <defaults>
</compile_context>

<pallas_src>
import functools

import jax
import jax.numpy as jnp
from jax.experimental import pallas as pl
from jax.experimental.pallas import tpu as pltpu

VOCAB_SIZE = 512      # small synthetic vocab (module default is 31650; only shape glue)
NUM_CLASS = 2
C = 64                # embedding dim == conv in/out channels
KSIZE = 15
STRIDE = 7
PAD1 = 56
GROUP = STRIDE * C    # 448 : one folded row = 7 consecutive timesteps x 64 channels
KC = KSIZE * C        # 960 : full conv contraction length (tap-major, channel-minor)
OUT_PAD = 128         # logits padded to 128 lanes (lane-dense store)
TB_MAX = 8            # batch rows per grid step -> conv1 MXU M = TB_MAX * l_out1 (=256 here)

_COMPILER_PARAMS = pltpu.CompilerParams(
    dimension_semantics=("parallel",),          # batch-block grid: independent steps
    vmem_limit_bytes=32 * 1024 * 1024,          # explicit; per-step working set ~1 MiB
)


# ---------------- fused Pallas kernel (entire post-embedding forward) ----------------

def _fused_gcnn_kernel(xf_ref, w1_ref, b1_ref, w2_ref, b2_ref,
                       wl1_ref, bl1_ref, wl2_ref, bl2_ref,
                       o_ref, h1_ref, fold_ref, *, tb, l_out1, l_out2):
    """Per grid step: `tb` batch rows of conv1 -> gate -> fold -> conv2 -> gate ->
    mean-pool -> Linear(64,128) -> Linear(128,128-padded) -> (tb, 128) logits.

    xf_ref : (tb, l_out1+2, 448) bf16   conv1 input, folded into groups of 7 timesteps
    w1_ref : (960, 128) bf16            [Wa1 | Wb1], tap-major / channel-minor rows
    b1_ref : (1, 128)  f32              [ba1 | bb1]
    w2_ref : (960, 128) bf16            [Wa2 | Wb2]
    b2_ref : (1, 128)  f32
    wl1_ref: (64, 128) f32, bl1_ref: (1,128) f32
    wl2_ref: (128,128) f32 (zero-padded cols), bl2_ref: (1,128) f32 (zero-padded)
    o_ref  : (tb, 128) f32              lane-dense logits (first NUM_CLASS valid)
    h1_ref : (tb, l_out1, 64) bf16      scratch: conv1 gated output
    fold_ref:(l_out2+2, tb, 448) bf16   scratch: h1 folded for conv2
    """
    # ---- conv1 (gated): batch collapsed into the MXU M dimension ----
    # Patch(j) = [fold row j | fold row j+1 | fold row j+2, lanes 0:64]  (3 contiguous
    # slices of the folded view), so conv1 is three accumulated matmuls.
    x = xf_ref[...]                                              # (tb, l_out1+2, 448)
    x0 = x[:, 0:l_out1, :].reshape(tb * l_out1, GROUP)
    x1 = x[:, 1:l_out1 + 1, :].reshape(tb * l_out1, GROUP)
    x2 = x[:, 2:l_out1 + 2, 0:C].reshape(tb * l_out1, C)
    acc = jnp.dot(x0, w1_ref[0:GROUP, :], preferred_element_type=jnp.float32)
    acc = acc + jnp.dot(x1, w1_ref[GROUP:2 * GROUP, :],
                        preferred_element_type=jnp.float32)
    acc = acc + jnp.dot(x2, w1_ref[2 * GROUP:KC, :],
                        preferred_element_type=jnp.float32)
    acc = acc + b1_ref[...]                                      # (tb*l_out1, 128) f32
    h1 = acc[:, :C] * jax.nn.sigmoid(acc[:, C:])                 # gate in f32
    h1_ref[...] = h1.astype(jnp.bfloat16).reshape(tb, l_out1, C)

    # ---- in-VMEM fold of h1 into the conv2 layout (no HBM round trip) ----
    # fold_ref[r, :, c*64:(c+1)*64] = h1[:, 7r+c, :]; only the timesteps actually
    # touched by a conv2 patch (t < 7*(l_out2-1)+15 <= l_out1) are scattered.
    n_scatter = STRIDE * (l_out2 - 1) + KSIZE
    for t in range(n_scatter):
        r, c = divmod(t, STRIDE)
        fold_ref[r, :, c * C:(c + 1) * C] = h1_ref[:, t, :]

    # ---- conv2 (gated, padding=0) + mean pool over the l_out2 output positions ----
    pooled = jnp.zeros((tb, C), jnp.float32)
    for j in range(l_out2):
        a2 = jnp.dot(fold_ref[j], w2_ref[0:GROUP, :],
                     preferred_element_type=jnp.float32)
        a2 = a2 + jnp.dot(fold_ref[j + 1], w2_ref[GROUP:2 * GROUP, :],
                          preferred_element_type=jnp.float32)
        a2 = a2 + jnp.dot(fold_ref[j + 2, :, 0:C], w2_ref[2 * GROUP:KC, :],
                          preferred_element_type=jnp.float32)
        a2 = a2 + b2_ref[...]                                    # (tb, 128) f32
        pooled = pooled + a2[:, :C] * jax.nn.sigmoid(a2[:, C:])
    pooled = pooled * (1.0 / l_out2)                             # torch.mean(H, dim=-1)

    # ---- head: Linear(64,128) -> Linear(128, 128-padded) ----
    z1 = jnp.dot(pooled, wl1_ref[...], preferred_element_type=jnp.float32) + bl1_ref[...]
    o_ref[...] = jnp.dot(z1, wl2_ref[...], preferred_element_type=jnp.float32) + bl2_ref[...]


# ---------------- pallas_call wrapper ----------------

def gcnn_fused_call(xf1, w1f, b1f, w2f, b2f, wl1, bl1, wl2p, bl2p,
                    *, tb, l_out1, l_out2):
    Bp, n7, g = xf1.shape
    assert Bp % tb == 0 and n7 == l_out1 + 2 and g == GROUP
    kernel = functools.partial(_fused_gcnn_kernel, tb=tb, l_out1=l_out1, l_out2=l_out2)
    return pl.pallas_call(
        kernel,
        out_shape=jax.ShapeDtypeStruct((Bp, OUT_PAD), jnp.float32),
        grid=(Bp // tb,),
        in_specs=[
            pl.BlockSpec((tb, n7, GROUP), lambda i: (i, 0, 0)),      # activations
            pl.BlockSpec((KC, 2 * C), lambda i: (0, 0)),             # VMEM-resident weights
            pl.BlockSpec((1, 2 * C), lambda i: (0, 0)),
            pl.BlockSpec((KC, 2 * C), lambda i: (0, 0)),
            pl.BlockSpec((1, 2 * C), lambda i: (0, 0)),
            pl.BlockSpec((C, OUT_PAD), lambda i: (0, 0)),
            pl.BlockSpec((1, OUT_PAD), lambda i: (0, 0)),
            pl.BlockSpec((OUT_PAD, OUT_PAD), lambda i: (0, 0)),
            pl.BlockSpec((1, OUT_PAD), lambda i: (0, 0)),
        ],
        out_specs=pl.BlockSpec((tb, OUT_PAD), lambda i: (i, 0)),
        scratch_shapes=[
            pltpu.VMEM((tb, l_out1, C), jnp.bfloat16),               # h1
            pltpu.VMEM((l_out2 + 2, tb, GROUP), jnp.bfloat16),       # h1 folded for conv2
        ],
        compiler_params=_COMPILER_PARAMS,
    )(xf1, w1f, b1f, w2f, b2f, wl1, bl1, wl2p, bl2p)


# ---------------- JAX glue ----------------

def fold7(x, pad_left, l_out):
    """Zero-pad the length axis and fold groups of STRIDE(=7) timesteps into lanes.

    x: (B, L, C) -> (B, l_out+2, 7*C) with folded[b, r, c*C + ch] = padded[b, 7*r + c, ch].
    Pure pad + row-major reshape (host side); trailing alignment zeros are never read
    by any conv patch.
    """
    B, L, cc = x.shape
    n7 = l_out + 2
    target = STRIDE * n7
    x = jnp.pad(x, ((0, 0), (pad_left, target - L - pad_left), (0, 0)))
    return x.reshape(B, n7, STRIDE * cc)


def gcnn_forward(packed, word_index):
    # Embedding lookup: data-dependent HBM gather, left to XLA glue (table is bf16).
    emb = packed["embedding"][word_index]                            # (B, L, 64) bf16
    B, L, _ = emb.shape

    l_out1 = (L + 2 * PAD1 - KSIZE) // STRIDE + 1
    l_out2 = (l_out1 - KSIZE) // STRIDE + 1
    xf1 = fold7(emb, PAD1, l_out1)                                   # (B, l_out1+2, 448)

    # Batch blocking: TB rows per grid step (conv1 MXU M = TB*l_out1).
    tb = TB_MAX if B >= TB_MAX else B
    Bp = ((B + tb - 1) // tb) * tb
    if Bp != B:
        xf1 = jnp.pad(xf1, ((0, Bp - B), (0, 0), (0, 0)))

    logits = gcnn_fused_call(xf1, packed["w1f"], packed["b1f"],
                             packed["w2f"], packed["b2f"],
                             packed["wl1"], packed["bl1"],
                             packed["wl2"], packed["bl2"],
                             tb=tb, l_out1=l_out1, l_out2=l_out2)    # (Bp, 128)
    return logits[:B, :NUM_CLASS]


# ---------------- parameter init (matches the PyTorch module) & packing ----------------

def init_params(key):
    ks = jax.random.split(key, 13)
    bound_e = (6.0 / (VOCAB_SIZE + C)) ** 0.5                        # xavier_uniform_
    emb = jax.random.uniform(ks[0], (VOCAB_SIZE, C), jnp.float32, -bound_e, bound_e)

    def conv_init(kw, kb, c_out, c_in, ksz):
        bound = 1.0 / (c_in * ksz) ** 0.5
        w = jax.random.uniform(kw, (c_out, c_in, ksz), jnp.float32, -bound, bound)
        b = jax.random.uniform(kb, (c_out,), jnp.float32, -bound, bound)
        return w, b

    def lin_init(kw, kb, out_f, in_f):
        bound = 1.0 / in_f ** 0.5
        w = jax.random.uniform(kw, (out_f, in_f), jnp.float32, -bound, bound)
        b = jax.random.uniform(kb, (out_f,), jnp.float32, -bound, bound)
        return w, b

    wa1, ba1 = conv_init(ks[1], ks[2], C, C, KSIZE)
    wb1, bb1 = conv_init(ks[3], ks[4], C, C, KSIZE)
    wa2, ba2 = conv_init(ks[5], ks[6], C, C, KSIZE)
    wb2, bb2 = conv_init(ks[7], ks[8], C, C, KSIZE)
    w1, b1 = lin_init(ks[9], ks[10], 128, C)
    w2, b2 = lin_init(ks[11], ks[12], NUM_CLASS, 128)
    return dict(embedding=emb,
                wa1=wa1, ba1=ba1, wb1=wb1, bb1=bb1,
                wa2=wa2, ba2=ba2, wb2=wb2, bb2=bb2,
                w1=w1, b1=b1, w2=w2, b2=b2)


def pack_params(p):
    """One-time weight prep: fuse A|B conv weights, pre-transpose, cast, pad lanes."""
    def flat(w):                                     # (C_out, C_in, K) -> (K*C_in, C_out)
        c_out, c_in, k = w.shape
        return w.transpose(2, 1, 0).reshape(k * c_in, c_out)   # tap-major, channel-minor

    def fuse(wa, ba, wb, bb):
        wf = jnp.concatenate([flat(wa), flat(wb)], axis=1).astype(jnp.bfloat16)  # (960, 128)
        bf = jnp.concatenate([ba, bb]).reshape(1, 2 * C).astype(jnp.float32)     # (1, 128)
        return wf, bf

    w1f, b1f = fuse(p["wa1"], p["ba1"], p["wb1"], p["bb1"])
    w2f, b2f = fuse(p["wa2"], p["ba2"], p["wb2"], p["bb2"])
    # Linear(128, num_class) padded to 128 output lanes -> lane-dense logits store.
    wl2p = jnp.zeros((OUT_PAD, OUT_PAD), jnp.float32).at[:, :NUM_CLASS].set(p["w2"].T)
    bl2p = jnp.zeros((1, OUT_PAD), jnp.float32).at[:, :NUM_CLASS].set(p["b2"])
    return dict(
        embedding=p["embedding"].astype(jnp.bfloat16),           # pre-cast table (one time)
        w1f=w1f, b1f=b1f, w2f=w2f, b2f=b2f,
        wl1=p["w1"].T.astype(jnp.float32), bl1=p["b1"].reshape(1, -1).astype(jnp.float32),
        wl2=wl2p, bl2=bl2p,
    )


# ---------------- pure-JAX reference (PyTorch semantics) ----------------

def gcnn_reference(params, word_index):
    emb = params["embedding"][word_index]                        # (B, L, 64) f32
    x = jnp.transpose(emb, (0, 2, 1))                            # (B, 64, L)  NCW

    def conv1d(x, w, b, pad):
        y = jax.lax.conv_general_dilated(
            x, w, window_strides=(STRIDE,), padding=[(pad, pad)],
            dimension_numbers=("NCW", "OIW", "NCW"))
        return y + b[None, :, None]

    a = conv1d(x, params["wa1"], params["ba1"], PAD1)
    g = conv1d(x, params["wb1"], params["bb1"], PAD1)
    h = a * jax.nn.sigmoid(g)
    a = conv1d(h, params["wa2"], params["ba2"], 0)
    g = conv1d(h, params["wb2"], params["bb2"], 0)
    h = a * jax.nn.sigmoid(g)
    pooled = jnp.mean(h, axis=-1)                                # mean over length
    z = pooled @ params["w1"].T + params["b1"]
    return z @ params["w2"].T + params["b2"]


if __name__ == "__main__":
    key = jax.random.PRNGKey(0)
    params = init_params(key)
    packed = pack_params(params)

    # B=16, L=120  ->  conv1 L_out = 32 (MXU M = 256 per grid step), conv2 L_out = 3,
    # grid = 2 (keeps both v7x TensorCores busy).
    B, L = 16, 120
    word_index = jax.random.randint(jax.random.PRNGKey(1), (B, L), 0, VOCAB_SIZE,
                                    dtype=jnp.int32)

    logits = jax.jit(gcnn_forward)(packed, word_index)
    logits = jax.block_until_ready(logits)
    assert logits.shape == (B, NUM_CLASS) and logits.dtype == jnp.float32
    assert bool(jnp.all(jnp.isfinite(logits)))

    ref = gcnn_reference(params, word_index)
    assert bool(jnp.allclose(logits, ref, atol=3e-2, rtol=3e-2)), (
        f"max abs err {float(jnp.max(jnp.abs(logits - ref)))}")
    print("KERNEL_OK")
</pallas_src>

<mosaic_0001>
module attributes {stable_mosaic.version = 11 : i64} {
  func.func @_fused_gcnn_kernel(%arg0: i32, %arg1: memref<8x34x448xbf16, #tpu.memory_space<vmem>>, %arg2: memref<960x128xbf16, #tpu.memory_space<vmem>>, %arg3: memref<1x128xf32, #tpu.memory_space<vmem>>, %arg4: memref<960x128xbf16, #tpu.memory_space<vmem>>, %arg5: memref<1x128xf32, #tpu.memory_space<vmem>>, %arg6: memref<64x128xf32, #tpu.memory_space<vmem>>, %arg7: memref<1x128xf32, #tpu.memory_space<vmem>>, %arg8: memref<128x128xf32, #tpu.memory_space<vmem>>, %arg9: memref<1x128xf32, #tpu.memory_space<vmem>>, %arg10: memref<8x128xf32, #tpu.memory_space<vmem>>, %arg11: memref<8x32x64xbf16, #tpu.memory_space<vmem>>, %arg12: memref<5x8x448xbf16, #tpu.memory_space<vmem>>) attributes {dimension_semantics = [#tpu.dimension_semantics<parallel>], iteration_bounds = array<i64: 2>, scalar_prefetch = 0 : i64, scratch_operands = 2 : i64, tpu.core_type = #tpu.core_type<tc>, window_params = [{transform_indices = @transform_0, window_bounds = array<i64: 8, 34, 448>}, {pipeline_mode = #tpu.pipeline_mode<synchronous>, transform_indices = @transform_1, window_bounds = array<i64: 960, 128>}, {pipeline_mode = #tpu.pipeline_mode<synchronous>, transform_indices = @transform_2, window_bounds = array<i64: 1, 128>}, {pipeline_mode = #tpu.pipeline_mode<synchronous>, transform_indices = @transform_3, window_bounds = array<i64: 960, 128>}, {pipeline_mode = #tpu.pipeline_mode<synchronous>, transform_indices = @transform_4, window_bounds = array<i64: 1, 128>}, {pipeline_mode = #tpu.pipeline_mode<synchronous>, transform_indices = @transform_5, window_bounds = array<i64: 64, 128>}, {pipeline_mode = #tpu.pipeline_mode<synchronous>, transform_indices = @transform_6, window_bounds = array<i64: 1, 128>}, {pipeline_mode = #tpu.pipeline_mode<synchronous>, transform_indices = @transform_7, window_bounds = array<i64: 128, 128>}, {pipeline_mode = #tpu.pipeline_mode<synchronous>, transform_indices = @transform_8, window_bounds = array<i64: 1, 128>}, {transform_indices = @transform_9, window_bounds = array<i64: 8, 128>}]} {
    %c0 = arith.constant 0 : index
    %c0_0 = arith.constant 0 : index
    %c0_1 = arith.constant 0 : index
    %0 = vector.load %arg1[%c0, %c0_0, %c0_1] : memref<8x34x448xbf16, #tpu.memory_space<vmem>>, vector<8x34x448xbf16>
    %1 = vector.extract_strided_slice %0 {offsets = [0, 0, 0], sizes = [8, 32, 448], strides = [1, 1, 1]} : vector<8x34x448xbf16> to vector<8x32x448xbf16>
    %2 = vector.shape_cast %1 : vector<8x32x448xbf16> to vector<256x448xbf16>
    %3 = vector.extract_strided_slice %0 {offsets = [0, 1, 0], sizes = [8, 32, 448], strides = [1, 1, 1]} : vector<8x34x448xbf16> to vector<8x32x448xbf16>
    %4 = vector.shape_cast %3 : vector<8x32x448xbf16> to vector<256x448xbf16>
    %5 = vector.extract_strided_slice %0 {offsets = [0, 2, 0], sizes = [8, 32, 64], strides = [1, 1, 1]} : vector<8x34x448xbf16> to vector<8x32x64xbf16>
    %6 = vector.shape_cast %5 : vector<8x32x64xbf16> to vector<256x64xbf16>
    %c0_2 = arith.constant 0 : index
    %c0_3 = arith.constant 0 : index
    %7 = vector.load %arg2[%c0_2, %c0_3] : memref<960x128xbf16, #tpu.memory_space<vmem>>, vector<448x128xbf16>
    %cst = arith.constant dense<0.000000e+00> : vector<256x128xf32>
    %8 = tpu.matmul %2, %7, %cst {dimension_numbers = #tpu.dot_dimension_numbers<[1], [0], [0], [1], [0, 0, 1, 1], [], []>} : vector<256x448xbf16>, vector<448x128xbf16>, vector<256x128xf32> -> vector<256x128xf32>
    %c448 = arith.constant 448 : index
    %c0_4 = arith.constant 0 : index
    %9 = vector.load %arg2[%c448, %c0_4] : memref<960x128xbf16, #tpu.memory_space<vmem>>, vector<448x128xbf16>
    %cst_5 = arith.constant dense<0.000000e+00> : vector<256x128xf32>
    %10 = tpu.matmul %4, %9, %cst_5 {dimension_numbers = #tpu.dot_dimension_numbers<[1], [0], [0], [1], [0, 0, 1, 1], [], []>} : vector<256x448xbf16>, vector<448x128xbf16>, vector<256x128xf32> -> vector<256x128xf32>
    %11 = arith.addf %8, %10 : vector<256x128xf32>
    %c896 = arith.constant 896 : index
    %c0_6 = arith.constant 0 : index
    %12 = vector.load %arg2[%c896, %c0_6] : memref<960x128xbf16, #tpu.memory_space<vmem>>, vector<64x128xbf16>
    %cst_7 = arith.constant dense<0.000000e+00> : vector<256x128xf32>
    %13 = tpu.matmul %6, %12, %cst_7 {dimension_numbers = #tpu.dot_dimension_numbers<[1], [0], [0], [1], [0, 0, 1, 1], [], []>} : vector<256x64xbf16>, vector<64x128xbf16>, vector<256x128xf32> -> vector<256x128xf32>
    %14 = arith.addf %11, %13 : vector<256x128xf32>
    %c0_8 = arith.constant 0 : index
    %c0_9 = arith.constant 0 : index
    %15 = vector.load %arg3[%c0_8, %c0_9] : memref<1x128xf32, #tpu.memory_space<vmem>>, vector<1x128xf32>
    %16 = vector.broadcast %15 : vector<1x128xf32> to vector<256x128xf32>
    %17 = arith.addf %14, %16 : vector<256x128xf32>
    %18 = vector.extract_strided_slice %17 {offsets = [0, 0], sizes = [256, 64], strides = [1, 1]} : vector<256x128xf32> to vector<256x64xf32>
    %19 = vector.extract_strided_slice %17 {offsets = [0, 64], sizes = [256, 64], strides = [1, 1]} : vector<256x128xf32> to vector<256x64xf32>
    %20 = arith.negf %19 : vector<256x64xf32>
    %21 = math.exp %20 : vector<256x64xf32>
    %cst_10 = arith.constant 1.000000e+00 : f32
    %22 = vector.broadcast %cst_10 : f32 to vector<256x64xf32>
    %23 = arith.addf %22, %21 : vector<256x64xf32>
    %24 = arith.divf %22, %23 : vector<256x64xf32>
    %25 = arith.mulf %18, %24 : vector<256x64xf32>
    %26 = arith.truncf %25 : vector<256x64xf32> to vector<256x64xbf16>
    %27 = vector.shape_cast %26 : vector<256x64xbf16> to vector<8x32x64xbf16>
    %c0_11 = arith.constant 0 : index
    %c0_12 = arith.constant 0 : index
    %c0_13 = arith.constant 0 : index
    %28 = vector.load %arg11[%c0_11, %c0_12, %c0_13] : memref<8x32x64xbf16, #tpu.memory_space<vmem>>, vector<8x32x64xbf16>
    tpu.vector_store %arg11[%c0_11, %c0_12, %c0_13], %27 {strides = array<i32>} : memref<8x32x64xbf16, #tpu.memory_space<vmem>>, vector<8x32x64xbf16>,
    %c0_14 = arith.constant 0 : index
    %c0_15 = arith.constant 0 : index
    %c0_16 = arith.constant 0 : index
    %29 = vector.load %arg11[%c0_14, %c0_15, %c0_16] : memref<8x32x64xbf16, #tpu.memory_space<vmem>>, vector<8x1x64xbf16>
    %30 = vector.shape_cast %29 : vector<8x1x64xbf16> to vector<8x64xbf16>
    %c0_17 = arith.constant 0 : index
    %c0_18 = arith.constant 0 : index
    %c0_19 = arith.constant 0 : index
    %31 = vector.load %arg12[%c0_17, %c0_18, %c0_19] : memref<5x8x448xbf16, #tpu.memory_space<vmem>>, vector<1x8x64xbf16>
    %32 = vector.shape_cast %31 : vector<1x8x64xbf16> to vector<8x64xbf16>
    %33 = vector.shape_cast %30 : vector<8x64xbf16> to vector<1x8x64xbf16>
    tpu.vector_store %arg12[%c0_17, %c0_18, %c0_19], %33 {strides = array<i32>} : memref<5x8x448xbf16, #tpu.memory_space<vmem>>, vector<1x8x64xbf16>,
    %c0_20 = arith.constant 0 : index
    %c1 = arith.constant 1 : index
    %c0_21 = arith.constant 0 : index
    %34 = vector.load %arg11[%c0_20, %c1, %c0_21] : memref<8x32x64xbf16, #tpu.memory_space<vmem>>, vector<8x1x64xbf16>
    %35 = vector.shape_cast %34 : vector<8x1x64xbf16> to vector<8x64xbf16>
    %c0_22 = arith.constant 0 : index
    %c0_23 = arith.constant 0 : index
    %c64 = arith.constant 64 : index
    %36 = vector.load %arg12[%c0_22, %c0_23, %c64] : memref<5x8x448xbf16, #tpu.memory_space<vmem>>, vector<1x8x64xbf16>
    %37 = vector.shape_cast %36 : vector<1x8x64xbf16> to vector<8x64xbf16>
    %38 = vector.shape_cast %35 : vector<8x64xbf16> to vector<1x8x64xbf16>
    tpu.vector_store %arg12[%c0_22, %c0_23, %c64], %38 {strides = array<i32>} : memref<5x8x448xbf16, #tpu.memory_space<vmem>>, vector<1x8x64xbf16>,
    %c0_24 = arith.constant 0 : index
    %c2 = arith.constant 2 : index
    %c0_25 = arith.constant 0 : index
    %39 = vector.load %arg11[%c0_24, %c2, %c0_25] : memref<8x32x64xbf16, #tpu.memory_space<vmem>>, vector<8x1x64xbf16>
    %40 = vector.shape_cast %39 : vector<8x1x64xbf16> to vector<8x64xbf16>
    %c0_26 = arith.constant 0 : index
    %c0_27 = arith.constant 0 : index
    %c128 = arith.constant 128 : index
    %41 = vector.load %arg12[%c0_26, %c0_27, %c128] : memref<5x8x448xbf16, #tpu.memory_space<vmem>>, vector<1x8x64xbf16>
    %42 = vector.shape_cast %41 : vector<1x8x64xbf16> to vector<8x64xbf16>
    %43 = vector.shape_cast %40 : vector<8x64xbf16> to vector<1x8x64xbf16>
    tpu.vector_store %arg12[%c0_26, %c0_27, %c128], %43 {strides = array<i32>} : memref<5x8x448xbf16, #tpu.memory_space<vmem>>, vector<1x8x64xbf16>,
    %c0_28 = arith.constant 0 : index
    %c3 = arith.constant 3 : index
    %c0_29 = arith.constant 0 : index
    %44 = vector.load %arg11[%c0_28, %c3, %c0_29] : memref<8x32x64xbf16, #tpu.memory_space<vmem>>, vector<8x1x64xbf16>
    %45 = vector.shape_cast %44 : vector<8x1x64xbf16> to vector<8x64xbf16>
    %c0_30 = arith.constant 0 : index
    %c0_31 = arith.constant 0 : index
    %c192 = arith.constant 192 : index
    %46 = vector.load %arg12[%c0_30, %c0_31, %c192] : memref<5x8x448xbf16, #tpu.memory_space<vmem>>, vector<1x8x64xbf16>
    %47 = vector.shape_cast %46 : vector<1x8x64xbf16> to vector<8x64xbf16>
    %48 = vector.shape_cast %45 : vector<8x64xbf16> to vector<1x8x64xbf16>
    tpu.vector_store %arg12[%c0_30, %c0_31, %c192], %48 {strides = array<i32>} : memref<5x8x448xbf16, #tpu.memory_space<vmem>>, vector<1x8x64xbf16>,
    %c0_32 = arith.constant 0 : index
    %c4 = arith.constant 4 : index
    %c0_33 = arith.constant 0 : index
    %49 = vector.load %arg11[%c0_32, %c4, %c0_33] : memref<8x32x64xbf16, #tpu.memory_space<vmem>>, vector<8x1x64xbf16>
    %50 = vector.shape_cast %49 : vector<8x1x64xbf16> to vector<8x64xbf16>
    %c0_34 = arith.constant 0 : index
    %c0_35 = arith.constant 0 : index
    %c256 = arith.constant 256 : index
    %51 = vector.load %arg12[%c0_34, %c0_35, %c256] : memref<5x8x448xbf16, #tpu.memory_space<vmem>>, vector<1x8x64xbf16>
    %52 = vector.shape_cast %51 : vector<1x8x64xbf16> to vector<8x64xbf16>
    %53 = vector.shape_cast %50 : vector<8x64xbf16> to vector<1x8x64xbf16>
    tpu.vector_store %arg12[%c0_34, %c0_35, %c256], %53 {strides = array<i32>} : memref<5x8x448xbf16, #tpu.memory_space<vmem>>, vector<1x8x64xbf16>,
    %c0_36 = arith.constant 0 : index
    %c5 = arith.constant 5 : index
    %c0_37 = arith.constant 0 : index
    %54 = vector.load %arg11[%c0_36, %c5, %c0_37] : memref<8x32x64xbf16, #tpu.memory_space<vmem>>, vector<8x1x64xbf16>
    %55 = vector.shape_cast %54 : vector<8x1x64xbf16> to vector<8x64xbf16>
    %c0_38 = arith.constant 0 : index
    %c0_39 = arith.constant 0 : index
    %c320 = arith.constant 320 : index
    %56 = vector.load %arg12[%c0_38, %c0_39, %c320] : memref<5x8x448xbf16, #tpu.memory_space<vmem>>, vector<1x8x64xbf16>
    %57 = vector.shape_cast %56 : vector<1x8x64xbf16> to vector<8x64xbf16>
    %58 = vector.shape_cast %55 : vector<8x64xbf16> to vector<1x8x64xbf16>
    tpu.vector_store %arg12[%c0_38, %c0_39, %c320], %58 {strides = array<i32>} : memref<5x8x448xbf16, #tpu.memory_space<vmem>>, vector<1x8x64xbf16>,
    %c0_40 = arith.constant 0 : index
    %c6 = arith.constant 6 : index
    %c0_41 = arith.constant 0 : index
    %59 = vector.load %arg11[%c0_40, %c6, %c0_41] : memref<8x32x64xbf16, #tpu.memory_space<vmem>>, vector<8x1x64xbf16>
    %60 = vector.shape_cast %59 : vector<8x1x64xbf16> to vector<8x64xbf16>
    %c0_42 = arith.constant 0 : index
    %c0_43 = arith.constant 0 : index
    %c384 = arith.constant 384 : index
    %61 = vector.load %arg12[%c0_42, %c0_43, %c384] : memref<5x8x448xbf16, #tpu.memory_space<vmem>>, vector<1x8x64xbf16>
    %62 = vector.shape_cast %61 : vector<1x8x64xbf16> to vector<8x64xbf16>
    %63 = vector.shape_cast %60 : vector<8x64xbf16> to vector<1x8x64xbf16>
    tpu.vector_store %arg12[%c0_42, %c0_43, %c384], %63 {strides = array<i32>} : memref<5x8x448xbf16, #tpu.memory_space<vmem>>, vector<1x8x64xbf16>,
    %c0_44 = arith.constant 0 : index
    %c7 = arith.constant 7 : index
    %c0_45 = arith.constant 0 : index
    %64 = vector.load %arg11[%c0_44, %c7, %c0_45] : memref<8x32x64xbf16, #tpu.memory_space<vmem>>, vector<8x1x64xbf16>
    %65 = vector.shape_cast %64 : vector<8x1x64xbf16> to vector<8x64xbf16>
    %c1_46 = arith.constant 1 : index
    %c0_47 = arith.constant 0 : index
    %c0_48 = arith.constant 0 : index
    %66 = vector.load %arg12[%c1_46, %c0_47, %c0_48] : memref<5x8x448xbf16, #tpu.memory_space<vmem>>, vector<1x8x64xbf16>
    %67 = vector.shape_cast %66 : vector<1x8x64xbf16> to vector<8x64xbf16>
    %68 = vector.shape_cast %65 : vector<8x64xbf16> to vector<1x8x64xbf16>
    tpu.vector_store %arg12[%c1_46, %c0_47, %c0_48], %68 {strides = array<i32>} : memref<5x8x448xbf16, #tpu.memory_space<vmem>>, vector<1x8x64xbf16>,
    %c0_49 = arith.constant 0 : index
    %c8 = arith.constant 8 : index
    %c0_50 = arith.constant 0 : index
    %69 = vector.load %arg11[%c0_49, %c8, %c0_50] : memref<8x32x64xbf16, #tpu.memory_space<vmem>>, vector<8x1x64xbf16>
    %70 = vector.shape_cast %69 : vector<8x1x64xbf16> to vector<8x64xbf16>
    %c1_51 = arith.constant 1 : index
    %c0_52 = arith.constant 0 : index
    %c64_53 = arith.constant 64 : index
    %71 = vector.load %arg12[%c1_51, %c0_52, %c64_53] : memref<5x8x448xbf16, #tpu.memory_space<vmem>>, vector<1x8x64xbf16>
    %72 = vector.shape_cast %71 : vector<1x8x64xbf16> to vector<8x64xbf16>
    %73 = vector.shape_cast %70 : vector<8x64xbf16> to vector<1x8x64xbf16>
    tpu.vector_store %arg12[%c1_51, %c0_52, %c64_53], %73 {strides = array<i32>} : memref<5x8x448xbf16, #tpu.memory_space<vmem>>, vector<1x8x64xbf16>,
    %c0_54 = arith.constant 0 : index
    %c9 = arith.constant 9 : index
    %c0_55 = arith.constant 0 : index
    %74 = vector.load %arg11[%c0_54, %c9, %c0_55] : memref<8x32x64xbf16, #tpu.memory_space<vmem>>, vector<8x1x64xbf16>
    %75 = vector.shape_cast %74 : vector<8x1x64xbf16> to vector<8x64xbf16>
    %c1_56 = arith.constant 1 : index
    %c0_57 = arith.constant 0 : index
    %c128_58 = arith.constant 128 : index
    %76 = vector.load %arg12[%c1_56, %c0_57, %c128_58] : memref<5x8x448xbf16, #tpu.memory_space<vmem>>, vector<1x8x64xbf16>
    %77 = vector.shape_cast %76 : vector<1x8x64xbf16> to vector<8x64xbf16>
    %78 = vector.shape_cast %75 : vector<8x64xbf16> to vector<1x8x64xbf16>
    tpu.vector_store %arg12[%c1_56, %c0_57, %c128_58], %78 {strides = array<i32>} : memref<5x8x448xbf16, #tpu.memory_space<vmem>>, vector<1x8x64xbf16>,
    %c0_59 = arith.constant 0 : index
    %c10 = arith.constant 10 : index
    %c0_60 = arith.constant 0 : index
    %79 = vector.load %arg11[%c0_59, %c10, %c0_60] : memref<8x32x64xbf16, #tpu.memory_space<vmem>>, vector<8x1x64xbf16>
    %80 = vector.shape_cast %79 : vector<8x1x64xbf16> to vector<8x64xbf16>
    %c1_61 = arith.constant 1 : index
    %c0_62 = arith.constant 0 : index
    %c192_63 = arith.constant 192 : index
    %81 = vector.load %arg12[%c1_61, %c0_62, %c192_63] : memref<5x8x448xbf16, #tpu.memory_space<vmem>>, vector<1x8x64xbf16>
    %82 = vector.shape_cast %81 : vector<1x8x64xbf16> to vector<8x64xbf16>
    %83 = vector.shape_cast %80 : vector<8x64xbf16> to vector<1x8x64xbf16>
    tpu.vector_store %arg12[%c1_61, %c0_62, %c192_63], %83 {strides = array<i32>} : memref<5x8x448xbf16, #tpu.memory_space<vmem>>, vector<1x8x64xbf16>,
    %c0_64 = arith.constant 0 : index
    %c11 = arith.constant 11 : index
    %c0_65 = arith.constant 0 : index
    %84 = vector.load %arg11[%c0_64, %c11, %c0_65] : memref<8x32x64xbf16, #tpu.memory_space<vmem>>, vector<8x1x64xbf16>
    %85 = vector.shape_cast %84 : vector<8x1x64xbf16> to vector<8x64xbf16>
    %c1_66 = arith.constant 1 : index
    %c0_67 = arith.constant 0 : index
    %c256_68 = arith.constant 256 : index
    %86 = vector.load %arg12[%c1_66, %c0_67, %c256_68] : memref<5x8x448xbf16, #tpu.memory_space<vmem>>, vector<1x8x64xbf16>
    %87 = vector.shape_cast %86 : vector<1x8x64xbf16> to vector<8x64xbf16>
    %88 = vector.shape_cast %85 : vector<8x64xbf16> to vector<1x8x64xbf16>
    tpu.vector_store %arg12[%c1_66, %c0_67, %c256_68], %88 {strides = array<i32>} : memref<5x8x448xbf16, #tpu.memory_space<vmem>>, vector<1x8x64xbf16>,
    %c0_69 = arith.constant 0 : index
    %c12 = arith.constant 12 : index
    %c0_70 = arith.constant 0 : index
    %89 = vector.load %arg11[%c0_69, %c12, %c0_70] : memref<8x32x64xbf16, #tpu.memory_space<vmem>>, vector<8x1x64xbf16>
    %90 = vector.shape_cast %89 : vector<8x1x64xbf16> to vector<8x64xbf16>
    %c1_71 = arith.constant 1 : index
    %c0_72 = arith.constant 0 : index
    %c320_73 = arith.constant 320 : index
    %91 = vector.load %arg12[%c1_71, %c0_72, %c320_73] : memref<5x8x448xbf16, #tpu.memory_space<vmem>>, vector<1x8x64xbf16>
    %92 = vector.shape_cast %91 : vector<1x8x64xbf16> to vector<8x64xbf16>
    %93 = vector.shape_cast %90 : vector<8x64xbf16> to vector<1x8x64xbf16>
    tpu.vector_store %arg12[%c1_71, %c0_72, %c320_73], %93 {strides = array<i32>} : memref<5x8x448xbf16, #tpu.memory_space<vmem>>, vector<1x8x64xbf16>,
    %c0_74 = arith.constant 0 : index
    %c13 = arith.constant 13 : index
    %c0_75 = arith.constant 0 : index
    %94 = vector.load %arg11[%c0_74, %c13, %c0_75] : memref<8x32x64xbf16, #tpu.memory_space<vmem>>, vector<8x1x64xbf16>
    %95 = vector.shape_cast %94 : vector<8x1x64xbf16> to vector<8x64xbf16>
    %c1_76 = arith.constant 1 : index
    %c0_77 = arith.constant 0 : index
    %c384_78 = arith.constant 384 : index
    %96 = vector.load %arg12[%c1_76, %c0_77, %c384_78] : memref<5x8x448xbf16, #tpu.memory_space<vmem>>, vector<1x8x64xbf16>
    %97 = vector.shape_cast %96 : vector<1x8x64xbf16> to vector<8x64xbf16>
    %98 = vector.shape_cast %95 : vector<8x64xbf16> to vector<1x8x64xbf16>
    tpu.vector_store %arg12[%c1_76, %c0_77, %c384_78], %98 {strides = array<i32>} : memref<5x8x448xbf16, #tpu.memory_space<vmem>>, vector<1x8x64xbf16>,
    %c0_79 = arith.constant 0 : index
    %c14 = arith.constant 14 : index
    %c0_80 = arith.constant 0 : index
    %99 = vector.load %arg11[%c0_79, %c14, %c0_80] : memref<8x32x64xbf16, #tpu.memory_space<vmem>>, vector<8x1x64xbf16>
    %100 = vector.shape_cast %99 : vector<8x1x64xbf16> to vector<8x64xbf16>
    %c2_81 = arith.constant 2 : index
    %c0_82 = arith.constant 0 : index
    %c0_83 = arith.constant 0 : index
    %101 = vector.load %arg12[%c2_81, %c0_82, %c0_83] : memref<5x8x448xbf16, #tpu.memory_space<vmem>>, vector<1x8x64xbf16>
    %102 = vector.shape_cast %101 : vector<1x8x64xbf16> to vector<8x64xbf16>
    %103 = vector.shape_cast %100 : vector<8x64xbf16> to vector<1x8x64xbf16>
    tpu.vector_store %arg12[%c2_81, %c0_82, %c0_83], %103 {strides = array<i32>} : memref<5x8x448xbf16, #tpu.memory_space<vmem>>, vector<1x8x64xbf16>,
    %c0_84 = arith.constant 0 : index
    %c15 = arith.constant 15 : index
    %c0_85 = arith.constant 0 : index
    %104 = vector.load %arg11[%c0_84, %c15, %c0_85] : memref<8x32x64xbf16, #tpu.memory_space<vmem>>, vector<8x1x64xbf16>
    %105 = vector.shape_cast %104 : vector<8x1x64xbf16> to vector<8x64xbf16>
    %c2_86 = arith.constant 2 : index
    %c0_87 = arith.constant 0 : index
    %c64_88 = arith.constant 64 : index
    %106 = vector.load %arg12[%c2_86, %c0_87, %c64_88] : memref<5x8x448xbf16, #tpu.memory_space<vmem>>, vector<1x8x64xbf16>
    %107 = vector.shape_cast %106 : vector<1x8x64xbf16> to vector<8x64xbf16>
    %108 = vector.shape_cast %105 : vector<8x64xbf16> to vector<1x8x64xbf16>
    tpu.vector_store %arg12[%c2_86, %c0_87, %c64_88], %108 {strides = array<i32>} : memref<5x8x448xbf16, #tpu.memory_space<vmem>>, vector<1x8x64xbf16>,
    %c0_89 = arith.constant 0 : index
    %c16 = arith.constant 16 : index
    %c0_90 = arith.constant 0 : index
    %109 = vector.load %arg11[%c0_89, %c16, %c0_90] : memref<8x32x64xbf16, #tpu.memory_space<vmem>>, vector<8x1x64xbf16>
    %110 = vector.shape_cast %109 : vector<8x1x64xbf16> to vector<8x64xbf16>
    %c2_91 = arith.constant 2 : index
    %c0_92 = arith.constant 0 : index
    %c128_93 = arith.constant 128 : index
    %111 = vector.load %arg12[%c2_91, %c0_92, %c128_93] : memref<5x8x448xbf16, #tpu.memory_space<vmem>>, vector<1x8x64xbf16>
    %112 = vector.shape_cast %111 : vector<1x8x64xbf16> to vector<8x64xbf16>
    %113 = vector.shape_cast %110 : vector<8x64xbf16> to vector<1x8x64xbf16>
    tpu.vector_store %arg12[%c2_91, %c0_92, %c128_93], %113 {strides = array<i32>} : memref<5x8x448xbf16, #tpu.memory_space<vmem>>, vector<1x8x64xbf16>,
    %c0_94 = arith.constant 0 : index
    %c17 = arith.constant 17 : index
    %c0_95 = arith.constant 0 : index
    %114 = vector.load %arg11[%c0_94, %c17, %c0_95] : memref<8x32x64xbf16, #tpu.memory_space<vmem>>, vector<8x1x64xbf16>
    %115 = vector.shape_cast %114 : vector<8x1x64xbf16> to vector<8x64xbf16>
    %c2_96 = arith.constant 2 : index
    %c0_97 = arith.constant 0 : index
    %c192_98 = arith.constant 192 : index
    %116 = vector.load %arg12[%c2_96, %c0_97, %c192_98] : memref<5x8x448xbf16, #tpu.memory_space<vmem>>, vector<1x8x64xbf16>
    %117 = vector.shape_cast %116 : vector<1x8x64xbf16> to vector<8x64xbf16>
    %118 = vector.shape_cast %115 : vector<8x64xbf16> to vector<1x8x64xbf16>
    tpu.vector_store %arg12[%c2_96, %c0_97, %c192_98], %118 {strides = array<i32>} : memref<5x8x448xbf16, #tpu.memory_space<vmem>>, vector<1x8x64xbf16>,
    %c0_99 = arith.constant 0 : index
    %c18 = arith.constant 18 : index
    %c0_100 = arith.constant 0 : index
    %119 = vector.load %arg11[%c0_99, %c18, %c0_100] : memref<8x32x64xbf16, #tpu.memory_space<vmem>>, vector<8x1x64xbf16>
    %120 = vector.shape_cast %119 : vector<8x1x64xbf16> to vector<8x64xbf16>
    %c2_101 = arith.constant 2 : index
    %c0_102 = arith.constant 0 : index
    %c256_103 = arith.constant 256 : index
    %121 = vector.load %arg12[%c2_101, %c0_102, %c256_103] : memref<5x8x448xbf16, #tpu.memory_space<vmem>>, vector<1x8x64xbf16>
    %122 = vector.shape_cast %121 : vector<1x8x64xbf16> to vector<8x64xbf16>
    %123 = vector.shape_cast %120 : vector<8x64xbf16> to vector<1x8x64xbf16>
    tpu.vector_store %arg12[%c2_101, %c0_102, %c256_103], %123 {strides = array<i32>} : memref<5x8x448xbf16, #tpu.memory_space<vmem>>, vector<1x8x64xbf16>,
    %c0_104 = arith.constant 0 : index
    %c19 = arith.constant 19 : index
    %c0_105 = arith.constant 0 : index
    %124 = vector.load %arg11[%c0_104, %c19, %c0_105] : memref<8x32x64xbf16, #tpu.memory_space<vmem>>, vector<8x1x64xbf16>
    %125 = vector.shape_cast %124 : vector<8x1x64xbf16> to vector<8x64xbf16>
    %c2_106 = arith.constant 2 : index
    %c0_107 = arith.constant 0 : index
    %c320_108 = arith.constant 320 : index
    %126 = vector.load %arg12[%c2_106, %c0_107, %c320_108] : memref<5x8x448xbf16, #tpu.memory_space<vmem>>, vector<1x8x64xbf16>
    %127 = vector.shape_cast %126 : vector<1x8x64xbf16> to vector<8x64xbf16>
    %128 = vector.shape_cast %125 : vector<8x64xbf16> to vector<1x8x64xbf16>
    tpu.vector_store %arg12[%c2_106, %c0_107, %c320_108], %128 {strides = array<i32>} : memref<5x8x448xbf16, #tpu.memory_space<vmem>>, vector<1x8x64xbf16>,
    %c0_109 = arith.constant 0 : index
    %c20 = arith.constant 20 : index
    %c0_110 = arith.constant 0 : index
    %129 = vector.load %arg11[%c0_109, %c20, %c0_110] : memref<8x32x64xbf16, #tpu.memory_space<vmem>>, vector<8x1x64xbf16>
    %130 = vector.shape_cast %129 : vector<8x1x64xbf16> to vector<8x64xbf16>
    %c2_111 = arith.constant 2 : index
    %c0_112 = arith.constant 0 : index
    %c384_113 = arith.constant 384 : index
    %131 = vector.load %arg12[%c2_111, %c0_112, %c384_113] : memref<5x8x448xbf16, #tpu.memory_space<vmem>>, vector<1x8x64xbf16>
    %132 = vector.shape_cast %131 : vector<1x8x64xbf16> to vector<8x64xbf16>
    %133 = vector.shape_cast %130 : vector<8x64xbf16> to vector<1x8x64xbf16>
    tpu.vector_store %arg12[%c2_111, %c0_112, %c384_113], %133 {strides = array<i32>} : memref<5x8x448xbf16, #tpu.memory_space<vmem>>, vector<1x8x64xbf16>,
    %c0_114 = arith.constant 0 : index
    %c21 = arith.constant 21 : index
    %c0_115 = arith.constant 0 : index
    %134 = vector.load %arg11[%c0_114, %c21, %c0_115] : memref<8x32x64xbf16, #tpu.memory_space<vmem>>, vector<8x1x64xbf16>
    %135 = vector.shape_cast %134 : vector<8x1x64xbf16> to vector<8x64xbf16>
    %c3_116 = arith.constant 3 : index
    %c0_117 = arith.constant 0 : index
    %c0_118 = arith.constant 0 : index
    %136 = vector.load %arg12[%c3_116, %c0_117, %c0_118] : memref<5x8x448xbf16, #tpu.memory_space<vmem>>, vector<1x8x64xbf16>
    %137 = vector.shape_cast %136 : vector<1x8x64xbf16> to vector<8x64xbf16>
    %138 = vector.shape_cast %135 : vector<8x64xbf16> to vector<1x8x64xbf16>
    tpu.vector_store %arg12[%c3_116, %c0_117, %c0_118], %138 {strides = array<i32>} : memref<5x8x448xbf16, #tpu.memory_space<vmem>>, vector<1x8x64xbf16>,
    %c0_119 = arith.constant 0 : index
    %c22 = arith.constant 22 : index
    %c0_120 = arith.constant 0 : index
    %139 = vector.load %arg11[%c0_119, %c22, %c0_120] : memref<8x32x64xbf16, #tpu.memory_space<vmem>>, vector<8x1x64xbf16>
    %140 = vector.shape_cast %139 : vector<8x1x64xbf16> to vector<8x64xbf16>
    %c3_121 = arith.constant 3 : index
    %c0_122 = arith.constant 0 : index
    %c64_123 = arith.constant 64 : index
    %141 = vector.load %arg12[%c3_121, %c0_122, %c64_123] : memref<5x8x448xbf16, #tpu.memory_space<vmem>>, vector<1x8x64xbf16>
    %142 = vector.shape_cast %141 : vector<1x8x64xbf16> to vector<8x64xbf16>
    %143 = vector.shape_cast %140 : vector<8x64xbf16> to vector<1x8x64xbf16>
    tpu.vector_store %arg12[%c3_121, %c0_122, %c64_123], %143 {strides = array<i32>} : memref<5x8x448xbf16, #tpu.memory_space<vmem>>, vector<1x8x64xbf16>,
    %c0_124 = arith.constant 0 : index
    %c23 = arith.constant 23 : index
    %c0_125 = arith.constant 0 : index
    %144 = vector.load %arg11[%c0_124, %c23, %c0_125] : memref<8x32x64xbf16, #tpu.memory_space<vmem>>, vector<8x1x64xbf16>
    %145 = vector.shape_cast %144 : vector<8x1x64xbf16> to vector<8x64xbf16>
    %c3_126 = arith.constant 3 : index
    %c0_127 = arith.constant 0 : index
    %c128_128 = arith.constant 128 : index
    %146 = vector.load %arg12[%c3_126, %c0_127, %c128_128] : memref<5x8x448xbf16, #tpu.memory_space<vmem>>, vector<1x8x64xbf16>
    %147 = vector.shape_cast %146 : vector<1x8x64xbf16> to vector<8x64xbf16>
    %148 = vector.shape_cast %145 : vector<8x64xbf16> to vector<1x8x64xbf16>
    tpu.vector_store %arg12[%c3_126, %c0_127, %c128_128], %148 {strides = array<i32>} : memref<5x8x448xbf16, #tpu.memory_space<vmem>>, vector<1x8x64xbf16>,
    %c0_129 = arith.constant 0 : index
    %c24 = arith.constant 24 : index
    %c0_130 = arith.constant 0 : index
    %149 = vector.load %arg11[%c0_129, %c24, %c0_130] : memref<8x32x64xbf16, #tpu.memory_space<vmem>>, vector<8x1x64xbf16>
    %150 = vector.shape_cast %149 : vector<8x1x64xbf16> to vector<8x64xbf16>
    %c3_131 = arith.constant 3 : index
    %c0_132 = arith.constant 0 : index
    %c192_133 = arith.constant 192 : index
    %151 = vector.load %arg12[%c3_131, %c0_132, %c192_133] : memref<5x8x448xbf16, #tpu.memory_space<vmem>>, vector<1x8x64xbf16>
    %152 = vector.shape_cast %151 : vector<1x8x64xbf16> to vector<8x64xbf16>
    %153 = vector.shape_cast %150 : vector<8x64xbf16> to vector<1x8x64xbf16>
    tpu.vector_store %arg12[%c3_131, %c0_132, %c192_133], %153 {strides = array<i32>} : memref<5x8x448xbf16, #tpu.memory_space<vmem>>, vector<1x8x64xbf16>,
    %c0_134 = arith.constant 0 : index
    %c25 = arith.constant 25 : index
    %c0_135 = arith.constant 0 : index
    %154 = vector.load %arg11[%c0_134, %c25, %c0_135] : memref<8x32x64xbf16, #tpu.memory_space<vmem>>, vector<8x1x64xbf16>
    %155 = vector.shape_cast %154 : vector<8x1x64xbf16> to vector<8x64xbf16>
    %c3_136 = arith.constant 3 : index
    %c0_137 = arith.constant 0 : index
    %c256_138 = arith.constant 256 : index
    %156 = vector.load %arg12[%c3_136, %c0_137, %c256_138] : memref<5x8x448xbf16, #tpu.memory_space<vmem>>, vector<1x8x64xbf16>
    %157 = vector.shape_cast %156 : vector<1x8x64xbf16> to vector<8x64xbf16>
    %158 = vector.shape_cast %155 : vector<8x64xbf16> to vector<1x8x64xbf16>
    tpu.vector_store %arg12[%c3_136, %c0_137, %c256_138], %158 {strides = array<i32>} : memref<5x8x448xbf16, #tpu.memory_space<vmem>>, vector<1x8x64xbf16>,
    %c0_139 = arith.constant 0 : index
    %c26 = arith.constant 26 : index
    %c0_140 = arith.constant 0 : index
    %159 = vector.load %arg11[%c0_139, %c26, %c0_140] : memref<8x32x64xbf16, #tpu.memory_space<vmem>>, vector<8x1x64xbf16>
    %160 = vector.shape_cast %159 : vector<8x1x64xbf16> to vector<8x64xbf16>
    %c3_141 = arith.constant 3 : index
    %c0_142 = arith.constant 0 : index
    %c320_143 = arith.constant 320 : index
    %161 = vector.load %arg12[%c3_141, %c0_142, %c320_143] : memref<5x8x448xbf16, #tpu.memory_space<vmem>>, vector<1x8x64xbf16>
    %162 = vector.shape_cast %161 : vector<1x8x64xbf16> to vector<8x64xbf16>
    %163 = vector.shape_cast %160 : vector<8x64xbf16> to vector<1x8x64xbf16>
    tpu.vector_store %arg12[%c3_141, %c0_142, %c320_143], %163 {strides = array<i32>} : memref<5x8x448xbf16, #tpu.memory_space<vmem>>, vector<1x8x64xbf16>,
    %c0_144 = arith.constant 0 : index
    %c27 = arith.constant 27 : index
    %c0_145 = arith.constant 0 : index
    %164 = vector.load %arg11[%c0_144, %c27, %c0_145] : memref<8x32x64xbf16, #tpu.memory_space<vmem>>, vector<8x1x64xbf16>
    %165 = vector.shape_cast %164 : vector<8x1x64xbf16> to vector<8x64xbf16>
    %c3_146 = arith.constant 3 : index
    %c0_147 = arith.constant 0 : index
    %c384_148 = arith.constant 384 : index
    %166 = vector.load %arg12[%c3_146, %c0_147, %c384_148] : memref<5x8x448xbf16, #tpu.memory_space<vmem>>, vector<1x8x64xbf16>
    %167 = vector.shape_cast %166 : vector<1x8x64xbf16> to vector<8x64xbf16>
    %168 = vector.shape_cast %165 : vector<8x64xbf16> to vector<1x8x64xbf16>
    tpu.vector_store %arg12[%c3_146, %c0_147, %c384_148], %168 {strides = array<i32>} : memref<5x8x448xbf16, #tpu.memory_space<vmem>>, vector<1x8x64xbf16>,
    %c0_149 = arith.constant 0 : index
    %c28 = arith.constant 28 : index
    %c0_150 = arith.constant 0 : index
    %169 = vector.load %arg11[%c0_149, %c28, %c0_150] : memref<8x32x64xbf16, #tpu.memory_space<vmem>>, vector<8x1x64xbf16>
    %170 = vector.shape_cast %169 : vector<8x1x64xbf16> to vector<8x64xbf16>
    %c4_151 = arith.constant 4 : index
    %c0_152 = arith.constant 0 : index
    %c0_153 = arith.constant 0 : index
    %171 = vector.load %arg12[%c4_151, %c0_152, %c0_153] : memref<5x8x448xbf16, #tpu.memory_space<vmem>>, vector<1x8x64xbf16>
    %172 = vector.shape_cast %171 : vector<1x8x64xbf16> to vector<8x64xbf16>
    %173 = vector.shape_cast %170 : vector<8x64xbf16> to vector<1x8x64xbf16>
    tpu.vector_store %arg12[%c4_151, %c0_152, %c0_153], %173 {strides = array<i32>} : memref<5x8x448xbf16, #tpu.memory_space<vmem>>, vector<1x8x64xbf16>,
    %cst_154 = arith.constant 0.000000e+00 : f32
    %174 = vector.broadcast %cst_154 : f32 to vector<8x64xf32>
    %c0_155 = arith.constant 0 : index
    %c0_156 = arith.constant 0 : index
    %c0_157 = arith.constant 0 : index
    %175 = vector.load %arg12[%c0_155, %c0_156, %c0_157] : memref<5x8x448xbf16, #tpu.memory_space<vmem>>, vector<1x8x448xbf16>
    %176 = vector.shape_cast %175 : vector<1x8x448xbf16> to vector<8x448xbf16>
    %c0_158 = arith.constant 0 : index
    %c0_159 = arith.constant 0 : index
    %177 = vector.load %arg4[%c0_158, %c0_159] : memref<960x128xbf16, #tpu.memory_space<vmem>>, vector<448x128xbf16>
    %cst_160 = arith.constant dense<0.000000e+00> : vector<8x128xf32>
    %178 = tpu.matmul %176, %177, %cst_160 {dimension_numbers = #tpu.dot_dimension_numbers<[1], [0], [0], [1], [0, 0, 1, 1], [], []>} : vector<8x448xbf16>, vector<448x128xbf16>, vector<8x128xf32> -> vector<8x128xf32>
    %c1_161 = arith.constant 1 : index
    %c0_162 = arith.constant 0 : index
    %c0_163 = arith.constant 0 : index
    %179 = vector.load %arg12[%c1_161, %c0_162, %c0_163] : memref<5x8x448xbf16, #tpu.memory_space<vmem>>, vector<1x8x448xbf16>
    %180 = vector.shape_cast %179 : vector<1x8x448xbf16> to vector<8x448xbf16>
    %c448_164 = arith.constant 448 : index
    %c0_165 = arith.constant 0 : index
    %181 = vector.load %arg4[%c448_164, %c0_165] : memref<960x128xbf16, #tpu.memory_space<vmem>>, vector<448x128xbf16>
    %cst_166 = arith.constant dense<0.000000e+00> : vector<8x128xf32>
    %182 = tpu.matmul %180, %181, %cst_166 {dimension_numbers = #tpu.dot_dimension_numbers<[1], [0], [0], [1], [0, 0, 1, 1], [], []>} : vector<8x448xbf16>, vector<448x128xbf16>, vector<8x128xf32> -> vector<8x128xf32>
    %183 = arith.addf %178, %182 : vector<8x128xf32>
    %c2_167 = arith.constant 2 : index
    %c0_168 = arith.constant 0 : index
    %c0_169 = arith.constant 0 : index
    %184 = vector.load %arg12[%c2_167, %c0_168, %c0_169] : memref<5x8x448xbf16, #tpu.memory_space<vmem>>, vector<1x8x64xbf16>
    %185 = vector.shape_cast %184 : vector<1x8x64xbf16> to vector<8x64xbf16>
    %c896_170 = arith.constant 896 : index
    %c0_171 = arith.constant 0 : index
    %186 = vector.load %arg4[%c896_170, %c0_171] : memref<960x128xbf16, #tpu.memory_space<vmem>>, vector<64x128xbf16>
    %cst_172 = arith.constant dense<0.000000e+00> : vector<8x128xf32>
    %187 = tpu.matmul %185, %186, %cst_172 {dimension_numbers = #tpu.dot_dimension_numbers<[1], [0], [0], [1], [0, 0, 1, 1], [], []>} : vector<8x64xbf16>, vector<64x128xbf16>, vector<8x128xf32> -> vector<8x128xf32>
    %188 = arith.addf %183, %187 : vector<8x128xf32>
    %c0_173 = arith.constant 0 : index
    %c0_174 = arith.constant 0 : index
    %189 = vector.load %arg5[%c0_173, %c0_174] : memref<1x128xf32, #tpu.memory_space<vmem>>, vector<1x128xf32>
    %190 = vector.broadcast %189 : vector<1x128xf32> to vector<8x128xf32>
    %191 = arith.addf %188, %190 : vector<8x128xf32>
    %192 = vector.extract_strided_slice %191 {offsets = [0, 0], sizes = [8, 64], strides = [1, 1]} : vector<8x128xf32> to vector<8x64xf32>
    %193 = vector.extract_strided_slice %191 {offsets = [0, 64], sizes = [8, 64], strides = [1, 1]} : vector<8x128xf32> to vector<8x64xf32>
    %194 = arith.negf %193 : vector<8x64xf32>
    %195 = math.exp %194 : vector<8x64xf32>
    %cst_175 = arith.constant 1.000000e+00 : f32
    %196 = vector.broadcast %cst_175 : f32 to vector<8x64xf32>
    %197 = arith.addf %196, %195 : vector<8x64xf32>
    %198 = arith.divf %196, %197 : vector<8x64xf32>
    %199 = arith.mulf %192, %198 : vector<8x64xf32>
    %200 = arith.addf %174, %199 : vector<8x64xf32>
    %c1_176 = arith.constant 1 : index
    %c0_177 = arith.constant 0 : index
    %c0_178 = arith.constant 0 : index
    %201 = vector.load %arg12[%c1_176, %c0_177, %c0_178] : memref<5x8x448xbf16, #tpu.memory_space<vmem>>, vector<1x8x448xbf16>
    %202 = vector.shape_cast %201 : vector<1x8x448xbf16> to vector<8x448xbf16>
    %c0_179 = arith.constant 0 : index
    %c0_180 = arith.constant 0 : index
    %203 = vector.load %arg4[%c0_179, %c0_180] : memref<960x128xbf16, #tpu.memory_space<vmem>>, vector<448x128xbf16>
    %cst_181 = arith.constant dense<0.000000e+00> : vector<8x128xf32>
    %204 = tpu.matmul %202, %203, %cst_181 {dimension_numbers = #tpu.dot_dimension_numbers<[1], [0], [0], [1], [0, 0, 1, 1], [], []>} : vector<8x448xbf16>, vector<448x128xbf16>, vector<8x128xf32> -> vector<8x128xf32>
    %c2_182 = arith.constant 2 : index
    %c0_183 = arith.constant 0 : index
    %c0_184 = arith.constant 0 : index
    %205 = vector.load %arg12[%c2_182, %c0_183, %c0_184] : memref<5x8x448xbf16, #tpu.memory_space<vmem>>, vector<1x8x448xbf16>
    %206 = vector.shape_cast %205 : vector<1x8x448xbf16> to vector<8x448xbf16>
    %c448_185 = arith.constant 448 : index
    %c0_186 = arith.constant 0 : index
    %207 = vector.load %arg4[%c448_185, %c0_186] : memref<960x128xbf16, #tpu.memory_space<vmem>>, vector<448x128xbf16>
    %cst_187 = arith.constant dense<0.000000e+00> : vector<8x128xf32>
    %208 = tpu.matmul %206, %207, %cst_187 {dimension_numbers = #tpu.dot_dimension_numbers<[1], [0], [0], [1], [0, 0, 1, 1], [], []>} : vector<8x448xbf16>, vector<448x128xbf16>, vector<8x128xf32> -> vector<8x128xf32>
    %209 = arith.addf %204, %208 : vector<8x128xf32>
    %c3_188 = arith.constant 3 : index
    %c0_189 = arith.constant 0 : index
    %c0_190 = arith.constant 0 : index
    %210 = vector.load %arg12[%c3_188, %c0_189, %c0_190] : memref<5x8x448xbf16, #tpu.memory_space<vmem>>, vector<1x8x64xbf16>
    %211 = vector.shape_cast %210 : vector<1x8x64xbf16> to vector<8x64xbf16>
    %c896_191 = arith.constant 896 : index
    %c0_192 = arith.constant 0 : index
    %212 = vector.load %arg4[%c896_191, %c0_192] : memref<960x128xbf16, #tpu.memory_space<vmem>>, vector<64x128xbf16>
    %cst_193 = arith.constant dense<0.000000e+00> : vector<8x128xf32>
    %213 = tpu.matmul %211, %212, %cst_193 {dimension_numbers = #tpu.dot_dimension_numbers<[1], [0], [0], [1], [0, 0, 1, 1], [], []>} : vector<8x64xbf16>, vector<64x128xbf16>, vector<8x128xf32> -> vector<8x128xf32>
    %214 = arith.addf %209, %213 : vector<8x128xf32>
    %c0_194 = arith.constant 0 : index
    %c0_195 = arith.constant 0 : index
    %215 = vector.load %arg5[%c0_194, %c0_195] : memref<1x128xf32, #tpu.memory_space<vmem>>, vector<1x128xf32>
    %216 = vector.broadcast %215 : vector<1x128xf32> to vector<8x128xf32>
    %217 = arith.addf %214, %216 : vector<8x128xf32>
    %218 = vector.extract_strided_slice %217 {offsets = [0, 0], sizes = [8, 64], strides = [1, 1]} : vector<8x128xf32> to vector<8x64xf32>
    %219 = vector.extract_strided_slice %217 {offsets = [0, 64], sizes = [8, 64], strides = [1, 1]} : vector<8x128xf32> to vector<8x64xf32>
    %220 = arith.negf %219 : vector<8x64xf32>
    %221 = math.exp %220 : vector<8x64xf32>
    %cst_196 = arith.constant 1.000000e+00 : f32
    %222 = vector.broadcast %cst_196 : f32 to vector<8x64xf32>
    %223 = arith.addf %222, %221 : vector<8x64xf32>
    %224 = arith.divf %222, %223 : vector<8x64xf32>
    %225 = arith.mulf %218, %224 : vector<8x64xf32>
    %226 = arith.addf %200, %225 : vector<8x64xf32>
    %c2_197 = arith.constant 2 : index
    %c0_198 = arith.constant 0 : index
    %c0_199 = arith.constant 0 : index
    %227 = vector.load %arg12[%c2_197, %c0_198, %c0_199] : memref<5x8x448xbf16, #tpu.memory_space<vmem>>, vector<1x8x448xbf16>
    %228 = vector.shape_cast %227 : vector<1x8x448xbf16> to vector<8x448xbf16>
    %c0_200 = arith.constant 0 : index
    %c0_201 = arith.constant 0 : index
    %229 = vector.load %arg4[%c0_200, %c0_201] : memref<960x128xbf16, #tpu.memory_space<vmem>>, vector<448x128xbf16>
    %cst_202 = arith.constant dense<0.000000e+00> : vector<8x128xf32>
    %230 = tpu.matmul %228, %229, %cst_202 {dimension_numbers = #tpu.dot_dimension_numbers<[1], [0], [0], [1], [0, 0, 1, 1], [], []>} : vector<8x448xbf16>, vector<448x128xbf16>, vector<8x128xf32> -> vector<8x128xf32>
    %c3_203 = arith.constant 3 : index
    %c0_204 = arith.constant 0 : index
    %c0_205 = arith.constant 0 : index
    %231 = vector.load %arg12[%c3_203, %c0_204, %c0_205] : memref<5x8x448xbf16, #tpu.memory_space<vmem>>, vector<1x8x448xbf16>
    %232 = vector.shape_cast %231 : vector<1x8x448xbf16> to vector<8x448xbf16>
    %c448_206 = arith.constant 448 : index
    %c0_207 = arith.constant 0 : index
    %233 = vector.load %arg4[%c448_206, %c0_207] : memref<960x128xbf16, #tpu.memory_space<vmem>>, vector<448x128xbf16>
    %cst_208 = arith.constant dense<0.000000e+00> : vector<8x128xf32>
    %234 = tpu.matmul %232, %233, %cst_208 {dimension_numbers = #tpu.dot_dimension_numbers<[1], [0], [0], [1], [0, 0, 1, 1], [], []>} : vector<8x448xbf16>, vector<448x128xbf16>, vector<8x128xf32> -> vector<8x128xf32>
    %235 = arith.addf %230, %234 : vector<8x128xf32>
    %c4_209 = arith.constant 4 : index
    %c0_210 = arith.constant 0 : index
    %c0_211 = arith.constant 0 : index
    %236 = vector.load %arg12[%c4_209, %c0_210, %c0_211] : memref<5x8x448xbf16, #tpu.memory_space<vmem>>, vector<1x8x64xbf16>
    %237 = vector.shape_cast %236 : vector<1x8x64xbf16> to vector<8x64xbf16>
    %c896_212 = arith.constant 896 : index
    %c0_213 = arith.constant 0 : index
    %238 = vector.load %arg4[%c896_212, %c0_213] : memref<960x128xbf16, #tpu.memory_space<vmem>>, vector<64x128xbf16>
    %cst_214 = arith.constant dense<0.000000e+00> : vector<8x128xf32>
    %239 = tpu.matmul %237, %238, %cst_214 {dimension_numbers = #tpu.dot_dimension_numbers<[1], [0], [0], [1], [0, 0, 1, 1], [], []>} : vector<8x64xbf16>, vector<64x128xbf16>, vector<8x128xf32> -> vector<8x128xf32>
    %240 = arith.addf %235, %239 : vector<8x128xf32>
    %c0_215 = arith.constant 0 : index
    %c0_216 = arith.constant 0 : index
    %241 = vector.load %arg5[%c0_215, %c0_216] : memref<1x128xf32, #tpu.memory_space<vmem>>, vector<1x128xf32>
    %242 = vector.broadcast %241 : vector<1x128xf32> to vector<8x128xf32>
    %243 = arith.addf %240, %242 : vector<8x128xf32>
    %244 = vector.extract_strided_slice %243 {offsets = [0, 0], sizes = [8, 64], strides = [1, 1]} : vector<8x128xf32> to vector<8x64xf32>
    %245 = vector.extract_strided_slice %243 {offsets = [0, 64], sizes = [8, 64], strides = [1, 1]} : vector<8x128xf32> to vector<8x64xf32>
    %246 = arith.negf %245 : vector<8x64xf32>
    %247 = math.exp %246 : vector<8x64xf32>
    %cst_217 = arith.constant 1.000000e+00 : f32
    %248 = vector.broadcast %cst_217 : f32 to vector<8x64xf32>
    %249 = arith.addf %248, %247 : vector<8x64xf32>
    %250 = arith.divf %248, %249 : vector<8x64xf32>
    %251 = arith.mulf %244, %250 : vector<8x64xf32>
    %252 = arith.addf %226, %251 : vector<8x64xf32>
    %cst_218 = arith.constant 0.333333343 : f32
    %253 = vector.broadcast %cst_218 : f32 to vector<8x64xf32>
    %254 = arith.mulf %252, %253 : vector<8x64xf32>
    %c0_219 = arith.constant 0 : index
    %c0_220 = arith.constant 0 : index
    %255 = vector.load %arg6[%c0_219, %c0_220] : memref<64x128xf32, #tpu.memory_space<vmem>>, vector<64x128xf32>
    %cst_221 = arith.constant dense<0.000000e+00> : vector<8x128xf32>
    %256 = tpu.matmul %254, %255, %cst_221 {dimension_numbers = #tpu.dot_dimension_numbers<[1], [0], [0], [1], [0, 0, 1, 1], [], []>} : vector<8x64xf32>, vector<64x128xf32>, vector<8x128xf32> -> vector<8x128xf32>
    %c0_222 = arith.constant 0 : index
    %c0_223 = arith.constant 0 : index
    %257 = vector.load %arg7[%c0_222, %c0_223] : memref<1x128xf32, #tpu.memory_space<vmem>>, vector<1x128xf32>
    %258 = vector.broadcast %257 : vector<1x128xf32> to vector<8x128xf32>
    %259 = arith.addf %256, %258 : vector<8x128xf32>
    %c0_224 = arith.constant 0 : index
    %c0_225 = arith.constant 0 : index
    %260 = vector.load %arg8[%c0_224, %c0_225] : memref<128x128xf32, #tpu.memory_space<vmem>>, vector<128x128xf32>
    %cst_226 = arith.constant dense<0.000000e+00> : vector<8x128xf32>
    %261 = tpu.matmul %259, %260, %cst_226 {dimension_numbers = #tpu.dot_dimension_numbers<[1], [0], [0], [1], [0, 0, 1, 1], [], []>} : vector<8x128xf32>, vector<128x128xf32>, vector<8x128xf32> -> vector<8x128xf32>
    %c0_227 = arith.constant 0 : index
    %c0_228 = arith.constant 0 : index
    %262 = vector.load %arg9[%c0_227, %c0_228] : memref<1x128xf32, #tpu.memory_space<vmem>>, vector<1x128xf32>
    %263 = vector.broadcast %262 : vector<1x128xf32> to vector<8x128xf32>
    %264 = arith.addf %261, %263 : vector<8x128xf32>
    %c0_229 = arith.constant 0 : index
    %c0_230 = arith.constant 0 : index
    %265 = vector.load %arg10[%c0_229, %c0_230] : memref<8x128xf32, #tpu.memory_space<vmem>>, vector<8x128xf32>
    tpu.vector_store %arg10[%c0_229, %c0_230], %264 {strides = array<i32>} : memref<8x128xf32, #tpu.memory_space<vmem>>, vector<8x128xf32>,
    return
  }
  func.func @transform_0(%arg0: i32) -> (i32, i32, i32) {
    %c0_i32 = arith.constant 0 : i32
    %c0_i32_0 = arith.constant 0 : i32
    %c0_i32_1 = arith.constant 0 : i32
    return %arg0, %c0_i32, %c0_i32_0 : i32, i32, i32
  }
  func.func @transform_1(%arg0: i32) -> (i32, i32) {
    %c0_i32 = arith.constant 0 : i32
    %c0_i32_0 = arith.constant 0 : i32
    %c0_i32_1 = arith.constant 0 : i32
    return %c0_i32, %c0_i32_0 : i32, i32
  }
  func.func @transform_2(%arg0: i32) -> (i32, i32) {
    %c0_i32 = arith.constant 0 : i32
    %c0_i32_0 = arith.constant 0 : i32
    %c0_i32_1 = arith.constant 0 : i32
    return %c0_i32, %c0_i32_0 : i32, i32
  }
  func.func @transform_3(%arg0: i32) -> (i32, i32) {
    %c0_i32 = arith.constant 0 : i32
    %c0_i32_0 = arith.constant 0 : i32
    %c0_i32_1 = arith.constant 0 : i32
    return %c0_i32, %c0_i32_0 : i32, i32
  }
  func.func @transform_4(%arg0: i32) -> (i32, i32) {
    %c0_i32 = arith.constant 0 : i32
    %c0_i32_0 = arith.constant 0 : i32
    %c0_i32_1 = arith.constant 0 : i32
    return %c0_i32, %c0_i32_0 : i32, i32
  }
  func.func @transform_5(%arg0: i32) -> (i32, i32) {
    %c0_i32 = arith.constant 0 : i32
    %c0_i32_0 = arith.constant 0 : i32
    %c0_i32_1 = arith.constant 0 : i32
    return %c0_i32, %c0_i32_0 : i32, i32
  }
  func.func @transform_6(%arg0: i32) -> (i32, i32) {
    %c0_i32 = arith.constant 0 : i32
    %c0_i32_0 = arith.constant 0 : i32
    %c0_i32_1 = arith.constant 0 : i32
    return %c0_i32, %c0_i32_0 : i32, i32
  }
  func.func @transform_7(%arg0: i32) -> (i32, i32) {
    %c0_i32 = arith.constant 0 : i32
    %c0_i32_0 = arith.constant 0 : i32
    %c0_i32_1 = arith.constant 0 : i32
    return %c0_i32, %c0_i32_0 : i32, i32
  }
  func.func @transform_8(%arg0: i32) -> (i32, i32) {
    %c0_i32 = arith.constant 0 : i32
    %c0_i32_0 = arith.constant 0 : i32
    %c0_i32_1 = arith.constant 0 : i32
    return %c0_i32, %c0_i32_0 : i32, i32
  }
  func.func @transform_9(%arg0: i32) -> (i32, i32) {
    %c0_i32 = arith.constant 0 : i32
    %c0_i32_0 = arith.constant 0 : i32
    return %arg0, %c0_i32 : i32, i32
  }
}

</mosaic_0001>

<llo_original>
// kernel: gcnn_forward.1
$region0: #{gcnn_forward.1}
  #allocation0 [shape = 'u32[]', space=smem, size = 0x4, offset = 0x4, fixed_abs, tag = 'smem constant byte address 0x4 - core index']
  #allocation1 [shape = 'u32[144,128]{1,0:T(1,128)}', space=vmem, size = 0x12000, scoped, tag = 'internal scratch']
  #allocation2 [shape = 'bf16[8,32,64]{2,1,0:T(8,128)(2,1)}', space=vmem, size = 0x10000, scoped, tag = 'scratch operand']
  #allocation3 [shape = 'bf16[5,8,448]{2,1,0:T(8,128)(2,1)}', space=vmem, size = 0xa000, scoped, tag = 'scratch operand']
  %s0 = inlined_call_operand.vmem [shape: bf16[16,34,448], index: 0, kind: input, shape index: {}]
  %s1 = inlined_call_operand.vmem [shape: bf16[960,128], index: 1, kind: input, shape index: {}]
  %s2 = inlined_call_operand.vmem [shape: f32[1,128], index: 2, kind: input, shape index: {}]
  %s3 = inlined_call_operand.vmem [shape: bf16[960,128], index: 3, kind: input, shape index: {}]
  %s4 = inlined_call_operand.vmem [shape: f32[1,128], index: 4, kind: input, shape index: {}]
  %s5 = inlined_call_operand.vmem [shape: f32[64,128], index: 5, kind: input, shape index: {}]
  %s6 = inlined_call_operand.vmem [shape: f32[1,128], index: 6, kind: input, shape index: {}]
  %s7 = inlined_call_operand.vmem [shape: f32[128,128], index: 7, kind: input, shape index: {}]
  %s8 = inlined_call_operand.vmem [shape: f32[1,128], index: 8, kind: input, shape index: {}]
  %s9 = inlined_call_operand.vmem [shape: f32[16,128], index: 9, kind: output, shape index: {}]
  %s10 = sld [smem:[#allocation0]]
  $region69: #{gcnn_forward.1} parent=0
    _
  %s12 = ssub.s32 1, %s10
  %s13 = scalar_select 0, %s12, %s10
  loop: start=0, step=1, limit=4
  $region2: #{gcnn_forward.1} parent=0 // loop_pre_header
    _
  $region3: #{gcnn_forward.1} parent=0 // loop_header
    %s15 = sphi 0, %s19
    %p16 = scmp.ge.s32.totalorder %s15, 4
    %s25 = sphi 0, %s27
    %s28 = sphi 0, %s25
    %s29 = sphi 0, %s28
    %s45 = sphi 0, %s29
    %s49 = sphi 0, %s49
    %s51 = sphi 0, %s49
    %s52 = sphi 0, %s51
    %s66 = sphi 0, %s52
    %s70 = sphi 0, %s70
    %s72 = sphi 0, %s70
    %s73 = sphi 0, %s72
    %s87 = sphi 0, %s73
    %s91 = sphi 0, %s91
    %s93 = sphi 0, %s91
    %s94 = sphi 0, %s93
    %s108 = sphi 0, %s94
    %s112 = sphi 0, %s112
    %s114 = sphi 0, %s112
    %s115 = sphi 0, %s114
    %s129 = sphi 0, %s115
    %s133 = sphi 0, %s133
    %s135 = sphi 0, %s133
    %s136 = sphi 0, %s135
    %s150 = sphi 0, %s136
    %s154 = sphi 0, %s154
    %s156 = sphi 0, %s154
    %s157 = sphi 0, %s156
    %s171 = sphi 0, %s157
    %s175 = sphi 0, %s175
    %s177 = sphi 0, %s175
    %s178 = sphi 0, %s177
    %s192 = sphi 0, %s178
    %s196 = sphi 0, %s196
    %s198 = sphi 0, %s196
    %s199 = sphi 0, %s198
    %s213 = sphi 0, %s199
    %s219 = sphi 0, %s221
    %s222 = sphi 0, %s219
    %s223 = sphi 0, %s222
    %s239 = sphi 0, %s223
  $region4: #{gcnn_forward.1} parent=0 // loop_header_branch
    %18 = sbr.rel (%p16) target = $region8
  $region5: #{gcnn_forward.1} parent=0 // loop_body
    %s20 = ssub.s32 %s15, 1
    %s21 = ssub.s32 %s15, 2
    %s22 = sadd.s32 %s15, 1
    %s23 = ssub.s32 %s15, %s22
    %p24 = scmp.eq.s32.totalorder %s23, 0
    %s26 = sadd.s32 %s25, 1
    %s27 = scalar_select %p24, %s25, %s26
    %p30 = pneg %p24
    %p31 = scmp.eq.s32.totalorder %s15, 1
    %p32 = por %p30, %p31
    %p33 = scmp.ne.s32.totalorder %s25, %s28
    %p34 = scmp.eq.s32.totalorder %s15, 0
    %p35 = por %p33, %p34
    %p36 = scmp.ne.s32.totalorder %s25, %s28
    %p37 = scmp.eq.s32.totalorder %s20, 1
    %p38 = por %p36, %p37
    %p39 = scmp.ne.s32.totalorder %s28, %s29
    %p40 = scmp.eq.s32.totalorder %s20, 0
    %p41 = por %p39, %p40
    %p42 = scmp.ne.s32.totalorder %s28, %s29
    %p43 = scmp.eq.s32.totalorder %s21, 1
    %p44 = por %p42, %p43
    %p46 = scmp.ne.s32.totalorder %s29, %s45
    %p47 = scmp.eq.s32.totalorder %s21, 0
    %p48 = por %p46, %p47
    %s50 = sadd.s32 %s49, 1
    %p53 = scmp.eq.s32.totalorder %s15, 1
    %p54 = scmp.ne.s32.totalorder %s49, %s51
    %p55 = scmp.eq.s32.totalorder %s15, 0
    %p56 = por %p54, %p55
    %p57 = scmp.ne.s32.totalorder %s49, %s51
    %p58 = scmp.eq.s32.totalorder %s20, 1
    %p59 = por %p57, %p58
    %p60 = scmp.ne.s32.totalorder %s51, %s52
    %p61 = scmp.eq.s32.totalorder %s20, 0
    %p62 = por %p60, %p61
    %p63 = scmp.ne.s32.totalorder %s51, %s52
    %p64 = scmp.eq.s32.totalorder %s21, 1
    %p65 = por %p63, %p64
    %p67 = scmp.ne.s32.totalorder %s52, %s66
    %p68 = scmp.eq.s32.totalorder %s21, 0
    %p69 = por %p67, %p68
    %s71 = sadd.s32 %s70, 1
    %p74 = scmp.eq.s32.totalorder %s15, 1
    %p75 = scmp.ne.s32.totalorder %s70, %s72
    %p76 = scmp.eq.s32.totalorder %s15, 0
    %p77 = por %p75, %p76
    %p78 = scmp.ne.s32.totalorder %s70, %s72
    %p79 = scmp.eq.s32.totalorder %s20, 1
    %p80 = por %p78, %p79
    %p81 = scmp.ne.s32.totalorder %s72, %s73
    %p82 = scmp.eq.s32.totalorder %s20, 0
    %p83 = por %p81, %p82
    %p84 = scmp.ne.s32.totalorder %s72, %s73
    %p85 = scmp.eq.s32.totalorder %s21, 1
    %p86 = por %p84, %p85
    %p88 = scmp.ne.s32.totalorder %s73, %s87
    %p89 = scmp.eq.s32.totalorder %s21, 0
    %p90 = por %p88, %p89
    %s92 = sadd.s32 %s91, 1
    %p95 = scmp.eq.s32.totalorder %s15, 1
    %p96 = scmp.ne.s32.totalorder %s91, %s93
    %p97 = scmp.eq.s32.totalorder %s15, 0
    %p98 = por %p96, %p97
    %p99 = scmp.ne.s32.totalorder %s91, %s93
    %p100 = scmp.eq.s32.totalorder %s20, 1
    %p101 = por %p99, %p100
    %p102 = scmp.ne.s32.totalorder %s93, %s94
    %p103 = scmp.eq.s32.totalorder %s20, 0
    %p104 = por %p102, %p103
    %p105 = scmp.ne.s32.totalorder %s93, %s94
    %p106 = scmp.eq.s32.totalorder %s21, 1
    %p107 = por %p105, %p106
    %p109 = scmp.ne.s32.totalorder %s94, %s108
    %p110 = scmp.eq.s32.totalorder %s21, 0
    %p111 = por %p109, %p110
    %s113 = sadd.s32 %s112, 1
    %p116 = scmp.eq.s32.totalorder %s15, 1
    %p117 = scmp.ne.s32.totalorder %s112, %s114
    %p118 = scmp.eq.s32.totalorder %s15, 0
    %p119 = por %p117, %p118
    %p120 = scmp.ne.s32.totalorder %s112, %s114
    %p121 = scmp.eq.s32.totalorder %s20, 1
    %p122 = por %p120, %p121
    %p123 = scmp.ne.s32.totalorder %s114, %s115
    %p124 = scmp.eq.s32.totalorder %s20, 0
    %p125 = por %p123, %p124
    %p126 = scmp.ne.s32.totalorder %s114, %s115
    %p127 = scmp.eq.s32.totalorder %s21, 1
    %p128 = por %p126, %p127
    %p130 = scmp.ne.s32.totalorder %s115, %s129
    %p131 = scmp.eq.s32.totalorder %s21, 0
    %p132 = por %p130, %p131
    %s134 = sadd.s32 %s133, 1
    %p137 = scmp.eq.s32.totalorder %s15, 1
    %p138 = scmp.ne.s32.totalorder %s133, %s135
    %p139 = scmp.eq.s32.totalorder %s15, 0
    %p140 = por %p138, %p139
    %p141 = scmp.ne.s32.totalorder %s133, %s135
    %p142 = scmp.eq.s32.totalorder %s20, 1
    %p143 = por %p141, %p142
    %p144 = scmp.ne.s32.totalorder %s135, %s136
    %p145 = scmp.eq.s32.totalorder %s20, 0
    %p146 = por %p144, %p145
    %p147 = scmp.ne.s32.totalorder %s135, %s136
    %p148 = scmp.eq.s32.totalorder %s21, 1
    %p149 = por %p147, %p148
    %p151 = scmp.ne.s32.totalorder %s136, %s150
    %p152 = scmp.eq.s32.totalorder %s21, 0
    %p153 = por %p151, %p152
    %s155 = sadd.s32 %s154, 1
    %p158 = scmp.eq.s32.totalorder %s15, 1
    %p159 = scmp.ne.s32.totalorder %s154, %s156
    %p160 = scmp.eq.s32.totalorder %s15, 0
    %p161 = por %p159, %p160
    %p162 = scmp.ne.s32.totalorder %s154, %s156
    %p163 = scmp.eq.s32.totalorder %s20, 1
    %p164 = por %p162, %p163
    %p165 = scmp.ne.s32.totalorder %s156, %s157
    %p166 = scmp.eq.s32.totalorder %s20, 0
    %p167 = por %p165, %p166
    %p168 = scmp.ne.s32.totalorder %s156, %s157
    %p169 = scmp.eq.s32.totalorder %s21, 1
    %p170 = por %p168, %p169
    %p172 = scmp.ne.s32.totalorder %s157, %s171
    %p173 = scmp.eq.s32.totalorder %s21, 0
    %p174 = por %p172, %p173
    %s176 = sadd.s32 %s175, 1
    %p179 = scmp.eq.s32.totalorder %s15, 1
    %p180 = scmp.ne.s32.totalorder %s175, %s177
    %p181 = scmp.eq.s32.totalorder %s15, 0
    %p182 = por %p180, %p181
    %p183 = scmp.ne.s32.totalorder %s175, %s177
    %p184 = scmp.eq.s32.totalorder %s20, 1
    %p185 = por %p183, %p184
    %p186 = scmp.ne.s32.totalorder %s177, %s178
    %p187 = scmp.eq.s32.totalorder %s20, 0
    %p188 = por %p186, %p187
    %p189 = scmp.ne.s32.totalorder %s177, %s178
    %p190 = scmp.eq.s32.totalorder %s21, 1
    %p191 = por %p189, %p190
    %p193 = scmp.ne.s32.totalorder %s178, %s192
    %p194 = scmp.eq.s32.totalorder %s21, 0
    %p195 = por %p193, %p194
    %s197 = sadd.s32 %s196, 1
    %p200 = scmp.eq.s32.totalorder %s15, 1
    %p201 = scmp.ne.s32.totalorder %s196, %s198
    %p202 = scmp.eq.s32.totalorder %s15, 0
    %p203 = por %p201, %p202
    %p204 = scmp.ne.s32.totalorder %s196, %s198
    %p205 = scmp.eq.s32.totalorder %s20, 1
    %p206 = por %p204, %p205
    %p207 = scmp.ne.s32.totalorder %s198, %s199
    %p208 = scmp.eq.s32.totalorder %s20, 0
    %p209 = por %p207, %p208
    %p210 = scmp.ne.s32.totalorder %s198, %s199
    %p211 = scmp.eq.s32.totalorder %s21, 1
    %p212 = por %p210, %p211
    %p214 = scmp.ne.s32.totalorder %s199, %s213
    %p215 = scmp.eq.s32.totalorder %s21, 0
    %p216 = por %p214, %p215
    %s217 = ssub.s32 %s15, %s22
    %p218 = scmp.eq.s32.totalorder %s217, 0
    %s220 = sadd.s32 %s219, 1
    %s221 = scalar_select %p218, %s219, %s220
    %p224 = pneg %p218
    %p225 = scmp.eq.s32.totalorder %s15, 1
    %p226 = por %p224, %p225
    %p227 = scmp.ne.s32.totalorder %s219, %s222
    %p228 = scmp.eq.s32.totalorder %s15, 0
    %p229 = por %p227, %p228
    %p230 = scmp.ne.s32.totalorder %s219, %s222
    %p231 = scmp.eq.s32.totalorder %s20, 1
    %p232 = por %p230, %p231
    %p233 = scmp.ne.s32.totalorder %s222, %s223
    %p234 = scmp.eq.s32.totalorder %s20, 0
    %p235 = por %p233, %p234
    %p236 = scmp.ne.s32.totalorder %s222, %s223
    %p237 = scmp.eq.s32.totalorder %s21, 1
    %p238 = por %p236, %p237
    %p240 = scmp.ne.s32.totalorder %s223, %s239
    %p241 = scmp.eq.s32.totalorder %s21, 0
    %p242 = por %p240, %p241
    %p243 = scmp.le.s32.totalorder 1, %s15
    %p244 = scmp.lt.s32.totalorder %s15, 3
    %p245 = pnand %p243, %p244
    %p246 = pneg %p245
    // Predicated region
    $region9: #{gcnn_forward.1} parent=5 // pred_check
      _
    $region10: #{gcnn_forward.1} parent=5 // pred_check_branch
      %248 = sbr.rel (%p245) target = $region12
    $region11: #{gcnn_forward.1} parent=5 // pred_region
      %s249 = ssub.s32 %s15, 1
      // Predicated region
      $region13: #{gcnn_forward.1} parent=11 // pred_check
        %p250 = pneg %p62
      $region14: #{gcnn_forward.1} parent=11 // pred_check_branch
        %252 = sbr.rel (%p250) target = $region16
      $region15: #{gcnn_forward.1} parent=11 // pred_region
        _
      $region16: #{gcnn_forward.1} parent=11 // pred_fallthru
        _
      // Predicated region
      $region17: #{gcnn_forward.1} parent=11 // pred_check
        %p253 = pneg %p83
      $region18: #{gcnn_forward.1} parent=11 // pred_check_branch
        %255 = sbr.rel (%p253) target = $region20
      $region19: #{gcnn_forward.1} parent=11 // pred_region
        _
      $region20: #{gcnn_forward.1} parent=11 // pred_fallthru
        _
      // Predicated region
      $region21: #{gcnn_forward.1} parent=11 // pred_check
        %p256 = pneg %p104
      $region22: #{gcnn_forward.1} parent=11 // pred_check_branch
        %258 = sbr.rel (%p256) target = $region24
      $region23: #{gcnn_forward.1} parent=11 // pred_region
        _
      $region24: #{gcnn_forward.1} parent=11 // pred_fallthru
        _
      // Predicated region
      $region25: #{gcnn_forward.1} parent=11 // pred_check
        %p259 = pneg %p125
      $region26: #{gcnn_forward.1} parent=11 // pred_check_branch
        %261 = sbr.rel (%p259) target = $region28
      $region27: #{gcnn_forward.1} parent=11 // pred_region
        _
      $region28: #{gcnn_forward.1} parent=11 // pred_fallthru
        _
      // Predicated region
      $region29: #{gcnn_forward.1} parent=11 // pred_check
        %p262 = pneg %p146
      $region30: #{gcnn_forward.1} parent=11 // pred_check_branch
        %264 = sbr.rel (%p262) target = $region32
      $region31: #{gcnn_forward.1} parent=11 // pred_region
        _
      $region32: #{gcnn_forward.1} parent=11 // pred_fallthru
        _
      // Predicated region
      $region33: #{gcnn_forward.1} parent=11 // pred_check
        %p265 = pneg %p167
      $region34: #{gcnn_forward.1} parent=11 // pred_check_branch
        %267 = sbr.rel (%p265) target = $region36
      $region35: #{gcnn_forward.1} parent=11 // pred_region
        _
      $region36: #{gcnn_forward.1} parent=11 // pred_fallthru
        _
      // Predicated region
      $region37: #{gcnn_forward.1} parent=11 // pred_check
        %p268 = pneg %p188
      $region38: #{gcnn_forward.1} parent=11 // pred_check_branch
        %270 = sbr.rel (%p268) target = $region40
      $region39: #{gcnn_forward.1} parent=11 // pred_region
        _
      $region40: #{gcnn_forward.1} parent=11 // pred_fallthru
        _
      // Predicated region
      $region41: #{gcnn_forward.1} parent=11 // pred_check
        %p271 = pneg %p209
      $region42: #{gcnn_forward.1} parent=11 // pred_check_branch
        %273 = sbr.rel (%p271) target = $region44
      $region43: #{gcnn_forward.1} parent=11 // pred_region
        _
      $region44: #{gcnn_forward.1} parent=11 // pred_fallthru
        _
    $region12: #{gcnn_forward.1} parent=5 // pred_fallthru
      _
    %p274 = scmp.lt.s32.totalorder %s15, 2
    // Predicated region
    $region45: #{gcnn_forward.1} parent=5 // pred_check
      %p275 = pneg %p274
    $region46: #{gcnn_forward.1} parent=5 // pred_check_branch
      %277 = sbr.rel (%p275) target = $region48
    $region47: #{gcnn_forward.1} parent=5 // pred_region
      // Predicated region
      $region49: #{gcnn_forward.1} parent=47 // pred_check
        %p278 = pneg %p35
      $region50: #{gcnn_forward.1} parent=47 // pred_check_branch
        %280 = sbr.rel (%p278) target = $region52
      $region51: #{gcnn_forward.1} parent=47 // pred_region
        %s281 = smul.u32 8, %s15
        %p282 = scmp.lt.s32.totalorder %s281, 15
        %s283 = scalar_select %p282, %s281, 15
        %s284 = smul.addr %s283, 20
        %s285 = smul.addr %s284, 4
        %s286 = scalar_lea.vmem %s0, %s285
        %s287 = smul.u32 8, %s15
      $region52: #{gcnn_forward.1} parent=47 // pred_fallthru
        _
    $region48: #{gcnn_forward.1} parent=5 // pred_fallthru
      _
    %p288 = scmp.le.s32.totalorder 1, %s15
    %p289 = scmp.lt.s32.totalorder %s15, 3
    %p290 = pnand %p288, %p289
    %p291 = pneg %p290
    // Predicated region
    $region53: #{gcnn_forward.1} parent=5 // pred_check
      _
    $region54: #{gcnn_forward.1} parent=5 // pred_check_branch
      %293 = sbr.rel (%p290) target = $region56
    $region55: #{gcnn_forward.1} parent=5 // pred_region
      %s294 = ssub.s32 %s15, 1
      %s295 = smul.u32 8, %s20
      %p296 = scmp.lt.s32.totalorder %s295, 15
      %s297 = scalar_select %p296, %s295, 15
      %s298 = smul.addr %s297, 20
      %s299 = smul.addr %s298, 4
      %s300 = scalar_lea.vmem %s0, %s299
      %p301 = pneg %p41
      %p302 = pneg %p38
      %p303 = pneg %p62
      %p304 = pneg %p59
      %p305 = pneg %p83
      %p306 = pneg %p80
      %p307 = pneg %p104
      %p308 = pneg %p101
      %p309 = pneg %p125
      %p310 = pneg %p122
      %p311 = pneg %p146
      %p312 = pneg %p143
      %p313 = pneg %p167
      %p314 = pneg %p164
      %p315 = pneg %p188
      %p316 = pneg %p185
      %p317 = pneg %p209
      %p318 = pneg %p206
      %p319 = pneg %p235
      %p320 = pneg %p232
      %p321 = scmp.lt.s32.totalorder %s20, 1
      %s322 = scalar_select %p321, %s20, 1
      %s323 = smul.addr %s322, 8
      %s324 = scalar_lea.vmem %s9, %s323
      %s325 = smul.u32 8, %s20
      %p326 = scmp.lt.s32.totalorder %s325, 15
      %s327 = scalar_select %p326, %s325, 15
      %s328 = smul.addr %s327, 20
      %s329 = smul.addr %s328, 4
      %s330 = scalar_lea.vmem %s0, %s329
      %s331 = smul.u32 8, %s20
      %p332 = scmp.lt.s32.totalorder %s20, 1
      %s333 = scalar_select %p332, %s20, 1
      %s334 = smul.addr %s333, 8
      %s335 = scalar_lea.vmem %s9, %s334
      %v337 = vld [vmem:[%s330] sm:$0xff]
      %v338 = vld [vmem:[%s330 + $0x8] sm:$0xff]
      %v339 = vld [vmem:[%s330 + $0x10] sm:$0xff]
      %v340 = vld [vmem:[%s330 + $0x18] sm:$0xff]
      %v341 = vld [vmem:[%s330 + $0x20] sm:$0xff]
      %v342 = vld [vmem:[%s330 + $0x28] sm:$0xff]
      %v343 = vld [vmem:[%s330 + $0x30] sm:$0xff]
      %v344 = vld [vmem:[%s330 + $0x38] sm:$0xff]
      %v345 = vld [vmem:[%s330 + $0x40] sm:$0x11]
      %v346 = vld [vmem:[%s330 + $0x48] sm:$0x11]
      %v347 = vld [vmem:[%s330 + $0x50] sm:$0xff]
      %v348 = vld [vmem:[%s330 + $0x58] sm:$0xff]
      %v349 = vld [vmem:[%s330 + $0x60] sm:$0xff]
      %v350 = vld [vmem:[%s330 + $0x68] sm:$0xff]
      %v351 = vld [vmem:[%s330 + $0x70] sm:$0xff]
      %v352 = vld [vmem:[%s330 + $0x78] sm:$0xff]
      %v353 = vld [vmem:[%s330 + $0x80] sm:$0xff]
      %v354 = vld [vmem:[%s330 + $0x88] sm:$0xff]
      %v355 = vld [vmem:[%s330 + $0x90] sm:$0x11]
      %v356 = vld [vmem:[%s330 + $0x98] sm:$0x11]
      %v357 = vld [vmem:[%s330 + $0xa0] sm:$0xff]
      %v358 = vld [vmem:[%s330 + $0xa8] sm:$0xff]
      %v359 = vld [vmem:[%s330 + $0xb0] sm:$0xff]
      %v360 = vld [vmem:[%s330 + $0xb8] sm:$0xff]
      %v361 = vld [vmem:[%s330 + $0xc0] sm:$0xff]
      %v362 = vld [vmem:[%s330 + $0xc8] sm:$0xff]
      %v363 = vld [vmem:[%s330 + $0xd0] sm:$0xff]
      %v364 = vld [vmem:[%s330 + $0xd8] sm:$0xff]
      %v365 = vld [vmem:[%s330 + $0xe0] sm:$0x11]
      %v366 = vld [vmem:[%s330 + $0xe8] sm:$0x11]
      %v367 = vld [vmem:[%s330 + $0xf0] sm:$0xff]
      %v368 = vld [vmem:[%s330 + $0xf8] sm:$0xff]
      %v369 = vld [vmem:[%s330 + $0x100] sm:$0xff]
      %v370 = vld [vmem:[%s330 + $0x108] sm:$0xff]
      %v371 = vld [vmem:[%s330 + $0x110] sm:$0xff]
      %v372 = vld [vmem:[%s330 + $0x118] sm:$0xff]
      %v373 = vld [vmem:[%s330 + $0x120] sm:$0xff]
      %v374 = vld [vmem:[%s330 + $0x128] sm:$0xff]
      %v375 = vld [vmem:[%s330 + $0x130] sm:$0x11]
      %v376 = vld [vmem:[%s330 + $0x138] sm:$0x11]
      %v377 = vld [vmem:[%s330 + $0x140] sm:$0xff]
      %v378 = vld [vmem:[%s330 + $0x148] sm:$0xff]
      %v379 = vld [vmem:[%s330 + $0x150] sm:$0xff]
      %v380 = vld [vmem:[%s330 + $0x158] sm:$0xff]
      %v381 = vld [vmem:[%s330 + $0x160] sm:$0xff]
      %v382 = vld [vmem:[%s330 + $0x168] sm:$0xff]
      %v383 = vld [vmem:[%s330 + $0x170] sm:$0xff]
      %v384 = vld [vmem:[%s330 + $0x178] sm:$0xff]
      %v385 = vld [vmem:[%s330 + $0x180] sm:$0x11]
      %v386 = vld [vmem:[%s330 + $0x188] sm:$0x11]
      %v387 = vld [vmem:[%s330 + $0x190] sm:$0xff]
      %v388 = vld [vmem:[%s330 + $0x198] sm:$0xff]
      %v389 = vld [vmem:[%s330 + $0x1a0] sm:$0xff]
      %v390 = vld [vmem:[%s330 + $0x1a8] sm:$0xff]
      %v391 = vld [vmem:[%s330 + $0x1b0] sm:$0xff]
      %v392 = vld [vmem:[%s330 + $0x1b8] sm:$0xff]
      %v393 = vld [vmem:[%s330 + $0x1c0] sm:$0xff]
      %v394 = vld [vmem:[%s330 + $0x1c8] sm:$0xff]
      %v395 = vld [vmem:[%s330 + $0x1d0] sm:$0x11]
      %v396 = vld [vmem:[%s330 + $0x1d8] sm:$0x11]
      %v397 = vld [vmem:[%s330 + $0x1e0] sm:$0xff]
      %v398 = vld [vmem:[%s330 + $0x1e8] sm:$0xff]
      %v399 = vld [vmem:[%s330 + $0x1f0] sm:$0xff]
      %v400 = vld [vmem:[%s330 + $0x1f8] sm:$0xff]
      %v401 = vld [vmem:[%s330 + $0x200] sm:$0xff]
      %v402 = vld [vmem:[%s330 + $0x208] sm:$0xff]
      %v403 = vld [vmem:[%s330 + $0x210] sm:$0xff]
      %v404 = vld [vmem:[%s330 + $0x218] sm:$0xff]
      %v405 = vld [vmem:[%s330 + $0x220] sm:$0x11]
      %v406 = vld [vmem:[%s330 + $0x228] sm:$0x11]
      %v407 = vld [vmem:[%s330 + $0x230] sm:$0xff]
      %v408 = vld [vmem:[%s330 + $0x238] sm:$0xff]
      %v409 = vld [vmem:[%s330 + $0x240] sm:$0xff]
      %v410 = vld [vmem:[%s330 + $0x248] sm:$0xff]
      %v411 = vld [vmem:[%s330 + $0x250] sm:$0xff]
      %v412 = vld [vmem:[%s330 + $0x258] sm:$0xff]
      %v413 = vld [vmem:[%s330 + $0x260] sm:$0xff]
      %v414 = vld [vmem:[%s330 + $0x268] sm:$0xff]
      %v415 = vld [vmem:[%s330 + $0x270] sm:$0x11]
      %v416 = vld [vmem:[%s330 + $0x278] sm:$0x11]
      %vm417 = vsmask.f32 3328
      %vm418 = vsmask.f32 7440
      %vm419 = vmor %vm417, %vm418
      %v421 = vshrl.u32 %v337, 16
      %v423 = vrot.slane %v421, 4
      %v424 = vshll.u32 %v337, 16
      %v426 = vrot.slane %v424, 5
      %v427 = vor.u32 %v423, %v426
      %v428 = vrot.slane %v427, 4
      %v430 = vshll.u32 %v339, 16
      %v432 = vrot.slane %v430, 5
      %v433 = vsel %vm419, %v428, %v432
      %v435 = vshrl.u32 %v338, 16
      %v437 = vrot.slane %v435, 4
      %v438 = vshll.u32 %v338, 16
      %v440 = vrot.slane %v438, 5
      %v441 = vor.u32 %v437, %v440
      %v442 = vrot.slane %v441, 4
      %v444 = vshll.u32 %v340, 16
      %v446 = vrot.slane %v444, 5
      %v447 = vsel %vm419, %v442, %v446
      %v448 = vshrl.u32 %v339, 16
      %v450 = vrot.slane %v448, 4
      %v451 = vor.u32 %v450, %v432
      %v452 = vrot.slane %v451, 4
      %v454 = vshll.u32 %v341, 16
      %v456 = vrot.slane %v454, 5
      %v457 = vsel %vm419, %v452, %v456
      %v458 = vshrl.u32 %v340, 16
      %v460 = vrot.slane %v458, 4
      %v461 = vor.u32 %v460, %v446
      %v462 = vrot.slane %v461, 4
      %v464 = vshll.u32 %v342, 16
      %v466 = vrot.slane %v464, 5
      %v467 = vsel %vm419, %v462, %v466
      %v468 = vshrl.u32 %v341, 16
      %v470 = vrot.slane %v468, 4
      %v471 = vor.u32 %v470, %v456
      %v472 = vrot.slane %v471, 4
      %v474 = vshll.u32 %v343, 16
      %v476 = vrot.slane %v474, 5
      %v477 = vsel %vm419, %v472, %v476
      %v478 = vshrl.u32 %v342, 16
      %v480 = vrot.slane %v478, 4
      %v481 = vor.u32 %v480, %v466
      %v482 = vrot.slane %v481, 4
      %v484 = vshll.u32 %v344, 16
      %v486 = vrot.slane %v484, 5
      %v487 = vsel %vm419, %v482, %v486
      %v488 = vshrl.u32 %v343, 16
      %v490 = vrot.slane %v488, 4
      %v491 = vor.u32 %v490, %v476
      %v492 = vrot.slane %v491, 4
      %v494 = vshll.u32 %v345, 16
      %v496 = vrot.slane %v494, 5
      %v497 = vsel %vm419, %v492, %v496
      %v498 = vshrl.u32 %v344, 16
      %v500 = vrot.slane %v498, 4
      %v501 = vor.u32 %v500, %v486
      %v502 = vrot.slane %v501, 4
      %v504 = vshll.u32 %v346, 16
      %v506 = vrot.slane %v504, 5
      %v507 = vsel %vm419, %v502, %v506
      %v509 = vshrl.u32 %v347, 16
      %v511 = vrot.slane %v509, 4
      %v512 = vshll.u32 %v347, 16
      %v514 = vrot.slane %v512, 5
      %v515 = vor.u32 %v511, %v514
      %v516 = vrot.slane %v515, 4
      %v518 = vshll.u32 %v349, 16
      %v520 = vrot.slane %v518, 5
      %v521 = vsel %vm419, %v516, %v520
      %v523 = vshrl.u32 %v348, 16
      %v525 = vrot.slane %v523, 4
      %v526 = vshll.u32 %v348, 16
      %v528 = vrot.slane %v526, 5
      %v529 = vor.u32 %v525, %v528
      %v530 = vrot.slane %v529, 4
      %v532 = vshll.u32 %v350, 16
      %v534 = vrot.slane %v532, 5
      %v535 = vsel %vm419, %v530, %v534
      %v536 = vshrl.u32 %v349, 16
      %v538 = vrot.slane %v536, 4
      %v539 = vor.u32 %v538, %v520
      %v540 = vrot.slane %v539, 4
      %v542 = vshll.u32 %v351, 16
      %v544 = vrot.slane %v542, 5
      %v545 = vsel %vm419, %v540, %v544
      %v546 = vshrl.u32 %v350, 16
      %v548 = vrot.slane %v546, 4
      %v549 = vor.u32 %v548, %v534
      %v550 = vrot.slane %v549, 4
      %v552 = vshll.u32 %v352, 16
      %v554 = vrot.slane %v552, 5
      %v555 = vsel %vm419, %v550, %v554
      %v556 = vshrl.u32 %v351, 16
      %v558 = vrot.slane %v556, 4
      %v559 = vor.u32 %v558, %v544
      %v560 = vrot.slane %v559, 4
      %v562 = vshll.u32 %v353, 16
      %v564 = vrot.slane %v562, 5
      %v565 = vsel %vm419, %v560, %v564
      %v566 = vshrl.u32 %v352, 16
      %v568 = vrot.slane %v566, 4
      %v569 = vor.u32 %v568, %v554
      %v570 = vrot.slane %v569, 4
      %v572 = vshll.u32 %v354, 16
      %v574 = vrot.slane %v572, 5
      %v575 = vsel %vm419, %v570, %v574
      %v576 = vshrl.u32 %v353, 16
      %v578 = vrot.slane %v576, 4
      %v579 = vor.u32 %v578, %v564
      %v580 = vrot.slane %v579, 4
      %v582 = vshll.u32 %v355, 16
      %v584 = vrot.slane %v582, 5
      %v585 = vsel %vm419, %v580, %v584
      %v586 = vshrl.u32 %v354, 16
      %v588 = vrot.slane %v586, 4
      %v589 = vor.u32 %v588, %v574
      %v590 = vrot.slane %v589, 4
      %v592 = vshll.u32 %v356, 16
      %v594 = vrot.slane %v592, 5
      %v595 = vsel %vm419, %v590, %v594
      %v597 = vshrl.u32 %v357, 16
      %v599 = vrot.slane %v597, 4
      %v600 = vshll.u32 %v357, 16
      %v602 = vrot.slane %v600, 5
      %v603 = vor.u32 %v599, %v602
      %v604 = vrot.slane %v603, 4
      %v606 = vshll.u32 %v359, 16
      %v608 = vrot.slane %v606, 5
      %v609 = vsel %vm419, %v604, %v608
      %v611 = vshrl.u32 %v358, 16
      %v613 = vrot.slane %v611, 4
      %v614 = vshll.u32 %v358, 16
      %v616 = vrot.slane %v614, 5
      %v617 = vor.u32 %v613, %v616
      %v618 = vrot.slane %v617, 4
      %v620 = vshll.u32 %v360, 16
      %v622 = vrot.slane %v620, 5
      %v623 = vsel %vm419, %v618, %v622
      %v624 = vshrl.u32 %v359, 16
      %v626 = vrot.slane %v624, 4
      %v627 = vor.u32 %v626, %v608
      %v628 = vrot.slane %v627, 4
      %v630 = vshll.u32 %v361, 16
      %v632 = vrot.slane %v630, 5
      %v633 = vsel %vm419, %v628, %v632
      %v634 = vshrl.u32 %v360, 16
      %v636 = vrot.slane %v634, 4
      %v637 = vor.u32 %v636, %v622
      %v638 = vrot.slane %v637, 4
      %v640 = vshll.u32 %v362, 16
      %v642 = vrot.slane %v640, 5
      %v643 = vsel %vm419, %v638, %v642
      %v644 = vshrl.u32 %v361, 16
      %v646 = vrot.slane %v644, 4
      %v647 = vor.u32 %v646, %v632
      %v648 = vrot.slane %v647, 4
      %v650 = vshll.u32 %v363, 16
      %v652 = vrot.slane %v650, 5
      %v653 = vsel %vm419, %v648, %v652
      %v654 = vshrl.u32 %v362, 16
      %v656 = vrot.slane %v654, 4
      %v657 = vor.u32 %v656, %v642
      %v658 = vrot.slane %v657, 4
      %v660 = vshll.u32 %v364, 16
      %v662 = vrot.slane %v660, 5
      %v663 = vsel %vm419, %v658, %v662
      %v664 = vshrl.u32 %v363, 16
      %v666 = vrot.slane %v664, 4
      %v667 = vor.u32 %v666, %v652
      %v668 = vrot.slane %v667, 4
      %v670 = vshll.u32 %v365, 16
      %v672 = vrot.slane %v670, 5
      %v673 = vsel %vm419, %v668, %v672
      %v674 = vshrl.u32 %v364, 16
      %v676 = vrot.slane %v674, 4
      %v677 = vor.u32 %v676, %v662
      %v678 = vrot.slane %v677, 4
      %v680 = vshll.u32 %v366, 16
      %v682 = vrot.slane %v680, 5
      %v683 = vsel %vm419, %v678, %v682
      %v685 = vshrl.u32 %v367, 16
      %v687 = vrot.slane %v685, 4
      %v688 = vshll.u32 %v367, 16
      %v690 = vrot.slane %v688, 5
      %v691 = vor.u32 %v687, %v690
      %v692 = vrot.slane %v691, 4
      %v694 = vshll.u32 %v369, 16
      %v696 = vrot.slane %v694, 5
      %v697 = vsel %vm419, %v692, %v696
      %v699 = vshrl.u32 %v368, 16
      %v701 = vrot.slane %v699, 4
      %v702 = vshll.u32 %v368, 16
      %v704 = vrot.slane %v702, 5
      %v705 = vor.u32 %v701, %v704
      %v706 = vrot.slane %v705, 4
      %v708 = vshll.u32 %v370, 16
      %v710 = vrot.slane %v708, 5
      %v711 = vsel %vm419, %v706, %v710
      %v712 = vshrl.u32 %v369, 16
      %v714 = vrot.slane %v712, 4
      %v715 = vor.u32 %v714, %v696
      %v716 = vrot.slane %v715, 4
      %v718 = vshll.u32 %v371, 16
      %v720 = vrot.slane %v718, 5
      %v721 = vsel %vm419, %v716, %v720
      %v722 = vshrl.u32 %v370, 16
      %v724 = vrot.slane %v722, 4
      %v725 = vor.u32 %v724, %v710
      %v726 = vrot.slane %v725, 4
      %v728 = vshll.u32 %v372, 16
      %v730 = vrot.slane %v728, 5
      %v731 = vsel %vm419, %v726, %v730
      %v732 = vshrl.u32 %v371, 16
      %v734 = vrot.slane %v732, 4
      %v735 = vor.u32 %v734, %v720
      %v736 = vrot.slane %v735, 4
      %v738 = vshll.u32 %v373, 16
      %v740 = vrot.slane %v738, 5
      %v741 = vsel %vm419, %v736, %v740
      %v742 = vshrl.u32 %v372, 16
      %v744 = vrot.slane %v742, 4
      %v745 = vor.u32 %v744, %v730
      %v746 = vrot.slane %v745, 4
      %v748 = vshll.u32 %v374, 16
      %v750 = vrot.slane %v748, 5
      %v751 = vsel %vm419, %v746, %v750
      %v752 = vshrl.u32 %v373, 16
      %v754 = vrot.slane %v752, 4
      %v755 = vor.u32 %v754, %v740
      %v756 = vrot.slane %v755, 4
      %v758 = vshll.u32 %v375, 16
      %v760 = vrot.slane %v758, 5
      %v761 = vsel %vm419, %v756, %v760
      %v762 = vshrl.u32 %v374, 16
      %v764 = vrot.slane %v762, 4
      %v765 = vor.u32 %v764, %v750
      %v766 = vrot.slane %v765, 4
      %v768 = vshll.u32 %v376, 16
      %v770 = vrot.slane %v768, 5
      %v771 = vsel %vm419, %v766, %v770
      %v773 = vshrl.u32 %v377, 16
      %v775 = vrot.slane %v773, 4
      %v776 = vshll.u32 %v377, 16
      %v778 = vrot.slane %v776, 5
      %v779 = vor.u32 %v775, %v778
      %v780 = vrot.slane %v779, 4
      %v782 = vshll.u32 %v379, 16
      %v784 = vrot.slane %v782, 5
      %v785 = vsel %vm419, %v780, %v784
      %v787 = vshrl.u32 %v378, 16
      %v789 = vrot.slane %v787, 4
      %v790 = vshll.u32 %v378, 16
      %v792 = vrot.slane %v790, 5
      %v793 = vor.u32 %v789, %v792
      %v794 = vrot.slane %v793, 4
      %v796 = vshll.u32 %v380, 16
      %v798 = vrot.slane %v796, 5
      %v799 = vsel %vm419, %v794, %v798
      %v800 = vshrl.u32 %v379, 16
      %v802 = vrot.slane %v800, 4
      %v803 = vor.u32 %v802, %v784
      %v804 = vrot.slane %v803, 4
      %v806 = vshll.u32 %v381, 16
      %v808 = vrot.slane %v806, 5
      %v809 = vsel %vm419, %v804, %v808
      %v810 = vshrl.u32 %v380, 16
      %v812 = vrot.slane %v810, 4
      %v813 = vor.u32 %v812, %v798
      %v814 = vrot.slane %v813, 4
      %v816 = vshll.u32 %v382, 16
      %v818 = vrot.slane %v816, 5
      %v819 = vsel %vm419, %v814, %v818
      %v820 = vshrl.u32 %v381, 16
      %v822 = vrot.slane %v820, 4
      %v823 = vor.u32 %v822, %v808
      %v824 = vrot.slane %v823, 4
      %v826 = vshll.u32 %v383, 16
      %v828 = vrot.slane %v826, 5
      %v829 = vsel %vm419, %v824, %v828
      %v830 = vshrl.u32 %v382, 16
      %v832 = vrot.slane %v830, 4
      %v833 = vor.u32 %v832, %v818
      %v834 = vrot.slane %v833, 4
      %v836 = vshll.u32 %v384, 16
      %v838 = vrot.slane %v836, 5
      %v839 = vsel %vm419, %v834, %v838
      %v840 = vshrl.u32 %v383, 16
      %v842 = vrot.slane %v840, 4
      %v843 = vor.u32 %v842, %v828
      %v844 = vrot.slane %v843, 4
      %v846 = vshll.u32 %v385, 16
      %v848 = vrot.slane %v846, 5
      %v849 = vsel %vm419, %v844, %v848
      %v850 = vshrl.u32 %v384, 16
      %v852 = vrot.slane %v850, 4
      %v853 = vor.u32 %v852, %v838
      %v854 = vrot.slane %v853, 4
      %v856 = vshll.u32 %v386, 16
      %v858 = vrot.slane %v856, 5
      %v859 = vsel %vm419, %v854, %v858
      %v861 = vshrl.u32 %v387, 16
      %v863 = vrot.slane %v861, 4
      %v864 = vshll.u32 %v387, 16
      %v866 = vrot.slane %v864, 5
      %v867 = vor.u32 %v863, %v866
      %v868 = vrot.slane %v867, 4
      %v870 = vshll.u32 %v389, 16
      %v872 = vrot.slane %v870, 5
      %v873 = vsel %vm419, %v868, %v872
      %v875 = vshrl.u32 %v388, 16
      %v877 = vrot.slane %v875, 4
      %v878 = vshll.u32 %v388, 16
      %v880 = vrot.slane %v878, 5
      %v881 = vor.u32 %v877, %v880
      %v882 = vrot.slane %v881, 4
      %v884 = vshll.u32 %v390, 16
      %v886 = vrot.slane %v884, 5
      %v887 = vsel %vm419, %v882, %v886
      %v888 = vshrl.u32 %v389, 16
      %v890 = vrot.slane %v888, 4
      %v891 = vor.u32 %v890, %v872
      %v892 = vrot.slane %v891, 4
      %v894 = vshll.u32 %v391, 16
      %v896 = vrot.slane %v894, 5
      %v897 = vsel %vm419, %v892, %v896
      %v898 = vshrl.u32 %v390, 16
      %v900 = vrot.slane %v898, 4
      %v901 = vor.u32 %v900, %v886
      %v902 = vrot.slane %v901, 4
      %v904 = vshll.u32 %v392, 16
      %v906 = vrot.slane %v904, 5
      %v907 = vsel %vm419, %v902, %v906
      %v908 = vshrl.u32 %v391, 16
      %v910 = vrot.slane %v908, 4
      %v911 = vor.u32 %v910, %v896
      %v912 = vrot.slane %v911, 4
      %v914 = vshll.u32 %v393, 16
      %v916 = vrot.slane %v914, 5
      %v917 = vsel %vm419, %v912, %v916
      %v918 = vshrl.u32 %v392, 16
      %v920 = vrot.slane %v918, 4
      %v921 = vor.u32 %v920, %v906
      %v922 = vrot.slane %v921, 4
      %v924 = vshll.u32 %v394, 16
      %v926 = vrot.slane %v924, 5
      %v927 = vsel %vm419, %v922, %v926
      %v928 = vshrl.u32 %v393, 16
      %v930 = vrot.slane %v928, 4
      %v931 = vor.u32 %v930, %v916
      %v932 = vrot.slane %v931, 4
      %v934 = vshll.u32 %v395, 16
      %v936 = vrot.slane %v934, 5
      %v937 = vsel %vm419, %v932, %v936
      %v938 = vshrl.u32 %v394, 16
      %v940 = vrot.slane %v938, 4
      %v941 = vor.u32 %v940, %v926
      %v942 = vrot.slane %v941, 4
      %v944 = vshll.u32 %v396, 16
      %v946 = vrot.slane %v944, 5
      %v947 = vsel %vm419, %v942, %v946
      %v949 = vshrl.u32 %v397, 16
      %v951 = vrot.slane %v949, 4
      %v952 = vshll.u32 %v397, 16
      %v954 = vrot.slane %v952, 5
      %v955 = vor.u32 %v951, %v954
      %v956 = vrot.slane %v955, 4
      %v958 = vshll.u32 %v399, 16
      %v960 = vrot.slane %v958, 5
      %v961 = vsel %vm419, %v956, %v960
      %v963 = vshrl.u32 %v398, 16
      %v965 = vrot.slane %v963, 4
      %v966 = vshll.u32 %v398, 16
      %v968 = vrot.slane %v966, 5
      %v969 = vor.u32 %v965, %v968
      %v970 = vrot.slane %v969, 4
      %v972 = vshll.u32 %v400, 16
      %v974 = vrot.slane %v972, 5
      %v975 = vsel %vm419, %v970, %v974
      %v976 = vshrl.u32 %v399, 16
      %v978 = vrot.slane %v976, 4
      %v979 = vor.u32 %v978, %v960
      %v980 = vrot.slane %v979, 4
      %v982 = vshll.u32 %v401, 16
      %v984 = vrot.slane %v982, 5
      %v985 = vsel %vm419, %v980, %v984
      %v986 = vshrl.u32 %v400, 16
      %v988 = vrot.slane %v986, 4
      %v989 = vor.u32 %v988, %v974
      %v990 = vrot.slane %v989, 4
      %v992 = vshll.u32 %v402, 16
      %v994 = vrot.slane %v992, 5
      %v995 = vsel %vm419, %v990, %v994
      %v996 = vshrl.u32 %v401, 16
      %v998 = vrot.slane %v996, 4
      %v999 = vor.u32 %v998, %v984
      %v1000 = vrot.slane %v999, 4
      %v1002 = vshll.u32 %v403, 16
      %v1004 = vrot.slane %v1002, 5
      %v1005 = vsel %vm419, %v1000, %v1004
      %v1006 = vshrl.u32 %v402, 16
      %v1008 = vrot.slane %v1006, 4
      %v1009 = vor.u32 %v1008, %v994
      %v1010 = vrot.slane %v1009, 4
      %v1012 = vshll.u32 %v404, 16
      %v1014 = vrot.slane %v1012, 5
      %v1015 = vsel %vm419, %v1010, %v1014
      %v1016 = vshrl.u32 %v403, 16
      %v1018 = vrot.slane %v1016, 4
      %v1019 = vor.u32 %v1018, %v1004
      %v1020 = vrot.slane %v1019, 4
      %v1022 = vshll.u32 %v405, 16
      %v1024 = vrot.slane %v1022, 5
      %v1025 = vsel %vm419, %v1020, %v1024
      %v1026 = vshrl.u32 %v404, 16
      %v1028 = vrot.slane %v1026, 4
      %v1029 = vor.u32 %v1028, %v1014
      %v1030 = vrot.slane %v1029, 4
      %v1032 = vshll.u32 %v406, 16
      %v1034 = vrot.slane %v1032, 5
      %v1035 = vsel %vm419, %v1030, %v1034
      %v1037 = vshrl.u32 %v407, 16
      %v1039 = vrot.slane %v1037, 4
      %v1040 = vshll.u32 %v407, 16
      %v1042 = vrot.slane %v1040, 5
      %v1043 = vor.u32 %v1039, %v1042
      %v1044 = vrot.slane %v1043, 4
      %v1046 = vshll.u32 %v409, 16
      %v1048 = vrot.slane %v1046, 5
      %v1049 = vsel %vm419, %v1044, %v1048
      %v1051 = vshrl.u32 %v408, 16
      %v1053 = vrot.slane %v1051, 4
      %v1054 = vshll.u32 %v408, 16
      %v1056 = vrot.slane %v1054, 5
      %v1057 = vor.u32 %v1053, %v1056
      %v1058 = vrot.slane %v1057, 4
      %v1060 = vshll.u32 %v410, 16
      %v1062 = vrot.slane %v1060, 5
      %v1063 = vsel %vm419, %v1058, %v1062
      %v1064 = vshrl.u32 %v409, 16
      %v1066 = vrot.slane %v1064, 4
      %v1067 = vor.u32 %v1066, %v1048
      %v1068 = vrot.slane %v1067, 4
      %v1070 = vshll.u32 %v411, 16
      %v1072 = vrot.slane %v1070, 5
      %v1073 = vsel %vm419, %v1068, %v1072
      %v1074 = vshrl.u32 %v410, 16
      %v1076 = vrot.slane %v1074, 4
      %v1077 = vor.u32 %v1076, %v1062
      %v1078 = vrot.slane %v1077, 4
      %v1080 = vshll.u32 %v412, 16
      %v1082 = vrot.slane %v1080, 5
      %v1083 = vsel %vm419, %v1078, %v1082
      %v1084 = vshrl.u32 %v411, 16
      %v1086 = vrot.slane %v1084, 4
      %v1087 = vor.u32 %v1086, %v1072
      %v1088 = vrot.slane %v1087, 4
      %v1090 = vshll.u32 %v413, 16
      %v1092 = vrot.slane %v1090, 5
      %v1093 = vsel %vm419, %v1088, %v1092
      %v1094 = vshrl.u32 %v412, 16
      %v1096 = vrot.slane %v1094, 4
      %v1097 = vor.u32 %v1096, %v1082
      %v1098 = vrot.slane %v1097, 4
      %v1100 = vshll.u32 %v414, 16
      %v1102 = vrot.slane %v1100, 5
      %v1103 = vsel %vm419, %v1098, %v1102
      %v1104 = vshrl.u32 %v413, 16
      %v1106 = vrot.slane %v1104, 4
      %v1107 = vor.u32 %v1106, %v1092
      %v1108 = vrot.slane %v1107, 4
      %v1110 = vshll.u32 %v415, 16
      %v1112 = vrot.slane %v1110, 5
      %v1113 = vsel %vm419, %v1108, %v1112
      %v1114 = vshrl.u32 %v414, 16
      %v1116 = vrot.slane %v1114, 4
      %v1117 = vor.u32 %v1116, %v1102
      %v1118 = vrot.slane %v1117, 4
      %v1120 = vshll.u32 %v416, 16
      %v1122 = vrot.slane %v1120, 5
      %v1123 = vsel %vm419, %v1118, %v1122
      %vm1164 = vcmask 1042432
      %vm1165 = vcmask 1046532
      %vm1166 = vmor %vm1164, %vm1165
      %v1167 = vrot.slane %v337, 5
      %v1168 = vrot.slane %v1167, 4
      %v1169 = vrot.slane %v339, 5
      %v1170 = vsel %vm1166, %v1168, %v1169
      %v1171 = vrot.slane %v1169, 4
      %v1172 = vrot.slane %v341, 5
      %v1173 = vsel %vm1166, %v1171, %v1172
      %v1174 = vrot.slane %v1172, 4
      %v1175 = vrot.slane %v343, 5
      %v1176 = vsel %vm1166, %v1174, %v1175
      %v1177 = vrot.slane %v1175, 4
      %v1178 = vrot.slane %v345, 5
      %v1179 = vsel %vm1166, %v1177, %v1178
      %v1180 = vrot.slane %v347, 5
      %v1181 = vrot.slane %v1180, 4
      %v1182 = vrot.slane %v349, 5
      %v1183 = vsel %vm1166, %v1181, %v1182
      %v1184 = vrot.slane %v1182, 4
      %v1185 = vrot.slane %v351, 5
      %v1186 = vsel %vm1166, %v1184, %v1185
      %v1187 = vrot.slane %v1185, 4
      %v1188 = vrot.slane %v353, 5
      %v1189 = vsel %vm1166, %v1187, %v1188
      %v1190 = vrot.slane %v1188, 4
      %v1191 = vrot.slane %v355, 5
      %v1192 = vsel %vm1166, %v1190, %v1191
      %v1193 = vrot.slane %v357, 5
      %v1194 = vrot.slane %v1193, 4
      %v1195 = vrot.slane %v359, 5
      %v1196 = vsel %vm1166, %v1194, %v1195
      %v1197 = vrot.slane %v1195, 4
      %v1198 = vrot.slane %v361, 5
      %v1199 = vsel %vm1166, %v1197, %v1198
      %v1200 = vrot.slane %v1198, 4
      %v1201 = vrot.slane %v363, 5
      %v1202 = vsel %vm1166, %v1200, %v1201
      %v1203 = vrot.slane %v1201, 4
      %v1204 = vrot.slane %v365, 5
      %v1205 = vsel %vm1166, %v1203, %v1204
      %v1206 = vrot.slane %v367, 5
      %v1207 = vrot.slane %v1206, 4
      %v1208 = vrot.slane %v369, 5
      %v1209 = vsel %vm1166, %v1207, %v1208
      %v1210 = vrot.slane %v1208, 4
      %v1211 = vrot.slane %v371, 5
      %v1212 = vsel %vm1166, %v1210, %v1211
      %v1213 = vrot.slane %v1211, 4
      %v1214 = vrot.slane %v373, 5
      %v1215 = vsel %vm1166, %v1213, %v1214
      %v1216 = vrot.slane %v1214, 4
      %v1217 = vrot.slane %v375, 5
      %v1218 = vsel %vm1166, %v1216, %v1217
      %v1219 = vrot.slane %v377, 5
      %v1220 = vrot.slane %v1219, 4
      %v1221 = vrot.slane %v379, 5
      %v1222 = vsel %vm1166, %v1220, %v1221
      %v1223 = vrot.slane %v1221, 4
      %v1224 = vrot.slane %v381, 5
      %v1225 = vsel %vm1166, %v1223, %v1224
      %v1226 = vrot.slane %v1224, 4
      %v1227 = vrot.slane %v383, 5
      %v1228 = vsel %vm1166, %v1226, %v1227
      %v1229 = vrot.slane %v1227, 4
      %v1230 = vrot.slane %v385, 5
      %v1231 = vsel %vm1166, %v1229, %v1230
      %v1232 = vrot.slane %v387, 5
      %v1233 = vrot.slane %v1232, 4
      %v1234 = vrot.slane %v389, 5
      %v1235 = vsel %vm1166, %v1233, %v1234
      %v1236 = vrot.slane %v1234, 4
      %v1237 = vrot.slane %v391, 5
      %v1238 = vsel %vm1166, %v1236, %v1237
      %v1239 = vrot.slane %v1237, 4
      %v1240 = vrot.slane %v393, 5
      %v1241 = vsel %vm1166, %v1239, %v1240
      %v1242 = vrot.slane %v1240, 4
      %v1243 = vrot.slane %v395, 5
      %v1244 = vsel %vm1166, %v1242, %v1243
      %v1245 = vrot.slane %v397, 5
      %v1246 = vrot.slane %v1245, 4
      %v1247 = vrot.slane %v399, 5
      %v1248 = vsel %vm1166, %v1246, %v1247
      %v1249 = vrot.slane %v1247, 4
      %v1250 = vrot.slane %v401, 5
      %v1251 = vsel %vm1166, %v1249, %v1250
      %v1252 = vrot.slane %v1250, 4
      %v1253 = vrot.slane %v403, 5
      %v1254 = vsel %vm1166, %v1252, %v1253
      %v1255 = vrot.slane %v1253, 4
      %v1256 = vrot.slane %v405, 5
      %v1257 = vsel %vm1166, %v1255, %v1256
      %v1258 = vrot.slane %v407, 5
      %v1259 = vrot.slane %v1258, 4
      %v1260 = vrot.slane %v409, 5
      %v1261 = vsel %vm1166, %v1259, %v1260
      %v1262 = vrot.slane %v1260, 4
      %v1263 = vrot.slane %v411, 5
      %v1264 = vsel %vm1166, %v1262, %v1263
      %v1265 = vrot.slane %v1263, 4
      %v1266 = vrot.slane %v413, 5
      %v1267 = vsel %vm1166, %v1265, %v1266
      %v1268 = vrot.slane %v1266, 4
      %v1269 = vrot.slane %v415, 5
      %v1270 = vsel %vm1166, %v1268, %v1269
      %v1271 = vld [vmem:[%s1] sm:$0xf]
      %v1272 = vld [vmem:[%s1 + $0x4] sm:$0xf]
      %v1273 = vld [vmem:[%s1 + $0x8] sm:$0xf]
      %v1274 = vld [vmem:[%s1 + $0xc] sm:$0xf]
      %v1275 = vld [vmem:[%s1 + $0x10] sm:$0xf]
      %v1276 = vld [vmem:[%s1 + $0x14] sm:$0xf]
      %v1277 = vld [vmem:[%s1 + $0x18] sm:$0xf]
      %v1278 = vld [vmem:[%s1 + $0x1c] sm:$0xf]
      %v1279 = vld [vmem:[%s1 + $0x20] sm:$0xf]
      %v1280 = vld [vmem:[%s1 + $0x24] sm:$0xf]
      %v1281 = vld [vmem:[%s1 + $0x28] sm:$0xf]
      %v1282 = vld [vmem:[%s1 + $0x2c] sm:$0xf]
      %v1283 = vld [vmem:[%s1 + $0x30] sm:$0xf]
      %v1284 = vld [vmem:[%s1 + $0x34] sm:$0xf]
      %v1285 = vld [vmem:[%s1 + $0x38] sm:$0xf]
      %v1286 = vld [vmem:[%s1 + $0x3c] sm:$0xf]
      %v1287 = vld [vmem:[%s1 + $0x40] sm:$0xf]
      %v1288 = vld [vmem:[%s1 + $0x44] sm:$0xf]
      %v1289 = vld [vmem:[%s1 + $0x48] sm:$0xf]
      %v1290 = vld [vmem:[%s1 + $0x4c] sm:$0xf]
      %v1291 = vld [vmem:[%s1 + $0x50] sm:$0xf]
      %v1292 = vld [vmem:[%s1 + $0x54] sm:$0xf]
      %v1293 = vld [vmem:[%s1 + $0x58] sm:$0xf]
      %v1294 = vld [vmem:[%s1 + $0x5c] sm:$0xf]
      %v1295 = vld [vmem:[%s1 + $0x60] sm:$0xf]
      %v1296 = vld [vmem:[%s1 + $0x64] sm:$0xf]
      %v1297 = vld [vmem:[%s1 + $0x68] sm:$0xf]
      %v1298 = vld [vmem:[%s1 + $0x6c] sm:$0xf]
      %v1299 = vld [vmem:[%s1 + $0x70] sm:$0xf]
      %v1300 = vld [vmem:[%s1 + $0x74] sm:$0xf]
      %v1301 = vld [vmem:[%s1 + $0x78] sm:$0xf]
      %v1302 = vld [vmem:[%s1 + $0x7c] sm:$0xf]
      %v1303 = vld [vmem:[%s1 + $0x80] sm:$0xf]
      %v1304 = vld [vmem:[%s1 + $0x84] sm:$0xf]
      %v1305 = vld [vmem:[%s1 + $0x88] sm:$0xf]
      %v1306 = vld [vmem:[%s1 + $0x8c] sm:$0xf]
      %v1307 = vld [vmem:[%s1 + $0x90] sm:$0xf]
      %v1308 = vld [vmem:[%s1 + $0x94] sm:$0xf]
      %v1309 = vld [vmem:[%s1 + $0x98] sm:$0xf]
      %v1310 = vld [vmem:[%s1 + $0x9c] sm:$0xf]
      %v1311 = vld [vmem:[%s1 + $0xa0] sm:$0xf]
      %v1312 = vld [vmem:[%s1 + $0xa4] sm:$0xf]
      %v1313 = vld [vmem:[%s1 + $0xa8] sm:$0xf]
      %v1314 = vld [vmem:[%s1 + $0xac] sm:$0xf]
      %v1315 = vld [vmem:[%s1 + $0xb0] sm:$0xf]
      %v1316 = vld [vmem:[%s1 + $0xb4] sm:$0xf]
      %v1317 = vld [vmem:[%s1 + $0xb8] sm:$0xf]
      %v1318 = vld [vmem:[%s1 + $0xbc] sm:$0xf]
      %v1319 = vld [vmem:[%s1 + $0xc0] sm:$0xf]
      %v1320 = vld [vmem:[%s1 + $0xc4] sm:$0xf]
      %v1321 = vld [vmem:[%s1 + $0xc8] sm:$0xf]
      %v1322 = vld [vmem:[%s1 + $0xcc] sm:$0xf]
      %v1323 = vld [vmem:[%s1 + $0xd0] sm:$0xf]
      %v1324 = vld [vmem:[%s1 + $0xd4] sm:$0xf]
      %v1325 = vld [vmem:[%s1 + $0xd8] sm:$0xf]
      %v1326 = vld [vmem:[%s1 + $0xdc] sm:$0xf]
      %v1327 = vld [vmem:[%s1 + $0xe0] sm:$0xf]
      %v1328 = vld [vmem:[%s1 + $0xe4] sm:$0xf]
      %v1329 = vld [vmem:[%s1 + $0xe8] sm:$0xf]
      %v1330 = vld [vmem:[%s1 + $0xec] sm:$0xf]
      %v1331 = vld [vmem:[%s1 + $0xf0] sm:$0xf]
      %v1332 = vld [vmem:[%s1 + $0xf4] sm:$0xf]
      %v1333 = vld [vmem:[%s1 + $0xf8] sm:$0xf]
      %v1334 = vld [vmem:[%s1 + $0xfc] sm:$0xf]
      %v1335 = vld [vmem:[%s1 + $0x100] sm:$0xf]
      %v1336 = vld [vmem:[%s1 + $0x104] sm:$0xf]
      %v1337 = vld [vmem:[%s1 + $0x108] sm:$0xf]
      %v1338 = vld [vmem:[%s1 + $0x10c] sm:$0xf]
      %v1339 = vld [vmem:[%s1 + $0x110] sm:$0xf]
      %v1340 = vld [vmem:[%s1 + $0x114] sm:$0xf]
      %v1341 = vld [vmem:[%s1 + $0x118] sm:$0xf]
      %v1342 = vld [vmem:[%s1 + $0x11c] sm:$0xf]
      %v1343 = vld [vmem:[%s1 + $0x120] sm:$0xf]
      %v1344 = vld [vmem:[%s1 + $0x124] sm:$0xf]
      %v1345 = vld [vmem:[%s1 + $0x128] sm:$0xf]
      %v1346 = vld [vmem:[%s1 + $0x12c] sm:$0xf]
      %v1347 = vld [vmem:[%s1 + $0x130] sm:$0xf]
      %v1348 = vld [vmem:[%s1 + $0x134] sm:$0xf]
      %v1349 = vld [vmem:[%s1 + $0x138] sm:$0xf]
      %v1350 = vld [vmem:[%s1 + $0x13c] sm:$0xf]
      %v1351 = vld [vmem:[%s1 + $0x140] sm:$0xf]
      %v1352 = vld [vmem:[%s1 + $0x144] sm:$0xf]
      %v1353 = vld [vmem:[%s1 + $0x148] sm:$0xf]
      %v1354 = vld [vmem:[%s1 + $0x14c] sm:$0xf]
      %v1355 = vld [vmem:[%s1 + $0x150] sm:$0xf]
      %v1356 = vld [vmem:[%s1 + $0x154] sm:$0xf]
      %v1357 = vld [vmem:[%s1 + $0x158] sm:$0xf]
      %v1358 = vld [vmem:[%s1 + $0x15c] sm:$0xf]
      %v1359 = vld [vmem:[%s1 + $0x160] sm:$0xf]
      %v1360 = vld [vmem:[%s1 + $0x164] sm:$0xf]
      %v1361 = vld [vmem:[%s1 + $0x168] sm:$0xf]
      %v1362 = vld [vmem:[%s1 + $0x16c] sm:$0xf]
      %v1363 = vld [vmem:[%s1 + $0x170] sm:$0xf]
      %v1364 = vld [vmem:[%s1 + $0x174] sm:$0xf]
      %v1365 = vld [vmem:[%s1 + $0x178] sm:$0xf]
      %v1366 = vld [vmem:[%s1 + $0x17c] sm:$0xf]
      %v1367 = vld [vmem:[%s1 + $0x180] sm:$0xf]
      %v1368 = vld [vmem:[%s1 + $0x184] sm:$0xf]
      %v1369 = vld [vmem:[%s1 + $0x188] sm:$0xf]
      %v1370 = vld [vmem:[%s1 + $0x18c] sm:$0xf]
      %v1371 = vld [vmem:[%s1 + $0x190] sm:$0xf]
      %v1372 = vld [vmem:[%s1 + $0x194] sm:$0xf]
      %v1373 = vld [vmem:[%s1 + $0x198] sm:$0xf]
      %v1374 = vld [vmem:[%s1 + $0x19c] sm:$0xf]
      %v1375 = vld [vmem:[%s1 + $0x1a0] sm:$0xf]
      %v1376 = vld [vmem:[%s1 + $0x1a4] sm:$0xf]
      %v1377 = vld [vmem:[%s1 + $0x1a8] sm:$0xf]
      %v1378 = vld [vmem:[%s1 + $0x1ac] sm:$0xf]
      %v1379 = vld [vmem:[%s1 + $0x1b0] sm:$0xf]
      %v1380 = vld [vmem:[%s1 + $0x1b4] sm:$0xf]
      %v1381 = vld [vmem:[%s1 + $0x1b8] sm:$0xf]
      %v1382 = vld [vmem:[%s1 + $0x1bc] sm:$0xf]
      %v1383 = vunpack.c.l.b16 %v433
      %v1384 = vunpack.c.h.b16 %v433
      %v1385 = vunpack.c.l.b16 %v447
      %v1386 = vunpack.c.h.b16 %v447
      %v1387 = vunpack.c.l.b16 %v457
      %v1388 = vunpack.c.h.b16 %v457
      %v1389 = vunpack.c.l.b16 %v467
      %v1390 = vunpack.c.h.b16 %v467
      %v1391 = vunpack.c.l.b16 %v477
      %v1392 = vunpack.c.h.b16 %v477
      %v1393 = vunpack.c.l.b16 %v487
      %v1394 = vunpack.c.h.b16 %v487
      %v1395 = vunpack.c.l.b16 %v497
      %v1396 = vunpack.c.h.b16 %v497
      %v1397 = vunpack.c.l.b16 %v507
      %v1398 = vunpack.c.h.b16 %v507
      %v1399 = vunpack.c.l.b16 %v521
      %v1400 = vunpack.c.h.b16 %v521
      %v1401 = vunpack.c.l.b16 %v535
      %v1402 = vunpack.c.h.b16 %v535
      %v1403 = vunpack.c.l.b16 %v545
      %v1404 = vunpack.c.h.b16 %v545
      %v1405 = vunpack.c.l.b16 %v555
      %v1406 = vunpack.c.h.b16 %v555
      %v1407 = vunpack.c.l.b16 %v565
      %v1408 = vunpack.c.h.b16 %v565
      %v1409 = vunpack.c.l.b16 %v575
      %v1410 = vunpack.c.h.b16 %v575
      %v1411 = vunpack.c.l.b16 %v585
      %v1412 = vunpack.c.h.b16 %v585
      %v1413 = vunpack.c.l.b16 %v595
      %v1414 = vunpack.c.h.b16 %v595
      %v1415 = vunpack.c.l.b16 %v609
      %v1416 = vunpack.c.h.b16 %v609
      %v1417 = vunpack.c.l.b16 %v623
      %v1418 = vunpack.c.h.b16 %v623
      %v1419 = vunpack.c.l.b16 %v633
      %v1420 = vunpack.c.h.b16 %v633
      %v1421 = vunpack.c.l.b16 %v643
      %v1422 = vunpack.c.h.b16 %v643
      %v1423 = vunpack.c.l.b16 %v653
      %v1424 = vunpack.c.h.b16 %v653
      %v1425 = vunpack.c.l.b16 %v663
      %v1426 = vunpack.c.h.b16 %v663
      %v1427 = vunpack.c.l.b16 %v673
      %v1428 = vunpack.c.h.b16 %v673
      %v1429 = vunpack.c.l.b16 %v683
      %v1430 = vunpack.c.h.b16 %v683
      %v1431 = vunpack.c.l.b16 %v697
      %v1432 = vunpack.c.h.b16 %v697
      %v1433 = vunpack.c.l.b16 %v711
      %v1434 = vunpack.c.h.b16 %v711
      %v1435 = vunpack.c.l.b16 %v721
      %v1436 = vunpack.c.h.b16 %v721
      %v1437 = vunpack.c.l.b16 %v731
      %v1438 = vunpack.c.h.b16 %v731
      %v1439 = vunpack.c.l.b16 %v741
      %v1440 = vunpack.c.h.b16 %v741
      %v1441 = vunpack.c.l.b16 %v751
      %v1442 = vunpack.c.h.b16 %v751
      %v1443 = vunpack.c.l.b16 %v761
      %v1444 = vunpack.c.h.b16 %v761
      %v1445 = vunpack.c.l.b16 %v771
      %v1446 = vunpack.c.h.b16 %v771
      %v1447 = vunpack.c.l.b16 %v785
      %v1448 = vunpack.c.h.b16 %v785
      %v1449 = vunpack.c.l.b16 %v799
      %v1450 = vunpack.c.h.b16 %v799
      %v1451 = vunpack.c.l.b16 %v809
      %v1452 = vunpack.c.h.b16 %v809
      %v1453 = vunpack.c.l.b16 %v819
      %v1454 = vunpack.c.h.b16 %v819
      %v1455 = vunpack.c.l.b16 %v829
      %v1456 = vunpack.c.h.b16 %v829
      %v1457 = vunpack.c.l.b16 %v839
      %v1458 = vunpack.c.h.b16 %v839
      %v1459 = vunpack.c.l.b16 %v849
      %v1460 = vunpack.c.h.b16 %v849
      %v1461 = vunpack.c.l.b16 %v859
      %v1462 = vunpack.c.h.b16 %v859
      %v1463 = vunpack.c.l.b16 %v873
      %v1464 = vunpack.c.h.b16 %v873
      %v1465 = vunpack.c.l.b16 %v887
      %v1466 = vunpack.c.h.b16 %v887
      %v1467 = vunpack.c.l.b16 %v897
      %v1468 = vunpack.c.h.b16 %v897
      %v1469 = vunpack.c.l.b16 %v907
      %v1470 = vunpack.c.h.b16 %v907
      %v1471 = vunpack.c.l.b16 %v917
      %v1472 = vunpack.c.h.b16 %v917
      %v1473 = vunpack.c.l.b16 %v927
      %v1474 = vunpack.c.h.b16 %v927
      %v1475 = vunpack.c.l.b16 %v937
      %v1476 = vunpack.c.h.b16 %v937
      %v1477 = vunpack.c.l.b16 %v947
      %v1478 = vunpack.c.h.b16 %v947
      %v1479 = vunpack.c.l.b16 %v961
      %v1480 = vunpack.c.h.b16 %v961
      %v1481 = vunpack.c.l.b16 %v975
      %v1482 = vunpack.c.h.b16 %v975
      %v1483 = vunpack.c.l.b16 %v985
      %v1484 = vunpack.c.h.b16 %v985
      %v1485 = vunpack.c.l.b16 %v995
      %v1486 = vunpack.c.h.b16 %v995
      %v1487 = vunpack.c.l.b16 %v1005
      %v1488 = vunpack.c.h.b16 %v1005
      %v1489 = vunpack.c.l.b16 %v1015
      %v1490 = vunpack.c.h.b16 %v1015
      %v1491 = vunpack.c.l.b16 %v1025
      %v1492 = vunpack.c.h.b16 %v1025
      %v1493 = vunpack.c.l.b16 %v1035
      %v1494 = vunpack.c.h.b16 %v1035
      %v1495 = vunpack.c.l.b16 %v1049
      %v1496 = vunpack.c.h.b16 %v1049
      %v1497 = vunpack.c.l.b16 %v1063
      %v1498 = vunpack.c.h.b16 %v1063
      %v1499 = vunpack.c.l.b16 %v1073
      %v1500 = vunpack.c.h.b16 %v1073
      %v1501 = vunpack.c.l.b16 %v1083
      %v1502 = vunpack.c.h.b16 %v1083
      %v1503 = vunpack.c.l.b16 %v1093
      %v1504 = vunpack.c.h.b16 %v1093
      %v1505 = vunpack.c.l.b16 %v1103
      %v1506 = vunpack.c.h.b16 %v1103
      %v1507 = vunpack.c.l.b16 %v1113
      %v1508 = vunpack.c.h.b16 %v1113
      %v1509 = vunpack.c.l.b16 %v1123
      %v1510 = vunpack.c.h.b16 %v1123
      %v1511 = vpack.c.b16 %v1387, %v1383
      %v1512 = vpack.c.b16 %v1388, %v1384
      %v1513 = vpack.c.b16 %v1389, %v1385
      %v1514 = vpack.c.b16 %v1390, %v1386
      %v1515 = vpack.c.b16 %v1395, %v1391
      %v1516 = vpack.c.b16 %v1396, %v1392
      %v1517 = vpack.c.b16 %v1397, %v1393
      %v1518 = vpack.c.b16 %v1398, %v1394
      %v1519 = vpack.c.b16 %v1403, %v1399
      %v1520 = vpack.c.b16 %v1404, %v1400
      %v1521 = vpack.c.b16 %v1405, %v1401
      %v1522 = vpack.c.b16 %v1406, %v1402
      %v1523 = vpack.c.b16 %v1411, %v1407
      %v1524 = vpack.c.b16 %v1412, %v1408
      %v1525 = vpack.c.b16 %v1413, %v1409
      %v1526 = vpack.c.b16 %v1414, %v1410
      %v1527 = vpack.c.b16 %v1419, %v1415
      %v1528 = vpack.c.b16 %v1420, %v1416
      %v1529 = vpack.c.b16 %v1421, %v1417
      %v1530 = vpack.c.b16 %v1422, %v1418
      %v1531 = vpack.c.b16 %v1427, %v1423
      %v1532 = vpack.c.b16 %v1428, %v1424
      %v1533 = vpack.c.b16 %v1429, %v1425
      %v1534 = vpack.c.b16 %v1430, %v1426
      %v1535 = vpack.c.b16 %v1435, %v1431
      %v1536 = vpack.c.b16 %v1436, %v1432
      %v1537 = vpack.c.b16 %v1437, %v1433
      %v1538 = vpack.c.b16 %v1438, %v1434
      %v1539 = vpack.c.b16 %v1443, %v1439
      %v1540 = vpack.c.b16 %v1444, %v1440
      %v1541 = vpack.c.b16 %v1445, %v1441
      %v1542 = vpack.c.b16 %v1446, %v1442
      %v1543 = vpack.c.b16 %v1451, %v1447
      %v1544 = vpack.c.b16 %v1452, %v1448
      %v1545 = vpack.c.b16 %v1453, %v1449
      %v1546 = vpack.c.b16 %v1454, %v1450
      %v1547 = vpack.c.b16 %v1459, %v1455
      %v1548 = vpack.c.b16 %v1460, %v1456
      %v1549 = vpack.c.b16 %v1461, %v1457
      %v1550 = vpack.c.b16 %v1462, %v1458
      %v1551 = vpack.c.b16 %v1467, %v1463
      %v1552 = vpack.c.b16 %v1468, %v1464
      %v1553 = vpack.c.b16 %v1469, %v1465
      %v1554 = vpack.c.b16 %v1470, %v1466
      %v1555 = vpack.c.b16 %v1475, %v1471
      %v1556 = vpack.c.b16 %v1476, %v1472
      %v1557 = vpack.c.b16 %v1477, %v1473
      %v1558 = vpack.c.b16 %v1478, %v1474
      %v1559 = vpack.c.b16 %v1483, %v1479
      %v1560 = vpack.c.b16 %v1484, %v1480
      %v1561 = vpack.c.b16 %v1485, %v1481
      %v1562 = vpack.c.b16 %v1486, %v1482
      %v1563 = vpack.c.b16 %v1491, %v1487
      %v1564 = vpack.c.b16 %v1492, %v1488
      %v1565 = vpack.c.b16 %v1493, %v1489
      %v1566 = vpack.c.b16 %v1494, %v1490
      %v1567 = vpack.c.b16 %v1499, %v1495
      %v1568 = vpack.c.b16 %v1500, %v1496
      %v1569 = vpack.c.b16 %v1501, %v1497
      %v1570 = vpack.c.b16 %v1502, %v1498
      %v1571 = vpack.c.b16 %v1507, %v1503
      %v1572 = vpack.c.b16 %v1508, %v1504
      %v1573 = vpack.c.b16 %v1509, %v1505
      %v1574 = vpack.c.b16 %v1510, %v1506
      %v1679 = vunpack.c.l.b16 %v1327
      %v1680 = vunpack.c.l.b16 %v1328
      %v1681 = vunpack.c.l.b16 %v1329
      %v1682 = vunpack.c.l.b16 %v1330
      %v1683 = vunpack.c.l.b16 %v1331
      %v1684 = vunpack.c.l.b16 %v1332
      %v1685 = vunpack.c.l.b16 %v1333
      %v1686 = vunpack.c.l.b16 %v1334
      %v1687 = vunpack.c.l.b16 %v1335
      %v1688 = vunpack.c.l.b16 %v1336
      %v1689 = vunpack.c.l.b16 %v1337
      %v1690 = vunpack.c.l.b16 %v1338
      %v1691 = vunpack.c.l.b16 %v1339
      %v1692 = vunpack.c.l.b16 %v1340
      %v1693 = vunpack.c.l.b16 %v1341
      %v1694 = vunpack.c.l.b16 %v1342
      %v1695 = vunpack.c.l.b16 %v1343
      %v1696 = vunpack.c.l.b16 %v1344
      %v1697 = vunpack.c.l.b16 %v1345
      %v1698 = vunpack.c.l.b16 %v1346
      %v1699 = vunpack.c.l.b16 %v1347
      %v1700 = vunpack.c.l.b16 %v1348
      %v1701 = vunpack.c.l.b16 %v1349
      %v1702 = vunpack.c.l.b16 %v1350
      %v1703 = vunpack.c.l.b16 %v1351
      %v1704 = vunpack.c.l.b16 %v1352
      %v1705 = vunpack.c.l.b16 %v1353
      %v1706 = vunpack.c.l.b16 %v1354
      %v1707 = vunpack.c.l.b16 %v1355
      %v1708 = vunpack.c.l.b16 %v1356
      %v1709 = vunpack.c.l.b16 %v1357
      %v1710 = vunpack.c.l.b16 %v1358
      %v1711 = vunpack.c.l.b16 %v1359
      %v1712 = vunpack.c.l.b16 %v1360
      %v1713 = vunpack.c.l.b16 %v1361
      %v1714 = vunpack.c.l.b16 %v1362
      %v1715 = vunpack.c.l.b16 %v1363
      %v1716 = vunpack.c.l.b16 %v1364
      %v1717 = vunpack.c.l.b16 %v1365
      %v1718 = vunpack.c.l.b16 %v1366
      %v1719 = vunpack.c.l.b16 %v1367
      %v1720 = vunpack.c.l.b16 %v1368
      %v1721 = vunpack.c.l.b16 %v1369
      %v1722 = vunpack.c.l.b16 %v1370
      %v1723 = vunpack.c.l.b16 %v1371
      %v1724 = vunpack.c.l.b16 %v1372
      %v1725 = vunpack.c.l.b16 %v1373
      %v1726 = vunpack.c.l.b16 %v1374
      %v1727 = vunpack.c.l.b16 %v1375
      %v1728 = vunpack.c.l.b16 %v1376
      %v1729 = vunpack.c.l.b16 %v1377
      %v1730 = vunpack.c.l.b16 %v1378
      %v1731 = vunpack.c.l.b16 %v1379
      %v1732 = vunpack.c.l.b16 %v1380
      %v1733 = vunpack.c.l.b16 %v1381
      %v1734 = vunpack.c.l.b16 %v1382
      %v1735 = vpack.c.b16 %v1680, %v1679
      %v1736 = vpack.c.b16 %v1682, %v1681
      %v1737 = vpack.c.b16 %v1684, %v1683
      %v1738 = vpack.c.b16 %v1686, %v1685
      %v1739 = vpack.c.b16 %v1688, %v1687
      %v1740 = vpack.c.b16 %v1690, %v1689
      %v1741 = vpack.c.b16 %v1692, %v1691
      %v1742 = vpack.c.b16 %v1694, %v1693
      %v1743 = vpack.c.b16 %v1696, %v1695
      %v1744 = vpack.c.b16 %v1698, %v1697
      %v1745 = vpack.c.b16 %v1700, %v1699
      %v1746 = vpack.c.b16 %v1702, %v1701
      %v1747 = vpack.c.b16 %v1704, %v1703
      %v1748 = vpack.c.b16 %v1706, %v1705
      %v1749 = vpack.c.b16 %v1708, %v1707
      %v1750 = vpack.c.b16 %v1710, %v1709
      %v1751 = vpack.c.b16 %v1712, %v1711
      %v1752 = vpack.c.b16 %v1714, %v1713
      %v1753 = vpack.c.b16 %v1716, %v1715
      %v1754 = vpack.c.b16 %v1718, %v1717
      %v1755 = vpack.c.b16 %v1720, %v1719
      %v1756 = vpack.c.b16 %v1722, %v1721
      %v1757 = vpack.c.b16 %v1724, %v1723
      %v1758 = vpack.c.b16 %v1726, %v1725
      %v1759 = vpack.c.b16 %v1728, %v1727
      %v1760 = vpack.c.b16 %v1730, %v1729
      %v1761 = vpack.c.b16 %v1732, %v1731
      %v1762 = vpack.c.b16 %v1734, %v1733
      %vm1791 = vcmask 523264
      %v1793 = vsel %vm1791, %v1514, 0
      %v1796 = vsel %vm1791, %v1518, 0
      %v1799 = vsel %vm1791, %v1522, 0
      %v1802 = vsel %vm1791, %v1526, 0
      %v1805 = vsel %vm1791, %v1530, 0
      %v1808 = vsel %vm1791, %v1534, 0
      %v1811 = vsel %vm1791, %v1538, 0
      %v1814 = vsel %vm1791, %v1542, 0
      %v1817 = vsel %vm1791, %v1546, 0
      %v1820 = vsel %vm1791, %v1550, 0
      %v1823 = vsel %vm1791, %v1554, 0
      %v1826 = vsel %vm1791, %v1558, 0
      %v1829 = vsel %vm1791, %v1562, 0
      %v1832 = vsel %vm1791, %v1566, 0
      %v1835 = vsel %vm1791, %v1570, 0
      %v1838 = vsel %vm1791, %v1574, 0
      %1840 = vmatprep.subr.bf16.mxu0 0
      %1841 = vmatpush1.bf16.msra.mxu0 %v1742
      %1842 = vmatprep.subr.bf16.mxu0 0
      %1843 = vmatpush1.bf16.msra.mxu0 %v1741
      %1844 = vmatprep.subr.bf16.mxu0 0
      %1845 = vmatpush1.bf16.msra.mxu0 %v1740
      %1846 = vmatprep.subr.bf16.mxu0 0
      %1847 = vmatpush1.bf16.msra.mxu0 %v1739
      %1848 = vmatprep.subr.bf16.mxu0 0
      %1849 = vmatpush1.bf16.msra.mxu0 %v1738
      %1850 = vmatprep.subr.bf16.mxu0 0
      %1851 = vmatpush1.bf16.msra.mxu0 %v1737
      %1852 = vmatprep.subr.bf16.mxu0 0
      %1853 = vmatpush1.bf16.msra.mxu0 %v1736
      %1854 = vmatprep.subr.bf16.mxu0 0
      %1855 = vmatpush1.bf16.msra.mxu0 %v1735
      %1856 = vmatprep.subr.bf16.mxu0 0
      %1857 = vmatpush2.bf16.msra.mxu0 %v1750
      %1858 = vmatprep.subr.bf16.mxu0 0
      %1859 = vmatpush2.bf16.msra.mxu0 %v1749
      %1860 = vmatprep.subr.bf16.mxu0 0
      %1861 = vmatpush2.bf16.msra.mxu0 %v1748
      %1862 = vmatprep.subr.bf16.mxu0 0
      %1863 = vmatpush2.bf16.msra.mxu0 %v1747
      %1864 = vmatprep.subr.bf16.mxu0 0
      %1865 = vmatpush2.bf16.msra.mxu0 %v1746
      %1866 = vmatprep.subr.bf16.mxu0 0
      %1867 = vmatpush2.bf16.msra.mxu0 %v1745
      %1868 = vmatprep.subr.bf16.mxu0 0
      %1869 = vmatpush2.bf16.msra.mxu0 %v1744
      %1870 = vmatprep.subr.bf16.mxu0 0
      %1871 = vmatpush2.bf16.msra.mxu0 %v1743
      %1872 = vmatprep.mubr.bf16.mxu0 %v1512
      %1873 = vmatmul.mubr.bf16.gmra.mxu0 %v1511
      %v1874 = vpop.f32.mrf.mxu0
      %v1875 = vadd.f32 0.0, %v1874
      %v1876 = vpop.f32.mrf.mxu0
      %v1877 = vpop.f32.mrf.mxu0
      %v1878 = vadd.f32 0.0, %v1877
      %v1879 = vpop.f32.mrf.mxu0
      %1880 = vmatprep.mubr.bf16.mxu0 %v1516
      %1881 = vmatmul.mubr.bf16.gmra.mxu0 %v1515
      %v1882 = vpop.f32.mrf.mxu0
      %v1883 = vadd.f32 0.0, %v1882
      %v1884 = vpop.f32.mrf.mxu0
      %v1885 = vpop.f32.mrf.mxu0
      %v1886 = vadd.f32 0.0, %v1885
      %v1887 = vpop.f32.mrf.mxu0
      %1888 = vmatprep.mubr.bf16.mxu0 %v1520
      %1889 = vmatmul.mubr.bf16.gmra.mxu0 %v1519
      %v1890 = vpop.f32.mrf.mxu0
      %v1891 = vadd.f32 0.0, %v1890
      %v1892 = vpop.f32.mrf.mxu0
      %v1893 = vpop.f32.mrf.mxu0
      %v1894 = vadd.f32 0.0, %v1893
      %v1895 = vpop.f32.mrf.mxu0
      %1896 = vmatprep.mubr.bf16.mxu0 %v1524
      %1897 = vmatmul.mubr.bf16.gmra.mxu0 %v1523
      %v1898 = vpop.f32.mrf.mxu0
      %v1899 = vadd.f32 0.0, %v1898
      %v1900 = vpop.f32.mrf.mxu0
      %v1901 = vpop.f32.mrf.mxu0
      %v1902 = vadd.f32 0.0, %v1901
      %v1903 = vpop.f32.mrf.mxu0
      %1904 = vmatprep.mubr.bf16.mxu0 %v1528
      %1905 = vmatmul.mubr.bf16.gmra.mxu0 %v1527
      %v1906 = vpop.f32.mrf.mxu0
      %v1907 = vadd.f32 0.0, %v1906
      %v1908 = vpop.f32.mrf.mxu0
      %v1909 = vpop.f32.mrf.mxu0
      %v1910 = vadd.f32 0.0, %v1909
      %v1911 = vpop.f32.mrf.mxu0
      %1912 = vmatprep.mubr.bf16.mxu0 %v1532
      %1913 = vmatmul.mubr.bf16.gmra.mxu0 %v1531
      %v1914 = vpop.f32.mrf.mxu0
      %v1915 = vadd.f32 0.0, %v1914
      %v1916 = vpop.f32.mrf.mxu0
      %v1917 = vpop.f32.mrf.mxu0
      %v1918 = vadd.f32 0.0, %v1917
      %v1919 = vpop.f32.mrf.mxu0
      %1920 = vmatprep.mubr.bf16.mxu0 %v1536
      %1921 = vmatmul.mubr.bf16.gmra.mxu0 %v1535
      %v1922 = vpop.f32.mrf.mxu0
      %v1923 = vadd.f32 0.0, %v1922
      %v1924 = vpop.f32.mrf.mxu0
      %v1925 = vpop.f32.mrf.mxu0
      %v1926 = vadd.f32 0.0, %v1925
      %v1927 = vpop.f32.mrf.mxu0
      %1928 = vmatprep.mubr.bf16.mxu0 %v1540
      %1929 = vmatmul.mubr.bf16.gmra.mxu0 %v1539
      %v1930 = vpop.f32.mrf.mxu0
      %v1931 = vadd.f32 0.0, %v1930
      %v1932 = vpop.f32.mrf.mxu0
      %v1933 = vpop.f32.mrf.mxu0
      %v1934 = vadd.f32 0.0, %v1933
      %v1935 = vpop.f32.mrf.mxu0
      %1936 = vmatprep.mubr.bf16.mxu0 %v1544
      %1937 = vmatmul.mubr.bf16.gmra.mxu0 %v1543
      %v1938 = vpop.f32.mrf.mxu0
      %v1939 = vadd.f32 0.0, %v1938
      %v1940 = vpop.f32.mrf.mxu0
      %v1941 = vpop.f32.mrf.mxu0
      %v1942 = vadd.f32 0.0, %v1941
      %v1943 = vpop.f32.mrf.mxu0
      %1944 = vmatprep.mubr.bf16.mxu0 %v1548
      %1945 = vmatmul.mubr.bf16.gmra.mxu0 %v1547
      %v1946 = vpop.f32.mrf.mxu0
      %v1947 = vadd.f32 0.0, %v1946
      %v1948 = vpop.f32.mrf.mxu0
      %v1949 = vpop.f32.mrf.mxu0
      %v1950 = vadd.f32 0.0, %v1949
      %v1951 = vpop.f32.mrf.mxu0
      %1952 = vmatprep.mubr.bf16.mxu0 %v1552
      %1953 = vmatmul.mubr.bf16.gmra.mxu0 %v1551
      %v1954 = vpop.f32.mrf.mxu0
      %v1955 = vadd.f32 0.0, %v1954
      %v1956 = vpop.f32.mrf.mxu0
      %v1957 = vpop.f32.mrf.mxu0
      %v1958 = vadd.f32 0.0, %v1957
      %v1959 = vpop.f32.mrf.mxu0
      %1960 = vmatprep.mubr.bf16.mxu0 %v1556
      %1961 = vmatmul.mubr.bf16.gmra.mxu0 %v1555
      %v1962 = vpop.f32.mrf.mxu0
      %v1963 = vadd.f32 0.0, %v1962
      %v1964 = vpop.f32.mrf.mxu0
      %v1965 = vpop.f32.mrf.mxu0
      %v1966 = vadd.f32 0.0, %v1965
      %v1967 = vpop.f32.mrf.mxu0
      %1968 = vmatprep.mubr.bf16.mxu0 %v1560
      %1969 = vmatmul.mubr.bf16.gmra.mxu0 %v1559
      %v1970 = vpop.f32.mrf.mxu0
      %v1971 = vadd.f32 0.0, %v1970
      %v1972 = vpop.f32.mrf.mxu0
      %v1973 = vpop.f32.mrf.mxu0
      %v1974 = vadd.f32 0.0, %v1973
      %v1975 = vpop.f32.mrf.mxu0
      %1976 = vmatprep.mubr.bf16.mxu0 %v1564
      %1977 = vmatmul.mubr.bf16.gmra.mxu0 %v1563
      %v1978 = vpop.f32.mrf.mxu0
      %v1979 = vadd.f32 0.0, %v1978
      %v1980 = vpop.f32.mrf.mxu0
      %v1981 = vpop.f32.mrf.mxu0
      %v1982 = vadd.f32 0.0, %v1981
      %v1983 = vpop.f32.mrf.mxu0
      %1984 = vmatprep.mubr.bf16.mxu0 %v1568
      %1985 = vmatmul.mubr.bf16.gmra.mxu0 %v1567
      %v1986 = vpop.f32.mrf.mxu0
      %v1987 = vadd.f32 0.0, %v1986
      %v1988 = vpop.f32.mrf.mxu0
      %v1989 = vpop.f32.mrf.mxu0
      %v1990 = vadd.f32 0.0, %v1989
      %v1991 = vpop.f32.mrf.mxu0
      %1992 = vmatprep.mubr.bf16.mxu0 %v1572
      %1993 = vmatmul.mubr.bf16.gmra.mxu0 %v1571
      %v1994 = vpop.f32.mrf.mxu0
      %v1995 = vadd.f32 0.0, %v1994
      %v1996 = vpop.f32.mrf.mxu0
      %v1997 = vpop.f32.mrf.mxu0
      %v1998 = vadd.f32 0.0, %v1997
      %v1999 = vpop.f32.mrf.mxu0
      %2000 = vdwg.mxu0
      %2001 = vmatprep.subr.bf16.mxu0 0
      %2002 = vmatpush1.bf16.msra.mxu0 %v1758
      %2003 = vmatprep.subr.bf16.mxu0 0
      %2004 = vmatpush1.bf16.msra.mxu0 %v1757
      %2005 = vmatprep.subr.bf16.mxu0 0
      %2006 = vmatpush1.bf16.msra.mxu0 %v1756
      %2007 = vmatprep.subr.bf16.mxu0 0
      %2008 = vmatpush1.bf16.msra.mxu0 %v1755
      %2009 = vmatprep.subr.bf16.mxu0 0
      %2010 = vmatpush1.bf16.msra.mxu0 %v1754
      %2011 = vmatprep.subr.bf16.mxu0 0
      %2012 = vmatpush1.bf16.msra.mxu0 %v1753
      %2013 = vmatprep.subr.bf16.mxu0 0
      %2014 = vmatpush1.bf16.msra.mxu0 %v1752
      %2015 = vmatprep.subr.bf16.mxu0 0
      %2016 = vmatpush1.bf16.msra.mxu0 %v1751
      %2017 = vmatprep.subr.bf16.mxu0 0
      %2018 = vmatpush2.bf16.msra.mxu0 0
      %2019 = vmatprep.subr.bf16.mxu0 0
      %2020 = vmatpush2.bf16.msra.mxu0 0
      %2021 = vmatprep.subr.bf16.mxu0 0
      %2022 = vmatpush2.bf16.msra.mxu0 0
      %2023 = vmatprep.subr.bf16.mxu0 0
      %2024 = vmatpush2.bf16.msra.mxu0 0
      %2025 = vmatprep.subr.bf16.mxu0 0
      %2026 = vmatpush2.bf16.msra.mxu0 %v1762
      %2027 = vmatprep.subr.bf16.mxu0 0
      %2028 = vmatpush2.bf16.msra.mxu0 %v1761
      %2029 = vmatprep.subr.bf16.mxu0 0
      %2030 = vmatpush2.bf16.msra.mxu0 %v1760
      %2031 = vmatprep.subr.bf16.mxu0 0
      %2032 = vmatpush2.bf16.msra.mxu0 %v1759
      %2033 = vmatprep.mubr.bf16.mxu0 %v1793
      %2034 = vmatmul.mubr.bf16.gmra.mxu0 %v1513
      %v2035 = vpop.f32.mrf.mxu0
      %v2036 = vadd.f32 %v1875, %v2035
      %v2037 = vpop.f32.mrf.mxu0
      %v2038 = vpop.f32.mrf.mxu0
      %v2039 = vadd.f32 %v1878, %v2038
      %v2040 = vpop.f32.mrf.mxu0
      %2041 = vmatprep.mubr.bf16.mxu0 %v1796
      %2042 = vmatmul.mubr.bf16.gmra.mxu0 %v1517
      %v2043 = vpop.f32.mrf.mxu0
      %v2044 = vadd.f32 %v1883, %v2043
      %v2045 = vpop.f32.mrf.mxu0
      %v2046 = vpop.f32.mrf.mxu0
      %v2047 = vadd.f32 %v1886, %v2046
      %v2048 = vpop.f32.mrf.mxu0
      %2049 = vmatprep.mubr.bf16.mxu0 %v1799
      %2050 = vmatmul.mubr.bf16.gmra.mxu0 %v1521
      %v2051 = vpop.f32.mrf.mxu0
      %v2052 = vadd.f32 %v1891, %v2051
      %v2053 = vpop.f32.mrf.mxu0
      %v2054 = vpop.f32.mrf.mxu0
      %v2055 = vadd.f32 %v1894, %v2054
      %v2056 = vpop.f32.mrf.mxu0
      %2057 = vmatprep.mubr.bf16.mxu0 %v1802
      %2058 = vmatmul.mubr.bf16.gmra.mxu0 %v1525
      %v2059 = vpop.f32.mrf.mxu0
      %v2060 = vadd.f32 %v1899, %v2059
      %v2061 = vpop.f32.mrf.mxu0
      %v2062 = vpop.f32.mrf.mxu0
      %v2063 = vadd.f32 %v1902, %v2062
      %v2064 = vpop.f32.mrf.mxu0
      %2065 = vmatprep.mubr.bf16.mxu0 %v1805
      %2066 = vmatmul.mubr.bf16.gmra.mxu0 %v1529
      %v2067 = vpop.f32.mrf.mxu0
      %v2068 = vadd.f32 %v1907, %v2067
      %v2069 = vpop.f32.mrf.mxu0
      %v2070 = vpop.f32.mrf.mxu0
      %v2071 = vadd.f32 %v1910, %v2070
      %v2072 = vpop.f32.mrf.mxu0
      %2073 = vmatprep.mubr.bf16.mxu0 %v1808
      %2074 = vmatmul.mubr.bf16.gmra.mxu0 %v1533
      %v2075 = vpop.f32.mrf.mxu0
      %v2076 = vadd.f32 %v1915, %v2075
      %v2077 = vpop.f32.mrf.mxu0
      %v2078 = vpop.f32.mrf.mxu0
      %v2079 = vadd.f32 %v1918, %v2078
      %v2080 = vpop.f32.mrf.mxu0
      %2081 = vmatprep.mubr.bf16.mxu0 %v1811
      %2082 = vmatmul.mubr.bf16.gmra.mxu0 %v1537
      %v2083 = vpop.f32.mrf.mxu0
      %v2084 = vadd.f32 %v1923, %v2083
      %v2085 = vpop.f32.mrf.mxu0
      %v2086 = vpop.f32.mrf.mxu0
      %v2087 = vadd.f32 %v1926, %v2086
      %v2088 = vpop.f32.mrf.mxu0
      %2089 = vmatprep.mubr.bf16.mxu0 %v1814
      %2090 = vmatmul.mubr.bf16.gmra.mxu0 %v1541
      %v2091 = vpop.f32.mrf.mxu0
      %v2092 = vadd.f32 %v1931, %v2091
      %v2093 = vpop.f32.mrf.mxu0
      %v2094 = vpop.f32.mrf.mxu0
      %v2095 = vadd.f32 %v1934, %v2094
      %v2096 = vpop.f32.mrf.mxu0
      %2097 = vmatprep.mubr.bf16.mxu0 %v1817
      %2098 = vmatmul.mubr.bf16.gmra.mxu0 %v1545
      %v2099 = vpop.f32.mrf.mxu0
      %v2100 = vadd.f32 %v1939, %v2099
      %v2101 = vpop.f32.mrf.mxu0
      %v2102 = vpop.f32.mrf.mxu0
      %v2103 = vadd.f32 %v1942, %v2102
      %v2104 = vpop.f32.mrf.mxu0
      %2105 = vmatprep.mubr.bf16.mxu0 %v1820
      %2106 = vmatmul.mubr.bf16.gmra.mxu0 %v1549
      %v2107 = vpop.f32.mrf.mxu0
      %v2108 = vadd.f32 %v1947, %v2107
      %v2109 = vpop.f32.mrf.mxu0
      %v2110 = vpop.f32.mrf.mxu0
      %v2111 = vadd.f32 %v1950, %v2110
      %v2112 = vpop.f32.mrf.mxu0
      %2113 = vmatprep.mubr.bf16.mxu0 %v1823
      %2114 = vmatmul.mubr.bf16.gmra.mxu0 %v1553
      %v2115 = vpop.f32.mrf.mxu0
      %v2116 = vadd.f32 %v1955, %v2115
      %v2117 = vpop.f32.mrf.mxu0
      %v2118 = vpop.f32.mrf.mxu0
      %v2119 = vadd.f32 %v1958, %v2118
      %v2120 = vpop.f32.mrf.mxu0
      %2121 = vmatprep.mubr.bf16.mxu0 %v1826
      %2122 = vmatmul.mubr.bf16.gmra.mxu0 %v1557
      %v2123 = vpop.f32.mrf.mxu0
      %v2124 = vadd.f32 %v1963, %v2123
      %v2125 = vpop.f32.mrf.mxu0
      %v2126 = vpop.f32.mrf.mxu0
      %v2127 = vadd.f32 %v1966, %v2126
      %v2128 = vpop.f32.mrf.mxu0
      %2129 = vmatprep.mubr.bf16.mxu0 %v1829
      %2130 = vmatmul.mubr.bf16.gmra.mxu0 %v1561
      %v2131 = vpop.f32.mrf.mxu0
      %v2132 = vadd.f32 %v1971, %v2131
      %v2133 = vpop.f32.mrf.mxu0
      %v2134 = vpop.f32.mrf.mxu0
      %v2135 = vadd.f32 %v1974, %v2134
      %v2136 = vpop.f32.mrf.mxu0
      %2137 = vmatprep.mubr.bf16.mxu0 %v1832
      %2138 = vmatmul.mubr.bf16.gmra.mxu0 %v1565
      %v2139 = vpop.f32.mrf.mxu0
      %v2140 = vadd.f32 %v1979, %v2139
      %v2141 = vpop.f32.mrf.mxu0
      %v2142 = vpop.f32.mrf.mxu0
      %v2143 = vadd.f32 %v1982, %v2142
      %v2144 = vpop.f32.mrf.mxu0
      %2145 = vmatprep.mubr.bf16.mxu0 %v1835
      %2146 = vmatmul.mubr.bf16.gmra.mxu0 %v1569
      %v2147 = vpop.f32.mrf.mxu0
      %v2148 = vadd.f32 %v1987, %v2147
      %v2149 = vpop.f32.mrf.mxu0
      %v2150 = vpop.f32.mrf.mxu0
      %v2151 = vadd.f32 %v1990, %v2150
      %v2152 = vpop.f32.mrf.mxu0
      %2153 = vmatprep.mubr.bf16.mxu0 %v1838
      %2154 = vmatmul.mubr.bf16.gmra.mxu0 %v1573
      %v2155 = vpop.f32.mrf.mxu0
      %v2156 = vadd.f32 %v1995, %v2155
      %v2157 = vpop.f32.mrf.mxu0
      %v2158 = vpop.f32.mrf.mxu0
      %v2159 = vadd.f32 %v1998, %v2158
      %v2160 = vpop.f32.mrf.mxu0
      %2161 = vdwg.mxu0
      %v2194 = vunpack.c.l.b16 %v337
      %v2195 = vunpack.c.h.b16 %v337
      %v2196 = vunpack.c.l.b16 %v338
      %v2197 = vunpack.c.h.b16 %v338
      %v2198 = vunpack.c.l.b16 %v339
      %v2199 = vunpack.c.h.b16 %v339
      %v2200 = vunpack.c.l.b16 %v340
      %v2201 = vunpack.c.h.b16 %v340
      %v2202 = vunpack.c.l.b16 %v341
      %v2203 = vunpack.c.h.b16 %v341
      %v2204 = vunpack.c.l.b16 %v342
      %v2205 = vunpack.c.h.b16 %v342
      %v2206 = vunpack.c.l.b16 %v343
      %v2207 = vunpack.c.h.b16 %v343
      %v2208 = vunpack.c.l.b16 %v344
      %v2209 = vunpack.c.h.b16 %v344
      %v2210 = vunpack.c.l.b16 %v347
      %v2211 = vunpack.c.h.b16 %v347
      %v2212 = vunpack.c.l.b16 %v348
      %v2213 = vunpack.c.h.b16 %v348
      %v2214 = vunpack.c.l.b16 %v349
      %v2215 = vunpack.c.h.b16 %v349
      %v2216 = vunpack.c.l.b16 %v350
      %v2217 = vunpack.c.h.b16 %v350
      %v2218 = vunpack.c.l.b16 %v351
      %v2219 = vunpack.c.h.b16 %v351
      %v2220 = vunpack.c.l.b16 %v352
      %v2221 = vunpack.c.h.b16 %v352
      %v2222 = vunpack.c.l.b16 %v353
      %v2223 = vunpack.c.h.b16 %v353
      %v2224 = vunpack.c.l.b16 %v354
      %v2225 = vunpack.c.h.b16 %v354
      %v2226 = vunpack.c.l.b16 %v357
      %v2227 = vunpack.c.h.b16 %v357
      %v2228 = vunpack.c.l.b16 %v358
      %v2229 = vunpack.c.h.b16 %v358
      %v2230 = vunpack.c.l.b16 %v359
      %v2231 = vunpack.c.h.b16 %v359
      %v2232 = vunpack.c.l.b16 %v360
      %v2233 = vunpack.c.h.b16 %v360
      %v2234 = vunpack.c.l.b16 %v361
      %v2235 = vunpack.c.h.b16 %v361
      %v2236 = vunpack.c.l.b16 %v362
      %v2237 = vunpack.c.h.b16 %v362
      %v2238 = vunpack.c.l.b16 %v363
      %v2239 = vunpack.c.h.b16 %v363
      %v2240 = vunpack.c.l.b16 %v364
      %v2241 = vunpack.c.h.b16 %v364
      %v2242 = vunpack.c.l.b16 %v367
      %v2243 = vunpack.c.h.b16 %v367
      %v2244 = vunpack.c.l.b16 %v368
      %v2245 = vunpack.c.h.b16 %v368
      %v2246 = vunpack.c.l.b16 %v369
      %v2247 = vunpack.c.h.b16 %v369
      %v2248 = vunpack.c.l.b16 %v370
      %v2249 = vunpack.c.h.b16 %v370
      %v2250 = vunpack.c.l.b16 %v371
      %v2251 = vunpack.c.h.b16 %v371
      %v2252 = vunpack.c.l.b16 %v372
      %v2253 = vunpack.c.h.b16 %v372
      %v2254 = vunpack.c.l.b16 %v373
      %v2255 = vunpack.c.h.b16 %v373
      %v2256 = vunpack.c.l.b16 %v374
      %v2257 = vunpack.c.h.b16 %v374
      %v2258 = vunpack.c.l.b16 %v377
      %v2259 = vunpack.c.h.b16 %v377
      %v2260 = vunpack.c.l.b16 %v378
      %v2261 = vunpack.c.h.b16 %v378
      %v2262 = vunpack.c.l.b16 %v379
      %v2263 = vunpack.c.h.b16 %v379
      %v2264 = vunpack.c.l.b16 %v380
      %v2265 = vunpack.c.h.b16 %v380
      %v2266 = vunpack.c.l.b16 %v381
      %v2267 = vunpack.c.h.b16 %v381
      %v2268 = vunpack.c.l.b16 %v382
      %v2269 = vunpack.c.h.b16 %v382
      %v2270 = vunpack.c.l.b16 %v383
      %v2271 = vunpack.c.h.b16 %v383
      %v2272 = vunpack.c.l.b16 %v384
      %v2273 = vunpack.c.h.b16 %v384
      %v2274 = vunpack.c.l.b16 %v387
      %v2275 = vunpack.c.h.b16 %v387
      %v2276 = vunpack.c.l.b16 %v388
      %v2277 = vunpack.c.h.b16 %v388
      %v2278 = vunpack.c.l.b16 %v389
      %v2279 = vunpack.c.h.b16 %v389
      %v2280 = vunpack.c.l.b16 %v390
      %v2281 = vunpack.c.h.b16 %v390
      %v2282 = vunpack.c.l.b16 %v391
      %v2283 = vunpack.c.h.b16 %v391
      %v2284 = vunpack.c.l.b16 %v392
      %v2285 = vunpack.c.h.b16 %v392
      %v2286 = vunpack.c.l.b16 %v393
      %v2287 = vunpack.c.h.b16 %v393
      %v2288 = vunpack.c.l.b16 %v394
      %v2289 = vunpack.c.h.b16 %v394
      %v2290 = vunpack.c.l.b16 %v397
      %v2291 = vunpack.c.h.b16 %v397
      %v2292 = vunpack.c.l.b16 %v398
      %v2293 = vunpack.c.h.b16 %v398
      %v2294 = vunpack.c.l.b16 %v399
      %v2295 = vunpack.c.h.b16 %v399
      %v2296 = vunpack.c.l.b16 %v400
      %v2297 = vunpack.c.h.b16 %v400
      %v2298 = vunpack.c.l.b16 %v401
      %v2299 = vunpack.c.h.b16 %v401
      %v2300 = vunpack.c.l.b16 %v402
      %v2301 = vunpack.c.h.b16 %v402
      %v2302 = vunpack.c.l.b16 %v403
      %v2303 = vunpack.c.h.b16 %v403
      %v2304 = vunpack.c.l.b16 %v404
      %v2305 = vunpack.c.h.b16 %v404
      %v2306 = vunpack.c.l.b16 %v407
      %v2307 = vunpack.c.h.b16 %v407
      %v2308 = vunpack.c.l.b16 %v408
      %v2309 = vunpack.c.h.b16 %v408
      %v2310 = vunpack.c.l.b16 %v409
      %v2311 = vunpack.c.h.b16 %v409
      %v2312 = vunpack.c.l.b16 %v410
      %v2313 = vunpack.c.h.b16 %v410
      %v2314 = vunpack.c.l.b16 %v411
      %v2315 = vunpack.c.h.b16 %v411
      %v2316 = vunpack.c.l.b16 %v412
      %v2317 = vunpack.c.h.b16 %v412
      %v2318 = vunpack.c.l.b16 %v413
      %v2319 = vunpack.c.h.b16 %v413
      %v2320 = vunpack.c.l.b16 %v414
      %v2321 = vunpack.c.h.b16 %v414
      %v2322 = vpack.c.b16 %v2198, %v2194
      %v2323 = vpack.c.b16 %v2199, %v2195
      %v2324 = vpack.c.b16 %v2200, %v2196
      %v2325 = vpack.c.b16 %v2201, %v2197
      %v2326 = vpack.c.b16 %v2206, %v2202
      %v2327 = vpack.c.b16 %v2207, %v2203
      %v2328 = vpack.c.b16 %v2208, %v2204
      %v2329 = vpack.c.b16 %v2209, %v2205
      %v2330 = vpack.c.b16 %v2214, %v2210
      %v2331 = vpack.c.b16 %v2215, %v2211
      %v2332 = vpack.c.b16 %v2216, %v2212
      %v2333 = vpack.c.b16 %v2217, %v2213
      %v2334 = vpack.c.b16 %v2222, %v2218
      %v2335 = vpack.c.b16 %v2223, %v2219
      %v2336 = vpack.c.b16 %v2224, %v2220
      %v2337 = vpack.c.b16 %v2225, %v2221
      %v2338 = vpack.c.b16 %v2230, %v2226
      %v2339 = vpack.c.b16 %v2231, %v2227
      %v2340 = vpack.c.b16 %v2232, %v2228
      %v2341 = vpack.c.b16 %v2233, %v2229
      %v2342 = vpack.c.b16 %v2238, %v2234
      %v2343 = vpack.c.b16 %v2239, %v2235
      %v2344 = vpack.c.b16 %v2240, %v2236
      %v2345 = vpack.c.b16 %v2241, %v2237
      %v2346 = vpack.c.b16 %v2246, %v2242
      %v2347 = vpack.c.b16 %v2247, %v2243
      %v2348 = vpack.c.b16 %v2248, %v2244
      %v2349 = vpack.c.b16 %v2249, %v2245
      %v2350 = vpack.c.b16 %v2254, %v2250
      %v2351 = vpack.c.b16 %v2255, %v2251
      %v2352 = vpack.c.b16 %v2256, %v2252
      %v2353 = vpack.c.b16 %v2257, %v2253
      %v2354 = vpack.c.b16 %v2262, %v2258
      %v2355 = vpack.c.b16 %v2263, %v2259
      %v2356 = vpack.c.b16 %v2264, %v2260
      %v2357 = vpack.c.b16 %v2265, %v2261
      %v2358 = vpack.c.b16 %v2270, %v2266
      %v2359 = vpack.c.b16 %v2271, %v2267
      %v2360 = vpack.c.b16 %v2272, %v2268
      %v2361 = vpack.c.b16 %v2273, %v2269
      %v2362 = vpack.c.b16 %v2278, %v2274
      %v2363 = vpack.c.b16 %v2279, %v2275
      %v2364 = vpack.c.b16 %v2280, %v2276
      %v2365 = vpack.c.b16 %v2281, %v2277
      %v2366 = vpack.c.b16 %v2286, %v2282
      %v2367 = vpack.c.b16 %v2287, %v2283
      %v2368 = vpack.c.b16 %v2288, %v2284
      %v2369 = vpack.c.b16 %v2289, %v2285
      %v2370 = vpack.c.b16 %v2294, %v2290
      %v2371 = vpack.c.b16 %v2295, %v2291
      %v2372 = vpack.c.b16 %v2296, %v2292
      %v2373 = vpack.c.b16 %v2297, %v2293
      %v2374 = vpack.c.b16 %v2302, %v2298
      %v2375 = vpack.c.b16 %v2303, %v2299
      %v2376 = vpack.c.b16 %v2304, %v2300
      %v2377 = vpack.c.b16 %v2305, %v2301
      %v2378 = vpack.c.b16 %v2310, %v2306
      %v2379 = vpack.c.b16 %v2311, %v2307
      %v2380 = vpack.c.b16 %v2312, %v2308
      %v2381 = vpack.c.b16 %v2313, %v2309
      %v2382 = vpack.c.b16 %v2318, %v2314
      %v2383 = vpack.c.b16 %v2319, %v2315
      %v2384 = vpack.c.b16 %v2320, %v2316
      %v2385 = vpack.c.b16 %v2321, %v2317
      %v2490 = vunpack.c.l.b16 %v1271
      %v2491 = vunpack.c.l.b16 %v1272
      %v2492 = vunpack.c.l.b16 %v1273
      %v2493 = vunpack.c.l.b16 %v1274
      %v2494 = vunpack.c.l.b16 %v1275
      %v2495 = vunpack.c.l.b16 %v1276
      %v2496 = vunpack.c.l.b16 %v1277
      %v2497 = vunpack.c.l.b16 %v1278
      %v2498 = vunpack.c.l.b16 %v1279
      %v2499 = vunpack.c.l.b16 %v1280
      %v2500 = vunpack.c.l.b16 %v1281
      %v2501 = vunpack.c.l.b16 %v1282
      %v2502 = vunpack.c.l.b16 %v1283
      %v2503 = vunpack.c.l.b16 %v1284
      %v2504 = vunpack.c.l.b16 %v1285
      %v2505 = vunpack.c.l.b16 %v1286
      %v2506 = vunpack.c.l.b16 %v1287
      %v2507 = vunpack.c.l.b16 %v1288
      %v2508 = vunpack.c.l.b16 %v1289
      %v2509 = vunpack.c.l.b16 %v1290
      %v2510 = vunpack.c.l.b16 %v1291
      %v2511 = vunpack.c.l.b16 %v1292
      %v2512 = vunpack.c.l.b16 %v1293
      %v2513 = vunpack.c.l.b16 %v1294
      %v2514 = vunpack.c.l.b16 %v1295
      %v2515 = vunpack.c.l.b16 %v1296
      %v2516 = vunpack.c.l.b16 %v1297
      %v2517 = vunpack.c.l.b16 %v1298
      %v2518 = vunpack.c.l.b16 %v1299
      %v2519 = vunpack.c.l.b16 %v1300
      %v2520 = vunpack.c.l.b16 %v1301
      %v2521 = vunpack.c.l.b16 %v1302
      %v2522 = vunpack.c.l.b16 %v1303
      %v2523 = vunpack.c.l.b16 %v1304
      %v2524 = vunpack.c.l.b16 %v1305
      %v2525 = vunpack.c.l.b16 %v1306
      %v2526 = vunpack.c.l.b16 %v1307
      %v2527 = vunpack.c.l.b16 %v1308
      %v2528 = vunpack.c.l.b16 %v1309
      %v2529 = vunpack.c.l.b16 %v1310
      %v2530 = vunpack.c.l.b16 %v1311
      %v2531 = vunpack.c.l.b16 %v1312
      %v2532 = vunpack.c.l.b16 %v1313
      %v2533 = vunpack.c.l.b16 %v1314
      %v2534 = vunpack.c.l.b16 %v1315
      %v2535 = vunpack.c.l.b16 %v1316
      %v2536 = vunpack.c.l.b16 %v1317
      %v2537 = vunpack.c.l.b16 %v1318
      %v2538 = vunpack.c.l.b16 %v1319
      %v2539 = vunpack.c.l.b16 %v1320
      %v2540 = vunpack.c.l.b16 %v1321
      %v2541 = vunpack.c.l.b16 %v1322
      %v2542 = vunpack.c.l.b16 %v1323
      %v2543 = vunpack.c.l.b16 %v1324
      %v2544 = vunpack.c.l.b16 %v1325
      %v2545 = vunpack.c.l.b16 %v1326
      %v2546 = vpack.c.b16 %v2491, %v2490
      %v2547 = vpack.c.b16 %v2493, %v2492
      %v2548 = vpack.c.b16 %v2495, %v2494
      %v2549 = vpack.c.b16 %v2497, %v2496
      %v2550 = vpack.c.b16 %v2499, %v2498
      %v2551 = vpack.c.b16 %v2501, %v2500
      %v2552 = vpack.c.b16 %v2503, %v2502
      %v2553 = vpack.c.b16 %v2505, %v2504
      %v2554 = vpack.c.b16 %v2507, %v2506
      %v2555 = vpack.c.b16 %v2509, %v2508
      %v2556 = vpack.c.b16 %v2511, %v2510
      %v2557 = vpack.c.b16 %v2513, %v2512
      %v2558 = vpack.c.b16 %v2515, %v2514
      %v2559 = vpack.c.b16 %v2517, %v2516
      %v2560 = vpack.c.b16 %v2519, %v2518
      %v2561 = vpack.c.b16 %v2521, %v2520
      %v2562 = vpack.c.b16 %v2523, %v2522
      %v2563 = vpack.c.b16 %v2525, %v2524
      %v2564 = vpack.c.b16 %v2527, %v2526
      %v2565 = vpack.c.b16 %v2529, %v2528
      %v2566 = vpack.c.b16 %v2531, %v2530
      %v2567 = vpack.c.b16 %v2533, %v2532
      %v2568 = vpack.c.b16 %v2535, %v2534
      %v2569 = vpack.c.b16 %v2537, %v2536
      %v2570 = vpack.c.b16 %v2539, %v2538
      %v2571 = vpack.c.b16 %v2541, %v2540
      %v2572 = vpack.c.b16 %v2543, %v2542
      %v2573 = vpack.c.b16 %v2545, %v2544
      %v2603 = vsel %vm1791, %v2325, 0
      %v2606 = vsel %vm1791, %v2329, 0
      %v2609 = vsel %vm1791, %v2333, 0
      %v2612 = vsel %vm1791, %v2337, 0
      %v2615 = vsel %vm1791, %v2341, 0
      %v2618 = vsel %vm1791, %v2345, 0
      %v2621 = vsel %vm1791, %v2349, 0
      %v2624 = vsel %vm1791, %v2353, 0
      %v2627 = vsel %vm1791, %v2357, 0
      %v2630 = vsel %vm1791, %v2361, 0
      %v2633 = vsel %vm1791, %v2365, 0
      %v2636 = vsel %vm1791, %v2369, 0
      %v2639 = vsel %vm1791, %v2373, 0
      %v2642 = vsel %vm1791, %v2377, 0
      %v2645 = vsel %vm1791, %v2381, 0
      %v2648 = vsel %vm1791, %v2385, 0
      %2650 = vmatprep.subr.bf16.mxu0 0
      %2651 = vmatpush1.bf16.msra.mxu0 %v2553
      %2652 = vmatprep.subr.bf16.mxu0 0
      %2653 = vmatpush1.bf16.msra.mxu0 %v2552
      %2654 = vmatprep.subr.bf16.mxu0 0
      %2655 = vmatpush1.bf16.msra.mxu0 %v2551
      %2656 = vmatprep.subr.bf16.mxu0 0
      %2657 = vmatpush1.bf16.msra.mxu0 %v2550
      %2658 = vmatprep.subr.bf16.mxu0 0
      %2659 = vmatpush1.bf16.msra.mxu0 %v2549
      %2660 = vmatprep.subr.bf16.mxu0 0
      %2661 = vmatpush1.bf16.msra.mxu0 %v2548
      %2662 = vmatprep.subr.bf16.mxu0 0
      %2663 = vmatpush1.bf16.msra.mxu0 %v2547
      %2664 = vmatprep.subr.bf16.mxu0 0
      %2665 = vmatpush1.bf16.msra.mxu0 %v2546
      %2666 = vmatprep.subr.bf16.mxu0 0
      %2667 = vmatpush2.bf16.msra.mxu0 %v2561
      %2668 = vmatprep.subr.bf16.mxu0 0
      %2669 = vmatpush2.bf16.msra.mxu0 %v2560
      %2670 = vmatprep.subr.bf16.mxu0 0
      %2671 = vmatpush2.bf16.msra.mxu0 %v2559
      %2672 = vmatprep.subr.bf16.mxu0 0
      %2673 = vmatpush2.bf16.msra.mxu0 %v2558
      %2674 = vmatprep.subr.bf16.mxu0 0
      %2675 = vmatpush2.bf16.msra.mxu0 %v2557
      %2676 = vmatprep.subr.bf16.mxu0 0
      %2677 = vmatpush2.bf16.msra.mxu0 %v2556
      %2678 = vmatprep.subr.bf16.mxu0 0
      %2679 = vmatpush2.bf16.msra.mxu0 %v2555
      %2680 = vmatprep.subr.bf16.mxu0 0
      %2681 = vmatpush2.bf16.msra.mxu0 %v2554
      %2682 = vmatprep.mubr.bf16.mxu0 %v2323
      %2683 = vmatmul.mubr.bf16.gmra.mxu0 %v2322
      %v2684 = vpop.f32.mrf.mxu0
      %v2685 = vadd.f32 %v2036, %v2684
      %v2686 = vpop.f32.mrf.mxu0
      %v2687 = vpop.f32.mrf.mxu0
      %v2688 = vadd.f32 %v2039, %v2687
      %v2689 = vpop.f32.mrf.mxu0
      %2690 = vmatprep.mubr.bf16.mxu0 %v2327
      %2691 = vmatmul.mubr.bf16.gmra.mxu0 %v2326
      %v2692 = vpop.f32.mrf.mxu0
      %v2693 = vadd.f32 %v2044, %v2692
      %v2694 = vpop.f32.mrf.mxu0
      %v2695 = vpop.f32.mrf.mxu0
      %v2696 = vadd.f32 %v2047, %v2695
      %v2697 = vpop.f32.mrf.mxu0
      %2698 = vmatprep.mubr.bf16.mxu0 %v2331
      %2699 = vmatmul.mubr.bf16.gmra.mxu0 %v2330
      %v2700 = vpop.f32.mrf.mxu0
      %v2701 = vadd.f32 %v2052, %v2700
      %v2702 = vpop.f32.mrf.mxu0
      %v2703 = vpop.f32.mrf.mxu0
      %v2704 = vadd.f32 %v2055, %v2703
      %v2705 = vpop.f32.mrf.mxu0
      %2706 = vmatprep.mubr.bf16.mxu0 %v2335
      %2707 = vmatmul.mubr.bf16.gmra.mxu0 %v2334
      %v2708 = vpop.f32.mrf.mxu0
      %v2709 = vadd.f32 %v2060, %v2708
      %v2710 = vpop.f32.mrf.mxu0
      %v2711 = vpop.f32.mrf.mxu0
      %v2712 = vadd.f32 %v2063, %v2711
      %v2713 = vpop.f32.mrf.mxu0
      %2714 = vmatprep.mubr.bf16.mxu0 %v2339
      %2715 = vmatmul.mubr.bf16.gmra.mxu0 %v2338
      %v2716 = vpop.f32.mrf.mxu0
      %v2717 = vadd.f32 %v2068, %v2716
      %v2718 = vpop.f32.mrf.mxu0
      %v2719 = vpop.f32.mrf.mxu0
      %v2720 = vadd.f32 %v2071, %v2719
      %v2721 = vpop.f32.mrf.mxu0
      %2722 = vmatprep.mubr.bf16.mxu0 %v2343
      %2723 = vmatmul.mubr.bf16.gmra.mxu0 %v2342
      %v2724 = vpop.f32.mrf.mxu0
      %v2725 = vadd.f32 %v2076, %v2724
      %v2726 = vpop.f32.mrf.mxu0
      %v2727 = vpop.f32.mrf.mxu0
      %v2728 = vadd.f32 %v2079, %v2727
      %v2729 = vpop.f32.mrf.mxu0
      %2730 = vmatprep.mubr.bf16.mxu0 %v2347
      %2731 = vmatmul.mubr.bf16.gmra.mxu0 %v2346
      %v2732 = vpop.f32.mrf.mxu0
      %v2733 = vadd.f32 %v2084, %v2732
      %v2734 = vpop.f32.mrf.mxu0
      %v2735 = vpop.f32.mrf.mxu0
      %v2736 = vadd.f32 %v2087, %v2735
      %v2737 = vpop.f32.mrf.mxu0
      %2738 = vmatprep.mubr.bf16.mxu0 %v2351
      %2739 = vmatmul.mubr.bf16.gmra.mxu0 %v2350
      %v2740 = vpop.f32.mrf.mxu0
      %v2741 = vadd.f32 %v2092, %v2740
      %v2742 = vpop.f32.mrf.mxu0
      %v2743 = vpop.f32.mrf.mxu0
      %v2744 = vadd.f32 %v2095, %v2743
      %v2745 = vpop.f32.mrf.mxu0
      %2746 = vmatprep.mubr.bf16.mxu0 %v2355
      %2747 = vmatmul.mubr.bf16.gmra.mxu0 %v2354
      %v2748 = vpop.f32.mrf.mxu0
      %v2749 = vadd.f32 %v2100, %v2748
      %v2750 = vpop.f32.mrf.mxu0
      %v2751 = vpop.f32.mrf.mxu0
      %v2752 = vadd.f32 %v2103, %v2751
      %v2753 = vpop.f32.mrf.mxu0
      %2754 = vmatprep.mubr.bf16.mxu0 %v2359
      %2755 = vmatmul.mubr.bf16.gmra.mxu0 %v2358
      %v2756 = vpop.f32.mrf.mxu0
      %v2757 = vadd.f32 %v2108, %v2756
      %v2758 = vpop.f32.mrf.mxu0
      %v2759 = vpop.f32.mrf.mxu0
      %v2760 = vadd.f32 %v2111, %v2759
      %v2761 = vpop.f32.mrf.mxu0
      %2762 = vmatprep.mubr.bf16.mxu0 %v2363
      %2763 = vmatmul.mubr.bf16.gmra.mxu0 %v2362
      %v2764 = vpop.f32.mrf.mxu0
      %v2765 = vadd.f32 %v2116, %v2764
      %v2766 = vpop.f32.mrf.mxu0
      %v2767 = vpop.f32.mrf.mxu0
      %v2768 = vadd.f32 %v2119, %v2767
      %v2769 = vpop.f32.mrf.mxu0
      %2770 = vmatprep.mubr.bf16.mxu0 %v2367
      %2771 = vmatmul.mubr.bf16.gmra.mxu0 %v2366
      %v2772 = vpop.f32.mrf.mxu0
      %v2773 = vadd.f32 %v2124, %v2772
      %v2774 = vpop.f32.mrf.mxu0
      %v2775 = vpop.f32.mrf.mxu0
      %v2776 = vadd.f32 %v2127, %v2775
      %v2777 = vpop.f32.mrf.mxu0
      %2778 = vmatprep.mubr.bf16.mxu0 %v2371
      %2779 = vmatmul.mubr.bf16.gmra.mxu0 %v2370
      %v2780 = vpop.f32.mrf.mxu0
      %v2781 = vadd.f32 %v2132, %v2780
      %v2782 = vpop.f32.mrf.mxu0
      %v2783 = vpop.f32.mrf.mxu0
      %v2784 = vadd.f32 %v2135, %v2783
      %v2785 = vpop.f32.mrf.mxu0
      %2786 = vmatprep.mubr.bf16.mxu0 %v2375
      %2787 = vmatmul.mubr.bf16.gmra.mxu0 %v2374
      %v2788 = vpop.f32.mrf.mxu0
      %v2789 = vadd.f32 %v2140, %v2788
      %v2790 = vpop.f32.mrf.mxu0
      %v2791 = vpop.f32.mrf.mxu0
      %v2792 = vadd.f32 %v2143, %v2791
      %v2793 = vpop.f32.mrf.mxu0
      %2794 = vmatprep.mubr.bf16.mxu0 %v2379
      %2795 = vmatmul.mubr.bf16.gmra.mxu0 %v2378
      %v2796 = vpop.f32.mrf.mxu0
      %v2797 = vadd.f32 %v2148, %v2796
      %v2798 = vpop.f32.mrf.mxu0
      %v2799 = vpop.f32.mrf.mxu0
      %v2800 = vadd.f32 %v2151, %v2799
      %v2801 = vpop.f32.mrf.mxu0
      %2802 = vmatprep.mubr.bf16.mxu0 %v2383
      %2803 = vmatmul.mubr.bf16.gmra.mxu0 %v2382
      %v2804 = vpop.f32.mrf.mxu0
      %v2805 = vadd.f32 %v2156, %v2804
      %v2806 = vpop.f32.mrf.mxu0
      %v2807 = vpop.f32.mrf.mxu0
      %v2808 = vadd.f32 %v2159, %v2807
      %v2809 = vpop.f32.mrf.mxu0
      %2810 = vdwg.mxu0
      %2811 = vmatprep.subr.bf16.mxu0 0
      %2812 = vmatpush1.bf16.msra.mxu0 %v2569
      %2813 = vmatprep.subr.bf16.mxu0 0
      %2814 = vmatpush1.bf16.msra.mxu0 %v2568
      %2815 = vmatprep.subr.bf16.mxu0 0
      %2816 = vmatpush1.bf16.msra.mxu0 %v2567
      %2817 = vmatprep.subr.bf16.mxu0 0
      %2818 = vmatpush1.bf16.msra.mxu0 %v2566
      %2819 = vmatprep.subr.bf16.mxu0 0
      %2820 = vmatpush1.bf16.msra.mxu0 %v2565
      %2821 = vmatprep.subr.bf16.mxu0 0
      %2822 = vmatpush1.bf16.msra.mxu0 %v2564
      %2823 = vmatprep.subr.bf16.mxu0 0
      %2824 = vmatpush1.bf16.msra.mxu0 %v2563
      %2825 = vmatprep.subr.bf16.mxu0 0
      %2826 = vmatpush1.bf16.msra.mxu0 %v2562
      %2827 = vmatprep.subr.bf16.mxu0 0
      %2828 = vmatpush2.bf16.msra.mxu0 0
      %2829 = vmatprep.subr.bf16.mxu0 0
      %2830 = vmatpush2.bf16.msra.mxu0 0
      %2831 = vmatprep.subr.bf16.mxu0 0
      %2832 = vmatpush2.bf16.msra.mxu0 0
      %2833 = vmatprep.subr.bf16.mxu0 0
      %2834 = vmatpush2.bf16.msra.mxu0 0
      %2835 = vmatprep.subr.bf16.mxu0 0
      %2836 = vmatpush2.bf16.msra.mxu0 %v2573
      %2837 = vmatprep.subr.bf16.mxu0 0
      %2838 = vmatpush2.bf16.msra.mxu0 %v2572
      %2839 = vmatprep.subr.bf16.mxu0 0
      %2840 = vmatpush2.bf16.msra.mxu0 %v2571
      %2841 = vmatprep.subr.bf16.mxu0 0
      %2842 = vmatpush2.bf16.msra.mxu0 %v2570
      %2843 = vmatprep.mubr.bf16.mxu0 %v2603
      %2844 = vmatmul.mubr.bf16.gmra.mxu0 %v2324
      %v2845 = vpop.f32.mrf.mxu0
      %v2846 = vadd.f32 %v2685, %v2845
      %v2847 = vpop.f32.mrf.mxu0
      %v2848 = vpop.f32.mrf.mxu0
      %v2849 = vadd.f32 %v2688, %v2848
      %v2850 = vpop.f32.mrf.mxu0
      %2851 = vmatprep.mubr.bf16.mxu0 %v2606
      %2852 = vmatmul.mubr.bf16.gmra.mxu0 %v2328
      %v2853 = vpop.f32.mrf.mxu0
      %v2854 = vadd.f32 %v2693, %v2853
      %v2855 = vpop.f32.mrf.mxu0
      %v2856 = vpop.f32.mrf.mxu0
      %v2857 = vadd.f32 %v2696, %v2856
      %v2858 = vpop.f32.mrf.mxu0
      %2859 = vmatprep.mubr.bf16.mxu0 %v2609
      %2860 = vmatmul.mubr.bf16.gmra.mxu0 %v2332
      %v2861 = vpop.f32.mrf.mxu0
      %v2862 = vadd.f32 %v2701, %v2861
      %v2863 = vpop.f32.mrf.mxu0
      %v2864 = vpop.f32.mrf.mxu0
      %v2865 = vadd.f32 %v2704, %v2864
      %v2866 = vpop.f32.mrf.mxu0
      %2867 = vmatprep.mubr.bf16.mxu0 %v2612
      %2868 = vmatmul.mubr.bf16.gmra.mxu0 %v2336
      %v2869 = vpop.f32.mrf.mxu0
      %v2870 = vadd.f32 %v2709, %v2869
      %v2871 = vpop.f32.mrf.mxu0
      %v2872 = vpop.f32.mrf.mxu0
      %v2873 = vadd.f32 %v2712, %v2872
      %v2874 = vpop.f32.mrf.mxu0
      %2875 = vmatprep.mubr.bf16.mxu0 %v2615
      %2876 = vmatmul.mubr.bf16.gmra.mxu0 %v2340
      %v2877 = vpop.f32.mrf.mxu0
      %v2878 = vadd.f32 %v2717, %v2877
      %v2879 = vpop.f32.mrf.mxu0
      %v2880 = vpop.f32.mrf.mxu0
      %v2881 = vadd.f32 %v2720, %v2880
      %v2882 = vpop.f32.mrf.mxu0
      %2883 = vmatprep.mubr.bf16.mxu0 %v2618
      %2884 = vmatmul.mubr.bf16.gmra.mxu0 %v2344
      %v2885 = vpop.f32.mrf.mxu0
      %v2886 = vadd.f32 %v2725, %v2885
      %v2887 = vpop.f32.mrf.mxu0
      %v2888 = vpop.f32.mrf.mxu0
      %v2889 = vadd.f32 %v2728, %v2888
      %v2890 = vpop.f32.mrf.mxu0
      %2891 = vmatprep.mubr.bf16.mxu0 %v2621
      %2892 = vmatmul.mubr.bf16.gmra.mxu0 %v2348
      %v2893 = vpop.f32.mrf.mxu0
      %v2894 = vadd.f32 %v2733, %v2893
      %v2895 = vpop.f32.mrf.mxu0
      %v2896 = vpop.f32.mrf.mxu0
      %v2897 = vadd.f32 %v2736, %v2896
      %v2898 = vpop.f32.mrf.mxu0
      %2899 = vmatprep.mubr.bf16.mxu0 %v2624
      %2900 = vmatmul.mubr.bf16.gmra.mxu0 %v2352
      %v2901 = vpop.f32.mrf.mxu0
      %v2902 = vadd.f32 %v2741, %v2901
      %v2903 = vpop.f32.mrf.mxu0
      %v2904 = vpop.f32.mrf.mxu0
      %v2905 = vadd.f32 %v2744, %v2904
      %v2906 = vpop.f32.mrf.mxu0
      %2907 = vmatprep.mubr.bf16.mxu0 %v2627
      %2908 = vmatmul.mubr.bf16.gmra.mxu0 %v2356
      %v2909 = vpop.f32.mrf.mxu0
      %v2910 = vadd.f32 %v2749, %v2909
      %v2911 = vpop.f32.mrf.mxu0
      %v2912 = vpop.f32.mrf.mxu0
      %v2913 = vadd.f32 %v2752, %v2912
      %v2914 = vpop.f32.mrf.mxu0
      %2915 = vmatprep.mubr.bf16.mxu0 %v2630
      %2916 = vmatmul.mubr.bf16.gmra.mxu0 %v2360
      %v2917 = vpop.f32.mrf.mxu0
      %v2918 = vadd.f32 %v2757, %v2917
      %v2919 = vpop.f32.mrf.mxu0
      %v2920 = vpop.f32.mrf.mxu0
      %v2921 = vadd.f32 %v2760, %v2920
      %v2922 = vpop.f32.mrf.mxu0
      %2923 = vmatprep.mubr.bf16.mxu0 %v2633
      %2924 = vmatmul.mubr.bf16.gmra.mxu0 %v2364
      %v2925 = vpop.f32.mrf.mxu0
      %v2926 = vadd.f32 %v2765, %v2925
      %v2927 = vpop.f32.mrf.mxu0
      %v2928 = vpop.f32.mrf.mxu0
      %v2929 = vadd.f32 %v2768, %v2928
      %v2930 = vpop.f32.mrf.mxu0
      %2931 = vmatprep.mubr.bf16.mxu0 %v2636
      %2932 = vmatmul.mubr.bf16.gmra.mxu0 %v2368
      %v2933 = vpop.f32.mrf.mxu0
      %v2934 = vadd.f32 %v2773, %v2933
      %v2935 = vpop.f32.mrf.mxu0
      %v2936 = vpop.f32.mrf.mxu0
      %v2937 = vadd.f32 %v2776, %v2936
      %v2938 = vpop.f32.mrf.mxu0
      %2939 = vmatprep.mubr.bf16.mxu0 %v2639
      %2940 = vmatmul.mubr.bf16.gmra.mxu0 %v2372
      %v2941 = vpop.f32.mrf.mxu0
      %v2942 = vadd.f32 %v2781, %v2941
      %v2943 = vpop.f32.mrf.mxu0
      %v2944 = vpop.f32.mrf.mxu0
      %v2945 = vadd.f32 %v2784, %v2944
      %v2946 = vpop.f32.mrf.mxu0
      %2947 = vmatprep.mubr.bf16.mxu0 %v2642
      %2948 = vmatmul.mubr.bf16.gmra.mxu0 %v2376
      %v2949 = vpop.f32.mrf.mxu0
      %v2950 = vadd.f32 %v2789, %v2949
      %v2951 = vpop.f32.mrf.mxu0
      %v2952 = vpop.f32.mrf.mxu0
      %v2953 = vadd.f32 %v2792, %v2952
      %v2954 = vpop.f32.mrf.mxu0
      %2955 = vmatprep.mubr.bf16.mxu0 %v2645
      %2956 = vmatmul.mubr.bf16.gmra.mxu0 %v2380
      %v2957 = vpop.f32.mrf.mxu0
      %v2958 = vadd.f32 %v2797, %v2957
      %v2959 = vpop.f32.mrf.mxu0
      %v2960 = vpop.f32.mrf.mxu0
      %v2961 = vadd.f32 %v2800, %v2960
      %v2962 = vpop.f32.mrf.mxu0
      %2963 = vmatprep.mubr.bf16.mxu0 %v2648
      %2964 = vmatmul.mubr.bf16.gmra.mxu0 %v2384
      %v2965 = vpop.f32.mrf.mxu0
      %v2966 = vadd.f32 %v2805, %v2965
      %v2967 = vpop.f32.mrf.mxu0
      %v2968 = vpop.f32.mrf.mxu0
      %v2969 = vadd.f32 %v2808, %v2968
      %v2970 = vpop.f32.mrf.mxu0
      %2971 = vdwg.mxu0
      %v2972 = vld [vmem:[%s1 + $0x1c0] sm:$0xf]
      %v2973 = vld [vmem:[%s1 + $0x1c4] sm:$0xf]
      %v2974 = vld [vmem:[%s1 + $0x1c8] sm:$0xf]
      %v2975 = vld [vmem:[%s1 + $0x1cc] sm:$0xf]
      %v2976 = vld [vmem:[%s1 + $0x1d0] sm:$0xf]
      %v2977 = vld [vmem:[%s1 + $0x1d4] sm:$0xf]
      %v2978 = vld [vmem:[%s1 + $0x1d8] sm:$0xf]
      %v2979 = vld [vmem:[%s1 + $0x1dc] sm:$0xf]
      %v2980 = vunpack.c.l.b16 %v1170
      %v2981 = vunpack.c.l.b16 %v1173
      %v2982 = vunpack.c.l.b16 %v1176
      %v2983 = vunpack.c.l.b16 %v1179
      %v2984 = vunpack.c.l.b16 %v1183
      %v2985 = vunpack.c.l.b16 %v1186
      %v2986 = vunpack.c.l.b16 %v1189
      %v2987 = vunpack.c.l.b16 %v1192
      %v2988 = vunpack.c.l.b16 %v1196
      %v2989 = vunpack.c.l.b16 %v1199
      %v2990 = vunpack.c.l.b16 %v1202
      %v2991 = vunpack.c.l.b16 %v1205
      %v2992 = vunpack.c.l.b16 %v1209
      %v2993 = vunpack.c.l.b16 %v1212
      %v2994 = vunpack.c.l.b16 %v1215
      %v2995 = vunpack.c.l.b16 %v1218
      %v2996 = vunpack.c.l.b16 %v1222
      %v2997 = vunpack.c.l.b16 %v1225
      %v2998 = vunpack.c.l.b16 %v1228
      %v2999 = vunpack.c.l.b16 %v1231
      %v3000 = vunpack.c.l.b16 %v1235
      %v3001 = vunpack.c.l.b16 %v1238
      %v3002 = vunpack.c.l.b16 %v1241
      %v3003 = vunpack.c.l.b16 %v1244
      %v3004 = vunpack.c.l.b16 %v1248
      %v3005 = vunpack.c.l.b16 %v1251
      %v3006 = vunpack.c.l.b16 %v1254
      %v3007 = vunpack.c.l.b16 %v1257
      %v3008 = vunpack.c.l.b16 %v1261
      %v3009 = vunpack.c.l.b16 %v1264
      %v3010 = vunpack.c.l.b16 %v1267
      %v3011 = vunpack.c.l.b16 %v1270
      %v3012 = vpack.c.b16 %v2981, %v2980
      %v3013 = vpack.c.b16 %v2983, %v2982
      %v3014 = vpack.c.b16 %v2985, %v2984
      %v3015 = vpack.c.b16 %v2987, %v2986
      %v3016 = vpack.c.b16 %v2989, %v2988
      %v3017 = vpack.c.b16 %v2991, %v2990
      %v3018 = vpack.c.b16 %v2993, %v2992
      %v3019 = vpack.c.b16 %v2995, %v2994
      %v3020 = vpack.c.b16 %v2997, %v2996
      %v3021 = vpack.c.b16 %v2999, %v2998
      %v3022 = vpack.c.b16 %v3001, %v3000
      %v3023 = vpack.c.b16 %v3003, %v3002
      %v3024 = vpack.c.b16 %v3005, %v3004
      %v3025 = vpack.c.b16 %v3007, %v3006
      %v3026 = vpack.c.b16 %v3009, %v3008
      %v3027 = vpack.c.b16 %v3011, %v3010
      %v3036 = vunpack.c.l.b16 %v2972
      %v3037 = vunpack.c.l.b16 %v2973
      %v3038 = vunpack.c.l.b16 %v2974
      %v3039 = vunpack.c.l.b16 %v2975
      %v3040 = vunpack.c.l.b16 %v2976
      %v3041 = vunpack.c.l.b16 %v2977
      %v3042 = vunpack.c.l.b16 %v2978
      %v3043 = vunpack.c.l.b16 %v2979
      %v3044 = vpack.c.b16 %v3037, %v3036
      %v3045 = vpack.c.b16 %v3039, %v3038
      %v3046 = vpack.c.b16 %v3041, %v3040
      %v3047 = vpack.c.b16 %v3043, %v3042
      %v3053 = vsel %vm1791, %v3012, 0
      %v3056 = vsel %vm1791, %v3013, 0
      %v3059 = vsel %vm1791, %v3014, 0
      %v3062 = vsel %vm1791, %v3015, 0
      %v3065 = vsel %vm1791, %v3016, 0
      %v3068 = vsel %vm1791, %v3017, 0
      %v3071 = vsel %vm1791, %v3018, 0
      %v3074 = vsel %vm1791, %v3019, 0
      %v3077 = vsel %vm1791, %v3020, 0
      %v3080 = vsel %vm1791, %v3021, 0
      %v3083 = vsel %vm1791, %v3022, 0
      %v3086 = vsel %vm1791, %v3023, 0
      %v3089 = vsel %vm1791, %v3024, 0
      %v3092 = vsel %vm1791, %v3025, 0
      %v3095 = vsel %vm1791, %v3026, 0
      %v3098 = vsel %vm1791, %v3027, 0
      %3100 = vmatprep.subr.bf16.mxu0 0
      %3101 = vmatpush1.bf16.msra.mxu0 0
      %3102 = vmatprep.subr.bf16.mxu0 0
      %3103 = vmatpush1.bf16.msra.mxu0 0
      %3104 = vmatprep.subr.bf16.mxu0 0
      %3105 = vmatpush1.bf16.msra.mxu0 0
      %3106 = vmatprep.subr.bf16.mxu0 0
      %3107 = vmatpush1.bf16.msra.mxu0 0
      %3108 = vmatprep.subr.bf16.mxu0 0
      %3109 = vmatpush1.bf16.msra.mxu0 %v3047
      %3110 = vmatprep.subr.bf16.mxu0 0
      %3111 = vmatpush1.bf16.msra.mxu0 %v3046
      %3112 = vmatprep.subr.bf16.mxu0 0
      %3113 = vmatpush1.bf16.msra.mxu0 %v3045
      %3114 = vmatprep.subr.bf16.mxu0 0
      %3115 = vmatpush1.bf16.msra.mxu0 %v3044
      %3116 = vmatprep.subr.bf16.mxu0 0
      %3117 = vmatpush2.bf16.msra.mxu0 0
      %3118 = vmatprep.subr.bf16.mxu0 0
      %3119 = vmatpush2.bf16.msra.mxu0 0
      %3120 = vmatprep.subr.bf16.mxu0 0
      %3121 = vmatpush2.bf16.msra.mxu0 0
      %3122 = vmatprep.subr.bf16.mxu0 0
      %3123 = vmatpush2.bf16.msra.mxu0 0
      %3124 = vmatprep.subr.bf16.mxu0 0
      %3125 = vmatpush2.bf16.msra.mxu0 0
      %3126 = vmatprep.subr.bf16.mxu0 0
      %3127 = vmatpush2.bf16.msra.mxu0 0
      %3128 = vmatprep.subr.bf16.mxu0 0
      %3129 = vmatpush2.bf16.msra.mxu0 0
      %3130 = vmatprep.subr.bf16.mxu0 0
      %3131 = vmatpush2.bf16.msra.mxu0 0
      %3132 = vmatprep.mubr.bf16.mxu0 0
      %3133 = vmatmul.mubr.bf16.gmra.mxu0 %v3053
      %v3134 = vpop.f32.mrf.mxu0
      %v3135 = vadd.f32 0.0, %v3134
      %v3136 = vpop.f32.mrf.mxu0
      %v3137 = vpop.f32.mrf.mxu0
      %v3138 = vadd.f32 0.0, %v3137
      %v3139 = vpop.f32.mrf.mxu0
      %3140 = vmatprep.mubr.bf16.mxu0 0
      %3141 = vmatmul.mubr.bf16.gmra.mxu0 %v3056
      %v3142 = vpop.f32.mrf.mxu0
      %v3143 = vadd.f32 0.0, %v3142
      %v3144 = vpop.f32.mrf.mxu0
      %v3145 = vpop.f32.mrf.mxu0
      %v3146 = vadd.f32 0.0, %v3145
      %v3147 = vpop.f32.mrf.mxu0
      %3148 = vmatprep.mubr.bf16.mxu0 0
      %3149 = vmatmul.mubr.bf16.gmra.mxu0 %v3059
      %v3150 = vpop.f32.mrf.mxu0
      %v3151 = vadd.f32 0.0, %v3150
      %v3152 = vpop.f32.mrf.mxu0
      %v3153 = vpop.f32.mrf.mxu0
      %v3154 = vadd.f32 0.0, %v3153
      %v3155 = vpop.f32.mrf.mxu0
      %3156 = vmatprep.mubr.bf16.mxu0 0
      %3157 = vmatmul.mubr.bf16.gmra.mxu0 %v3062
      %v3158 = vpop.f32.mrf.mxu0
      %v3159 = vadd.f32 0.0, %v3158
      %v3160 = vpop.f32.mrf.mxu0
      %v3161 = vpop.f32.mrf.mxu0
      %v3162 = vadd.f32 0.0, %v3161
      %v3163 = vpop.f32.mrf.mxu0
      %3164 = vmatprep.mubr.bf16.mxu0 0
      %3165 = vmatmul.mubr.bf16.gmra.mxu0 %v3065
      %v3166 = vpop.f32.mrf.mxu0
      %v3167 = vadd.f32 0.0, %v3166
      %v3168 = vpop.f32.mrf.mxu0
      %v3169 = vpop.f32.mrf.mxu0
      %v3170 = vadd.f32 0.0, %v3169
      %v3171 = vpop.f32.mrf.mxu0
      %3172 = vmatprep.mubr.bf16.mxu0 0
      %3173 = vmatmul.mubr.bf16.gmra.mxu0 %v3068
      %v3174 = vpop.f32.mrf.mxu0
      %v3175 = vadd.f32 0.0, %v3174
      %v3176 = vpop.f32.mrf.mxu0
      %v3177 = vpop.f32.mrf.mxu0
      %v3178 = vadd.f32 0.0, %v3177
      %v3179 = vpop.f32.mrf.mxu0
      %3180 = vmatprep.mubr.bf16.mxu0 0
      %3181 = vmatmul.mubr.bf16.gmra.mxu0 %v3071
      %v3182 = vpop.f32.mrf.mxu0
      %v3183 = vadd.f32 0.0, %v3182
      %v3184 = vpop.f32.mrf.mxu0
      %v3185 = vpop.f32.mrf.mxu0
      %v3186 = vadd.f32 0.0, %v3185
      %v3187 = vpop.f32.mrf.mxu0
      %3188 = vmatprep.mubr.bf16.mxu0 0
      %3189 = vmatmul.mubr.bf16.gmra.mxu0 %v3074
      %v3190 = vpop.f32.mrf.mxu0
      %v3191 = vadd.f32 0.0, %v3190
      %v3192 = vpop.f32.mrf.mxu0
      %v3193 = vpop.f32.mrf.mxu0
      %v3194 = vadd.f32 0.0, %v3193
      %v3195 = vpop.f32.mrf.mxu0
      %3196 = vmatprep.mubr.bf16.mxu0 0
      %3197 = vmatmul.mubr.bf16.gmra.mxu0 %v3077
      %v3198 = vpop.f32.mrf.mxu0
      %v3199 = vadd.f32 0.0, %v3198
      %v3200 = vpop.f32.mrf.mxu0
      %v3201 = vpop.f32.mrf.mxu0
      %v3202 = vadd.f32 0.0, %v3201
      %v3203 = vpop.f32.mrf.mxu0
      %3204 = vmatprep.mubr.bf16.mxu0 0
      %3205 = vmatmul.mubr.bf16.gmra.mxu0 %v3080
      %v3206 = vpop.f32.mrf.mxu0
      %v3207 = vadd.f32 0.0, %v3206
      %v3208 = vpop.f32.mrf.mxu0
      %v3209 = vpop.f32.mrf.mxu0
      %v3210 = vadd.f32 0.0, %v3209
      %v3211 = vpop.f32.mrf.mxu0
      %3212 = vmatprep.mubr.bf16.mxu0 0
      %3213 = vmatmul.mubr.bf16.gmra.mxu0 %v3083
      %v3214 = vpop.f32.mrf.mxu0
      %v3215 = vadd.f32 0.0, %v3214
      %v3216 = vpop.f32.mrf.mxu0
      %v3217 = vpop.f32.mrf.mxu0
      %v3218 = vadd.f32 0.0, %v3217
      %v3219 = vpop.f32.mrf.mxu0
      %3220 = vmatprep.mubr.bf16.mxu0 0
      %3221 = vmatmul.mubr.bf16.gmra.mxu0 %v3086
      %v3222 = vpop.f32.mrf.mxu0
      %v3223 = vadd.f32 0.0, %v3222
      %v3224 = vpop.f32.mrf.mxu0
      %v3225 = vpop.f32.mrf.mxu0
      %v3226 = vadd.f32 0.0, %v3225
      %v3227 = vpop.f32.mrf.mxu0
      %3228 = vmatprep.mubr.bf16.mxu0 0
      %3229 = vmatmul.mubr.bf16.gmra.mxu0 %v3089
      %v3230 = vpop.f32.mrf.mxu0
      %v3231 = vadd.f32 0.0, %v3230
      %v3232 = vpop.f32.mrf.mxu0
      %v3233 = vpop.f32.mrf.mxu0
      %v3234 = vadd.f32 0.0, %v3233
      %v3235 = vpop.f32.mrf.mxu0
      %3236 = vmatprep.mubr.bf16.mxu0 0
      %3237 = vmatmul.mubr.bf16.gmra.mxu0 %v3092
      %v3238 = vpop.f32.mrf.mxu0
      %v3239 = vadd.f32 0.0, %v3238
      %v3240 = vpop.f32.mrf.mxu0
      %v3241 = vpop.f32.mrf.mxu0
      %v3242 = vadd.f32 0.0, %v3241
      %v3243 = vpop.f32.mrf.mxu0
      %3244 = vmatprep.mubr.bf16.mxu0 0
      %3245 = vmatmul.mubr.bf16.gmra.mxu0 %v3095
      %v3246 = vpop.f32.mrf.mxu0
      %v3247 = vadd.f32 0.0, %v3246
      %v3248 = vpop.f32.mrf.mxu0
      %v3249 = vpop.f32.mrf.mxu0
      %v3250 = vadd.f32 0.0, %v3249
      %v3251 = vpop.f32.mrf.mxu0
      %3252 = vmatprep.mubr.bf16.mxu0 0
      %3253 = vmatmul.mubr.bf16.gmra.mxu0 %v3098
      %v3254 = vpop.f32.mrf.mxu0
      %v3255 = vadd.f32 0.0, %v3254
      %v3256 = vpop.f32.mrf.mxu0
      %v3257 = vpop.f32.mrf.mxu0
      %v3258 = vadd.f32 0.0, %v3257
      %v3259 = vpop.f32.mrf.mxu0
      %3260 = vdwg.mxu0
      %v3261 = vadd.f32 %v2846, %v3135
      %v3262 = vadd.f32 %v2849, %v3138
      %v3263 = vadd.f32 %v2854, %v3143
      %v3264 = vadd.f32 %v2857, %v3146
      %v3265 = vadd.f32 %v2862, %v3151
      %v3266 = vadd.f32 %v2865, %v3154
      %v3267 = vadd.f32 %v2870, %v3159
      %v3268 = vadd.f32 %v2873, %v3162
      %v3269 = vadd.f32 %v2878, %v3167
      %v3270 = vadd.f32 %v2881, %v3170
      %v3271 = vadd.f32 %v2886, %v3175
      %v3272 = vadd.f32 %v2889, %v3178
      %v3273 = vadd.f32 %v2894, %v3183
      %v3274 = vadd.f32 %v2897, %v3186
      %v3275 = vadd.f32 %v2902, %v3191
      %v3276 = vadd.f32 %v2905, %v3194
      %v3277 = vadd.f32 %v2910, %v3199
      %v3278 = vadd.f32 %v2913, %v3202
      %v3279 = vadd.f32 %v2918, %v3207
      %v3280 = vadd.f32 %v2921, %v3210
      %v3281 = vadd.f32 %v2926, %v3215
      %v3282 = vadd.f32 %v2929, %v3218
      %v3283 = vadd.f32 %v2934, %v3223
      %v3284 = vadd.f32 %v2937, %v3226
      %v3285 = vadd.f32 %v2942, %v3231
      %v3286 = vadd.f32 %v2945, %v3234
      %v3287 = vadd.f32 %v2950, %v3239
      %v3288 = vadd.f32 %v2953, %v3242
      %v3289 = vadd.f32 %v2958, %v3247
      %v3290 = vadd.f32 %v2961, %v3250
      %v3291 = vadd.f32 %v2966, %v3255
      %v3292 = vadd.f32 %v2969, %v3258
      %v3293 = vld [vmem:[%s2] sm:$0x1]
      %v3295 = vlaneseq
      %v3296 = vshrl.u32 %v3295, 7
      %v3297 = vsub.s32 0, %v3296
      %v3298 = vrot.slane %v3293, %v3297
      %v3300 = vadd.f32 %v3261, %v3298
      %v3301 = vadd.f32 %v3262, %v3298
      %v3302 = vadd.f32 %v3263, %v3298
      %v3303 = vadd.f32 %v3264, %v3298
      %v3304 = vadd.f32 %v3265, %v3298
      %v3305 = vadd.f32 %v3266, %v3298
      %v3306 = vadd.f32 %v3267, %v3298
      %v3307 = vadd.f32 %v3268, %v3298
      %v3308 = vadd.f32 %v3269, %v3298
      %v3309 = vadd.f32 %v3270, %v3298
      %v3310 = vadd.f32 %v3271, %v3298
      %v3311 = vadd.f32 %v3272, %v3298
      %v3312 = vadd.f32 %v3273, %v3298
      %v3313 = vadd.f32 %v3274, %v3298
      %v3314 = vadd.f32 %v3275, %v3298
      %v3315 = vadd.f32 %v3276, %v3298
      %v3316 = vadd.f32 %v3277, %v3298
      %v3317 = vadd.f32 %v3278, %v3298
      %v3318 = vadd.f32 %v3279, %v3298
      %v3319 = vadd.f32 %v3280, %v3298
      %v3320 = vadd.f32 %v3281, %v3298
      %v3321 = vadd.f32 %v3282, %v3298
      %v3322 = vadd.f32 %v3283, %v3298
      %v3323 = vadd.f32 %v3284, %v3298
      %v3324 = vadd.f32 %v3285, %v3298
      %v3325 = vadd.f32 %v3286, %v3298
      %v3326 = vadd.f32 %v3287, %v3298
      %v3327 = vadd.f32 %v3288, %v3298
      %v3328 = vadd.f32 %v3289, %v3298
      %v3329 = vadd.f32 %v3290, %v3298
      %v3330 = vadd.f32 %v3291, %v3298
      %v3331 = vadd.f32 %v3292, %v3298
      %v3332 = vxor.u32 %v3300, 2147483648
      %v3333 = vxor.u32 %v3301, 2147483648
      %v3334 = vxor.u32 %v3302, 2147483648
      %v3335 = vxor.u32 %v3303, 2147483648
      %v3336 = vxor.u32 %v3304, 2147483648
      %v3337 = vxor.u32 %v3305, 2147483648
      %v3338 = vxor.u32 %v3306, 2147483648
      %v3339 = vxor.u32 %v3307, 2147483648
      %v3340 = vxor.u32 %v3308, 2147483648
      %v3341 = vxor.u32 %v3309, 2147483648
      %v3342 = vxor.u32 %v3310, 2147483648
      %v3343 = vxor.u32 %v3311, 2147483648
      %v3344 = vxor.u32 %v3312, 2147483648
      %v3345 = vxor.u32 %v3313, 2147483648
      %v3346 = vxor.u32 %v3314, 2147483648
      %v3347 = vxor.u32 %v3315, 2147483648
      %v3348 = vxor.u32 %v3316, 2147483648
      %v3349 = vxor.u32 %v3317, 2147483648
      %v3350 = vxor.u32 %v3318, 2147483648
      %v3351 = vxor.u32 %v3319, 2147483648
      %v3352 = vxor.u32 %v3320, 2147483648
      %v3353 = vxor.u32 %v3321, 2147483648
      %v3354 = vxor.u32 %v3322, 2147483648
      %v3355 = vxor.u32 %v3323, 2147483648
      %v3356 = vxor.u32 %v3324, 2147483648
      %v3357 = vxor.u32 %v3325, 2147483648
      %v3358 = vxor.u32 %v3326, 2147483648
      %v3359 = vxor.u32 %v3327, 2147483648
      %v3360 = vxor.u32 %v3328, 2147483648
      %v3361 = vxor.u32 %v3329, 2147483648
      %v3362 = vxor.u32 %v3330, 2147483648
      %v3363 = vxor.u32 %v3331, 2147483648
      %v3364 = vmul.f32 %v3332, 1.442695
      %v3365 = vpow.pop %v3364
      %v3366 = vmul.f32 %v3333, 1.442695
      %v3367 = vpow.pop %v3366
      %v3368 = vmul.f32 %v3334, 1.442695
      %v3369 = vpow.pop %v3368
      %v3370 = vmul.f32 %v3335, 1.442695
      %v3371 = vpow.pop %v3370
      %v3372 = vmul.f32 %v3336, 1.442695
      %v3373 = vpow.pop %v3372
      %v3374 = vmul.f32 %v3337, 1.442695
      %v3375 = vpow.pop %v3374
      %v3376 = vmul.f32 %v3338, 1.442695
      %v3377 = vpow.pop %v3376
      %v3378 = vmul.f32 %v3339, 1.442695
      %v3379 = vpow.pop %v3378
      %v3380 = vmul.f32 %v3340, 1.442695
      %v3381 = vpow.pop %v3380
      %v3382 = vmul.f32 %v3341, 1.442695
      %v3383 = vpow.pop %v3382
      %v3384 = vmul.f32 %v3342, 1.442695
      %v3385 = vpow.pop %v3384
      %v3386 = vmul.f32 %v3343, 1.442695
      %v3387 = vpow.pop %v3386
      %v3388 = vmul.f32 %v3344, 1.442695
      %v3389 = vpow.pop %v3388
      %v3390 = vmul.f32 %v3345, 1.442695
      %v3391 = vpow.pop %v3390
      %v3392 = vmul.f32 %v3346, 1.442695
      %v3393 = vpow.pop %v3392
      %v3394 = vmul.f32 %v3347, 1.442695
      %v3395 = vpow.pop %v3394
      %v3396 = vmul.f32 %v3348, 1.442695
      %v3397 = vpow.pop %v3396
      %v3398 = vmul.f32 %v3349, 1.442695
      %v3399 = vpow.pop %v3398
      %v3400 = vmul.f32 %v3350, 1.442695
      %v3401 = vpow.pop %v3400
      %v3402 = vmul.f32 %v3351, 1.442695
      %v3403 = vpow.pop %v3402
      %v3404 = vmul.f32 %v3352, 1.442695
      %v3405 = vpow.pop %v3404
      %v3406 = vmul.f32 %v3353, 1.442695
      %v3407 = vpow.pop %v3406
      %v3408 = vmul.f32 %v3354, 1.442695
      %v3409 = vpow.pop %v3408
      %v3410 = vmul.f32 %v3355, 1.442695
      %v3411 = vpow.pop %v3410
      %v3412 = vmul.f32 %v3356, 1.442695
      %v3413 = vpow.pop %v3412
      %v3414 = vmul.f32 %v3357, 1.442695
      %v3415 = vpow.pop %v3414
      %v3416 = vmul.f32 %v3358, 1.442695
      %v3417 = vpow.pop %v3416
      %v3418 = vmul.f32 %v3359, 1.442695
      %v3419 = vpow.pop %v3418
      %v3420 = vmul.f32 %v3360, 1.442695
      %v3421 = vpow.pop %v3420
      %v3422 = vmul.f32 %v3361, 1.442695
      %v3423 = vpow.pop %v3422
      %v3424 = vmul.f32 %v3362, 1.442695
      %v3425 = vpow.pop %v3424
      %v3426 = vmul.f32 %v3363, 1.442695
      %v3427 = vpow.pop %v3426
      %v3428 = vadd.f32 %v3365, 1.0
      %v3429 = vadd.f32 %v3367, 1.0
      %v3430 = vadd.f32 %v3369, 1.0
      %v3431 = vadd.f32 %v3371, 1.0
      %v3432 = vadd.f32 %v3373, 1.0
      %v3433 = vadd.f32 %v3375, 1.0
      %v3434 = vadd.f32 %v3377, 1.0
      %v3435 = vadd.f32 %v3379, 1.0
      %v3436 = vadd.f32 %v3381, 1.0
      %v3437 = vadd.f32 %v3383, 1.0
      %v3438 = vadd.f32 %v3385, 1.0
      %v3439 = vadd.f32 %v3387, 1.0
      %v3440 = vadd.f32 %v3389, 1.0
      %v3441 = vadd.f32 %v3391, 1.0
      %v3442 = vadd.f32 %v3393, 1.0
      %v3443 = vadd.f32 %v3395, 1.0
      %v3444 = vadd.f32 %v3397, 1.0
      %v3445 = vadd.f32 %v3399, 1.0
      %v3446 = vadd.f32 %v3401, 1.0
      %v3447 = vadd.f32 %v3403, 1.0
      %v3448 = vadd.f32 %v3405, 1.0
      %v3449 = vadd.f32 %v3407, 1.0
      %v3450 = vadd.f32 %v3409, 1.0
      %v3451 = vadd.f32 %v3411, 1.0
      %v3452 = vadd.f32 %v3413, 1.0
      %v3453 = vadd.f32 %v3415, 1.0
      %v3454 = vadd.f32 %v3417, 1.0
      %v3455 = vadd.f32 %v3419, 1.0
      %v3456 = vadd.f32 %v3421, 1.0
      %v3457 = vadd.f32 %v3423, 1.0
      %v3458 = vadd.f32 %v3425, 1.0
      %v3459 = vadd.f32 %v3427, 1.0
      %v3460 = vrcp.pop %v3428
      %v3461 = vmul.f32 1.0, %v3460
      %v3462 = vrcp.pop %v3429
      %v3463 = vmul.f32 1.0, %v3462
      %v3464 = vrcp.pop %v3430
      %v3465 = vmul.f32 1.0, %v3464
      %v3466 = vrcp.pop %v3431
      %v3467 = vmul.f32 1.0, %v3466
      %v3468 = vrcp.pop %v3432
      %v3469 = vmul.f32 1.0, %v3468
      %v3470 = vrcp.pop %v3433
      %v3471 = vmul.f32 1.0, %v3470
      %v3472 = vrcp.pop %v3434
      %v3473 = vmul.f32 1.0, %v3472
      %v3474 = vrcp.pop %v3435
      %v3475 = vmul.f32 1.0, %v3474
      %v3476 = vrcp.pop %v3436
      %v3477 = vmul.f32 1.0, %v3476
      %v3478 = vrcp.pop %v3437
      %v3479 = vmul.f32 1.0, %v3478
      %v3480 = vrcp.pop %v3438
      %v3481 = vmul.f32 1.0, %v3480
      %v3482 = vrcp.pop %v3439
      %v3483 = vmul.f32 1.0, %v3482
      %v3484 = vrcp.pop %v3440
      %v3485 = vmul.f32 1.0, %v3484
      %v3486 = vrcp.pop %v3441
      %v3487 = vmul.f32 1.0, %v3486
      %v3488 = vrcp.pop %v3442
      %v3489 = vmul.f32 1.0, %v3488
      %v3490 = vrcp.pop %v3443
      %v3491 = vmul.f32 1.0, %v3490
      %v3492 = vrcp.pop %v3444
      %v3493 = vmul.f32 1.0, %v3492
      %v3494 = vrcp.pop %v3445
      %v3495 = vmul.f32 1.0, %v3494
      %v3496 = vrcp.pop %v3446
      %v3497 = vmul.f32 1.0, %v3496
      %v3498 = vrcp.pop %v3447
      %v3499 = vmul.f32 1.0, %v3498
      %v3500 = vrcp.pop %v3448
      %v3501 = vmul.f32 1.0, %v3500
      %v3502 = vrcp.pop %v3449
      %v3503 = vmul.f32 1.0, %v3502
      %v3504 = vrcp.pop %v3450
      %v3505 = vmul.f32 1.0, %v3504
      %v3506 = vrcp.pop %v3451
      %v3507 = vmul.f32 1.0, %v3506
      %v3508 = vrcp.pop %v3452
      %v3509 = vmul.f32 1.0, %v3508
      %v3510 = vrcp.pop %v3453
      %v3511 = vmul.f32 1.0, %v3510
      %v3512 = vrcp.pop %v3454
      %v3513 = vmul.f32 1.0, %v3512
      %v3514 = vrcp.pop %v3455
      %v3515 = vmul.f32 1.0, %v3514
      %v3516 = vrcp.pop %v3456
      %v3517 = vmul.f32 1.0, %v3516
      %v3518 = vrcp.pop %v3457
      %v3519 = vmul.f32 1.0, %v3518
      %v3520 = vrcp.pop %v3458
      %v3521 = vmul.f32 1.0, %v3520
      %v3522 = vrcp.pop %v3459
      %v3523 = vmul.f32 1.0, %v3522
      %3556 = vrot.lane.b32.xlu0 %v3461, 64
      %v3557 = vpop.permute.xlu0 %3556
      %3558 = vrot.lane.b32.xlu0 %v3463, 64
      %v3559 = vpop.permute.xlu0 %3558
      %3560 = vrot.lane.b32.xlu0 %v3465, 64
      %v3561 = vpop.permute.xlu0 %3560
      %3562 = vrot.lane.b32.xlu0 %v3467, 64
      %v3563 = vpop.permute.xlu0 %3562
      %3564 = vrot.lane.b32.xlu0 %v3469, 64
      %v3565 = vpop.permute.xlu0 %3564
      %3566 = vrot.lane.b32.xlu0 %v3471, 64
      %v3567 = vpop.permute.xlu0 %3566
      %3568 = vrot.lane.b32.xlu0 %v3473, 64
      %v3569 = vpop.permute.xlu0 %3568
      %3570 = vrot.lane.b32.xlu0 %v3475, 64
      %v3571 = vpop.permute.xlu0 %3570
      %3572 = vrot.lane.b32.xlu0 %v3477, 64
      %v3573 = vpop.permute.xlu0 %3572
      %3574 = vrot.lane.b32.xlu0 %v3479, 64
      %v3575 = vpop.permute.xlu0 %3574
      %3576 = vrot.lane.b32.xlu0 %v3481, 64
      %v3577 = vpop.permute.xlu0 %3576
      %3578 = vrot.lane.b32.xlu0 %v3483, 64
      %v3579 = vpop.permute.xlu0 %3578
      %3580 = vrot.lane.b32.xlu0 %v3485, 64
      %v3581 = vpop.permute.xlu0 %3580
      %3582 = vrot.lane.b32.xlu0 %v3487, 64
      %v3583 = vpop.permute.xlu0 %3582
      %3584 = vrot.lane.b32.xlu0 %v3489, 64
      %v3585 = vpop.permute.xlu0 %3584
      %3586 = vrot.lane.b32.xlu0 %v3491, 64
      %v3587 = vpop.permute.xlu0 %3586
      %3588 = vrot.lane.b32.xlu0 %v3493, 64
      %v3589 = vpop.permute.xlu0 %3588
      %3590 = vrot.lane.b32.xlu0 %v3495, 64
      %v3591 = vpop.permute.xlu0 %3590
      %3592 = vrot.lane.b32.xlu0 %v3497, 64
      %v3593 = vpop.permute.xlu0 %3592
      %3594 = vrot.lane.b32.xlu0 %v3499, 64
      %v3595 = vpop.permute.xlu0 %3594
      %3596 = vrot.lane.b32.xlu0 %v3501, 64
      %v3597 = vpop.permute.xlu0 %3596
      %3598 = vrot.lane.b32.xlu0 %v3503, 64
      %v3599 = vpop.permute.xlu0 %3598
      %3600 = vrot.lane.b32.xlu0 %v3505, 64
      %v3601 = vpop.permute.xlu0 %3600
      %3602 = vrot.lane.b32.xlu0 %v3507, 64
      %v3603 = vpop.permute.xlu0 %3602
      %3604 = vrot.lane.b32.xlu0 %v3509, 64
      %v3605 = vpop.permute.xlu0 %3604
      %3606 = vrot.lane.b32.xlu0 %v3511, 64
      %v3607 = vpop.permute.xlu0 %3606
      %3608 = vrot.lane.b32.xlu0 %v3513, 64
      %v3609 = vpop.permute.xlu0 %3608
      %3610 = vrot.lane.b32.xlu0 %v3515, 64
      %v3611 = vpop.permute.xlu0 %3610
      %3612 = vrot.lane.b32.xlu0 %v3517, 64
      %v3613 = vpop.permute.xlu0 %3612
      %3614 = vrot.lane.b32.xlu0 %v3519, 64
      %v3615 = vpop.permute.xlu0 %3614
      %3616 = vrot.lane.b32.xlu0 %v3521, 64
      %v3617 = vpop.permute.xlu0 %3616
      %3618 = vrot.lane.b32.xlu0 %v3523, 64
      %v3619 = vpop.permute.xlu0 %3618
      %v3652 = vmul.f32 %v3300, %v3557
      %v3653 = vmul.f32 %v3301, %v3559
      %v3654 = vmul.f32 %v3302, %v3561
      %v3655 = vmul.f32 %v3303, %v3563
      %v3656 = vmul.f32 %v3304, %v3565
      %v3657 = vmul.f32 %v3305, %v3567
      %v3658 = vmul.f32 %v3306, %v3569
      %v3659 = vmul.f32 %v3307, %v3571
      %v3660 = vmul.f32 %v3308, %v3573
      %v3661 = vmul.f32 %v3309, %v3575
      %v3662 = vmul.f32 %v3310, %v3577
      %v3663 = vmul.f32 %v3311, %v3579
      %v3664 = vmul.f32 %v3312, %v3581
      %v3665 = vmul.f32 %v3313, %v3583
      %v3666 = vmul.f32 %v3314, %v3585
      %v3667 = vmul.f32 %v3315, %v3587
      %v3668 = vmul.f32 %v3316, %v3589
      %v3669 = vmul.f32 %v3317, %v3591
      %v3670 = vmul.f32 %v3318, %v3593
      %v3671 = vmul.f32 %v3319, %v3595
      %v3672 = vmul.f32 %v3320, %v3597
      %v3673 = vmul.f32 %v3321, %v3599
      %v3674 = vmul.f32 %v3322, %v3601
      %v3675 = vmul.f32 %v3323, %v3603
      %v3676 = vmul.f32 %v3324, %v3605
      %v3677 = vmul.f32 %v3325, %v3607
      %v3678 = vmul.f32 %v3326, %v3609
      %v3679 = vmul.f32 %v3327, %v3611
      %v3680 = vmul.f32 %v3328, %v3613
      %v3681 = vmul.f32 %v3329, %v3615
      %v3682 = vmul.f32 %v3330, %v3617
      %v3683 = vmul.f32 %v3331, %v3619
      %v3684 = vpack.c.bf16 %v3653, %v3652
      %v3685 = vpack.c.bf16 %v3655, %v3654
      %v3686 = vpack.c.bf16 %v3657, %v3656
      %v3687 = vpack.c.bf16 %v3659, %v3658
      %v3688 = vpack.c.bf16 %v3661, %v3660
      %v3689 = vpack.c.bf16 %v3663, %v3662
      %v3690 = vpack.c.bf16 %v3665, %v3664
      %v3691 = vpack.c.bf16 %v3667, %v3666
      %v3692 = vpack.c.bf16 %v3669, %v3668
      %v3693 = vpack.c.bf16 %v3671, %v3670
      %v3694 = vpack.c.bf16 %v3673, %v3672
      %v3695 = vpack.c.bf16 %v3675, %v3674
      %v3696 = vpack.c.bf16 %v3677, %v3676
      %v3697 = vpack.c.bf16 %v3679, %v3678
      %v3698 = vpack.c.bf16 %v3681, %v3680
      %v3699 = vpack.c.bf16 %v3683, %v3682
      %v3716 = vunpack.c.l.b16 %v3684
      %v3717 = vunpack.c.h.b16 %v3684
      %v3718 = vunpack.c.l.b16 %v3685
      %v3719 = vunpack.c.h.b16 %v3685
      %v3720 = vunpack.c.l.b16 %v3686
      %v3721 = vunpack.c.h.b16 %v3686
      %v3722 = vunpack.c.l.b16 %v3687
      %v3723 = vunpack.c.h.b16 %v3687
      %v3724 = vunpack.c.l.b16 %v3688
      %v3725 = vunpack.c.h.b16 %v3688
      %v3726 = vunpack.c.l.b16 %v3689
      %v3727 = vunpack.c.h.b16 %v3689
      %v3728 = vunpack.c.l.b16 %v3690
      %v3729 = vunpack.c.h.b16 %v3690
      %v3730 = vunpack.c.l.b16 %v3691
      %v3731 = vunpack.c.h.b16 %v3691
      %v3732 = vunpack.c.l.b16 %v3692
      %v3733 = vunpack.c.h.b16 %v3692
      %v3734 = vunpack.c.l.b16 %v3693
      %v3735 = vunpack.c.h.b16 %v3693
      %v3736 = vunpack.c.l.b16 %v3694
      %v3737 = vunpack.c.h.b16 %v3694
      %v3738 = vunpack.c.l.b16 %v3695
      %v3739 = vunpack.c.h.b16 %v3695
      %v3740 = vunpack.c.l.b16 %v3696
      %v3741 = vunpack.c.h.b16 %v3696
      %v3742 = vunpack.c.l.b16 %v3697
      %v3743 = vunpack.c.h.b16 %v3697
      %v3744 = vunpack.c.l.b16 %v3698
      %v3745 = vunpack.c.h.b16 %v3698
      %v3746 = vunpack.c.l.b16 %v3699
      %v3747 = vunpack.c.h.b16 %v3699
      %v3748 = vpack.c.b16 %v3716, %v3716
      %v3749 = vpack.c.b16 %v3717, %v3717
      %v3750 = vpack.c.b16 %v3718, %v3718
      %v3751 = vpack.c.b16 %v3719, %v3719
      %v3752 = vpack.c.b16 %v3720, %v3720
      %v3753 = vpack.c.b16 %v3721, %v3721
      %v3754 = vpack.c.b16 %v3722, %v3722
      %v3755 = vpack.c.b16 %v3723, %v3723
      %v3756 = vpack.c.b16 %v3724, %v3724
      %v3757 = vpack.c.b16 %v3725, %v3725
      %v3758 = vpack.c.b16 %v3726, %v3726
      %v3759 = vpack.c.b16 %v3727, %v3727
      %v3760 = vpack.c.b16 %v3728, %v3728
      %v3761 = vpack.c.b16 %v3729, %v3729
      %v3762 = vpack.c.b16 %v3730, %v3730
      %v3763 = vpack.c.b16 %v3731, %v3731
      %v3764 = vpack.c.b16 %v3732, %v3732
      %v3765 = vpack.c.b16 %v3733, %v3733
      %v3766 = vpack.c.b16 %v3734, %v3734
      %v3767 = vpack.c.b16 %v3735, %v3735
      %v3768 = vpack.c.b16 %v3736, %v3736
      %v3769 = vpack.c.b16 %v3737, %v3737
      %v3770 = vpack.c.b16 %v3738, %v3738
      %v3771 = vpack.c.b16 %v3739, %v3739
      %v3772 = vpack.c.b16 %v3740, %v3740
      %v3773 = vpack.c.b16 %v3741, %v3741
      %v3774 = vpack.c.b16 %v3742, %v3742
      %v3775 = vpack.c.b16 %v3743, %v3743
      %v3776 = vpack.c.b16 %v3744, %v3744
      %v3777 = vpack.c.b16 %v3745, %v3745
      %v3778 = vpack.c.b16 %v3746, %v3746
      %v3779 = vpack.c.b16 %v3747, %v3747
      %vm3812 = vcmask 519168
      %3813 = vst.msk [vmem:[#allocation2] sm:$0xf] %vm3812, %v3748
      %3814 = vst.msk [vmem:[#allocation2 + $0x4] sm:$0xf] %vm3812, %v3749
      %3815 = vst.msk [vmem:[#allocation2 + $0x8] sm:$0xf] %vm3812, %v3750
      %3816 = vst.msk [vmem:[#allocation2 + $0xc] sm:$0xf] %vm3812, %v3751
      %3817 = vst.msk [vmem:[#allocation2 + $0x10] sm:$0xf] %vm3812, %v3752
      %3818 = vst.msk [vmem:[#allocation2 + $0x14] sm:$0xf] %vm3812, %v3753
      %3819 = vst.msk [vmem:[#allocation2 + $0x18] sm:$0xf] %vm3812, %v3754
      %3820 = vst.msk [vmem:[#allocation2 + $0x1c] sm:$0xf] %vm3812, %v3755
      %3821 = vst.msk [vmem:[#allocation2 + $0x20] sm:$0xf] %vm3812, %v3756
      %3822 = vst.msk [vmem:[#allocation2 + $0x24] sm:$0xf] %vm3812, %v3757
      %3823 = vst.msk [vmem:[#allocation2 + $0x28] sm:$0xf] %vm3812, %v3758
      %3824 = vst.msk [vmem:[#allocation2 + $0x2c] sm:$0xf] %vm3812, %v3759
      %3825 = vst.msk [vmem:[#allocation2 + $0x30] sm:$0xf] %vm3812, %v3760
      %3826 = vst.msk [vmem:[#allocation2 + $0x34] sm:$0xf] %vm3812, %v3761
      %3827 = vst.msk [vmem:[#allocation2 + $0x38] sm:$0xf] %vm3812, %v3762
      %3828 = vst.msk [vmem:[#allocation2 + $0x3c] sm:$0xf] %vm3812, %v3763
      %3829 = vst.msk [vmem:[#allocation2 + $0x40] sm:$0xf] %vm3812, %v3764
      %3830 = vst.msk [vmem:[#allocation2 + $0x44] sm:$0xf] %vm3812, %v3765
      %3831 = vst.msk [vmem:[#allocation2 + $0x48] sm:$0xf] %vm3812, %v3766
      %3832 = vst.msk [vmem:[#allocation2 + $0x4c] sm:$0xf] %vm3812, %v3767
      %3833 = vst.msk [vmem:[#allocation2 + $0x50] sm:$0xf] %vm3812, %v3768
      %3834 = vst.msk [vmem:[#allocation2 + $0x54] sm:$0xf] %vm3812, %v3769
      %3835 = vst.msk [vmem:[#allocation2 + $0x58] sm:$0xf] %vm3812, %v3770
      %3836 = vst.msk [vmem:[#allocation2 + $0x5c] sm:$0xf] %vm3812, %v3771
      %3837 = vst.msk [vmem:[#allocation2 + $0x60] sm:$0xf] %vm3812, %v3772
      %3838 = vst.msk [vmem:[#allocation2 + $0x64] sm:$0xf] %vm3812, %v3773
      %3839 = vst.msk [vmem:[#allocation2 + $0x68] sm:$0xf] %vm3812, %v3774
      %3840 = vst.msk [vmem:[#allocation2 + $0x6c] sm:$0xf] %vm3812, %v3775
      %3841 = vst.msk [vmem:[#allocation2 + $0x70] sm:$0xf] %vm3812, %v3776
      %3842 = vst.msk [vmem:[#allocation2 + $0x74] sm:$0xf] %vm3812, %v3777
      %3843 = vst.msk [vmem:[#allocation2 + $0x78] sm:$0xf] %vm3812, %v3778
      %3844 = vst.msk [vmem:[#allocation2 + $0x7c] sm:$0xf] %vm3812, %v3779
      %v3845 = vld [vmem:[#allocation2] sm:$0x1]
      %v3846 = vld [vmem:[#allocation2 + $0x10] sm:$0x1]
      %v3847 = vld [vmem:[#allocation2 + $0x20] sm:$0x1]
      %v3848 = vld [vmem:[#allocation2 + $0x30] sm:$0x1]
      %v3849 = vld [vmem:[#allocation2 + $0x40] sm:$0x1]
      %v3850 = vld [vmem:[#allocation2 + $0x50] sm:$0x1]
      %v3851 = vld [vmem:[#allocation2 + $0x60] sm:$0x1]
      %v3852 = vld [vmem:[#allocation2 + $0x70] sm:$0x1]
      %v3861 = vunpack.c.l.b16 %v3845
      %v3862 = vunpack.c.l.b16 %v3846
      %v3863 = vunpack.c.l.b16 %v3847
      %v3864 = vunpack.c.l.b16 %v3848
      %v3865 = vunpack.c.l.b16 %v3849
      %v3866 = vunpack.c.l.b16 %v3850
      %v3867 = vunpack.c.l.b16 %v3851
      %v3868 = vunpack.c.l.b16 %v3852
      %v3869 = vrot.slane %v3862, 7
      %vm3870 = vcmask 1041409
      %v3871 = vsel %vm3870, %v3869, %v3861
      %v3872 = vrot.slane %v3863, 6
      %vm3873 = vcmask 1042434
      %v3874 = vsel %vm3873, %v3872, %v3871
      %v3875 = vrot.slane %v3864, 5
      %vm3876 = vcmask 1043459
      %v3877 = vsel %vm3876, %v3875, %v3874
      %v3878 = vrot.slane %v3865, 4
      %vm3879 = vcmask 1044484
      %v3880 = vsel %vm3879, %v3878, %v3877
      %v3881 = vrot.slane %v3866, 3
      %vm3882 = vcmask 1045509
      %v3883 = vsel %vm3882, %v3881, %v3880
      %v3884 = vrot.slane %v3867, 2
      %vm3885 = vcmask 1046534
      %v3886 = vsel %vm3885, %v3884, %v3883
      %v3887 = vrot.slane %v3868, 1
      %vm3888 = vcmask 1047559
      %v3889 = vsel %vm3888, %v3887, %v3886
      %v3890 = vpack.c.b16 %v3889, %v3889
      %3892 = vst.msk [vmem:[#allocation3] sm:$0xf] %vm3812, %v3890
      %v3893 = vld [vmem:[#allocation2] sm:$0x1]
      %v3894 = vld [vmem:[#allocation2 + $0x10] sm:$0x1]
      %v3895 = vld [vmem:[#allocation2 + $0x20] sm:$0x1]
      %v3896 = vld [vmem:[#allocation2 + $0x30] sm:$0x1]
      %v3897 = vld [vmem:[#allocation2 + $0x40] sm:$0x1]
      %v3898 = vld [vmem:[#allocation2 + $0x50] sm:$0x1]
      %v3899 = vld [vmem:[#allocation2 + $0x60] sm:$0x1]
      %v3900 = vld [vmem:[#allocation2 + $0x70] sm:$0x1]
      %v3909 = vunpack.c.l.b16 %v3893
      %v3910 = vunpack.c.l.b16 %v3894
      %v3911 = vunpack.c.l.b16 %v3895
      %v3912 = vunpack.c.l.b16 %v3896
      %v3913 = vunpack.c.l.b16 %v3897
      %v3914 = vunpack.c.l.b16 %v3898
      %v3915 = vunpack.c.l.b16 %v3899
      %v3916 = vunpack.c.l.b16 %v3900
      %v3917 = vrot.slane %v3909, 1
      %v3918 = vsel %vm3870, %v3910, %v3917
      %v3919 = vrot.slane %v3911, 7
      %v3920 = vsel %vm3873, %v3919, %v3918
      %v3921 = vrot.slane %v3912, 6
      %v3922 = vsel %vm3876, %v3921, %v3920
      %v3923 = vrot.slane %v3913, 5
      %v3924 = vsel %vm3879, %v3923, %v3922
      %v3925 = vrot.slane %v3914, 4
      %v3926 = vsel %vm3882, %v3925, %v3924
      %v3927 = vrot.slane %v3915, 3
      %v3928 = vsel %vm3885, %v3927, %v3926
      %v3929 = vrot.slane %v3916, 2
      %v3930 = vsel %vm3888, %v3929, %v3928
      %v3931 = vpack.c.b16 %v3930, %v3930
      %3932 = vrot.lane.b32.xlu0 %v3931, 64
      %v3933 = vpop.permute.xlu0 %3932
      %vm3935 = vcmask 1043968
      %3936 = vst.msk [vmem:[#allocation3] sm:$0xf] %vm3935, %v3933
      %v3937 = vld [vmem:[#allocation2] sm:$0x2]
      %v3938 = vld [vmem:[#allocation2 + $0x10] sm:$0x2]
      %v3939 = vld [vmem:[#allocation2 + $0x20] sm:$0x2]
      %v3940 = vld [vmem:[#allocation2 + $0x30] sm:$0x2]
      %v3941 = vld [vmem:[#allocation2 + $0x40] sm:$0x2]
      %v3942 = vld [vmem:[#allocation2 + $0x50] sm:$0x2]
      %v3943 = vld [vmem:[#allocation2 + $0x60] sm:$0x2]
      %v3944 = vld [vmem:[#allocation2 + $0x70] sm:$0x2]
      %v3953 = vunpack.c.l.b16 %v3937
      %v3954 = vunpack.c.l.b16 %v3938
      %v3955 = vunpack.c.l.b16 %v3939
      %v3956 = vunpack.c.l.b16 %v3940
      %v3957 = vunpack.c.l.b16 %v3941
      %v3958 = vunpack.c.l.b16 %v3942
      %v3959 = vunpack.c.l.b16 %v3943
      %v3960 = vunpack.c.l.b16 %v3944
      %v3961 = vrot.slane %v3953, 2
      %v3962 = vrot.slane %v3954, 1
      %v3963 = vsel %vm3870, %v3962, %v3961
      %v3964 = vsel %vm3873, %v3955, %v3963
      %v3965 = vrot.slane %v3956, 7
      %v3966 = vsel %vm3876, %v3965, %v3964
      %v3967 = vrot.slane %v3957, 6
      %v3968 = vsel %vm3879, %v3967, %v3966
      %v3969 = vrot.slane %v3958, 5
      %v3970 = vsel %vm3882, %v3969, %v3968
      %v3971 = vrot.slane %v3959, 4
      %v3972 = vsel %vm3885, %v3971, %v3970
      %v3973 = vrot.slane %v3960, 3
      %v3974 = vsel %vm3888, %v3973, %v3972
      %v3975 = vpack.c.b16 %v3974, %v3974
      %3977 = vst.msk [vmem:[#allocation3 + $0x4] sm:$0xf] %vm3812, %v3975
      %v3978 = vld [vmem:[#allocation2] sm:$0x2]
      %v3979 = vld [vmem:[#allocation2 + $0x10] sm:$0x2]
      %v3980 = vld [vmem:[#allocation2 + $0x20] sm:$0x2]
      %v3981 = vld [vmem:[#allocation2 + $0x30] sm:$0x2]
      %v3982 = vld [vmem:[#allocation2 + $0x40] sm:$0x2]
      %v3983 = vld [vmem:[#allocation2 + $0x50] sm:$0x2]
      %v3984 = vld [vmem:[#allocation2 + $0x60] sm:$0x2]
      %v3985 = vld [vmem:[#allocation2 + $0x70] sm:$0x2]
      %v3994 = vunpack.c.l.b16 %v3978
      %v3995 = vunpack.c.l.b16 %v3979
      %v3996 = vunpack.c.l.b16 %v3980
      %v3997 = vunpack.c.l.b16 %v3981
      %v3998 = vunpack.c.l.b16 %v3982
      %v3999 = vunpack.c.l.b16 %v3983
      %v4000 = vunpack.c.l.b16 %v3984
      %v4001 = vunpack.c.l.b16 %v3985
      %v4002 = vrot.slane %v3994, 3
      %v4003 = vrot.slane %v3995, 2
      %v4004 = vsel %vm3870, %v4003, %v4002
      %v4005 = vrot.slane %v3996, 1
      %v4006 = vsel %vm3873, %v4005, %v4004
      %v4007 = vsel %vm3876, %v3997, %v4006
      %v4008 = vrot.slane %v3998, 7
      %v4009 = vsel %vm3879, %v4008, %v4007
      %v4010 = vrot.slane %v3999, 6
      %v4011 = vsel %vm3882, %v4010, %v4009
      %v4012 = vrot.slane %v4000, 5
      %v4013 = vsel %vm3885, %v4012, %v4011
      %v4014 = vrot.slane %v4001, 4
      %v4015 = vsel %vm3888, %v4014, %v4013
      %v4016 = vpack.c.b16 %v4015, %v4015
      %4017 = vrot.lane.b32.xlu0 %v4016, 64
      %v4018 = vpop.permute.xlu0 %4017
      %4020 = vst.msk [vmem:[#allocation3 + $0x4] sm:$0xf] %vm3935, %v4018
      %v4021 = vld [vmem:[#allocation2] sm:$0x4]
      %v4022 = vld [vmem:[#allocation2 + $0x10] sm:$0x4]
      %v4023 = vld [vmem:[#allocation2 + $0x20] sm:$0x4]
      %v4024 = vld [vmem:[#allocation2 + $0x30] sm:$0x4]
      %v4025 = vld [vmem:[#allocation2 + $0x40] sm:$0x4]
      %v4026 = vld [vmem:[#allocation2 + $0x50] sm:$0x4]
      %v4027 = vld [vmem:[#allocation2 + $0x60] sm:$0x4]
      %v4028 = vld [vmem:[#allocation2 + $0x70] sm:$0x4]
      %v4037 = vunpack.c.l.b16 %v4021
      %v4038 = vunpack.c.l.b16 %v4022
      %v4039 = vunpack.c.l.b16 %v4023
      %v4040 = vunpack.c.l.b16 %v4024
      %v4041 = vunpack.c.l.b16 %v4025
      %v4042 = vunpack.c.l.b16 %v4026
      %v4043 = vunpack.c.l.b16 %v4027
      %v4044 = vunpack.c.l.b16 %v4028
      %v4045 = vrot.slane %v4037, 4
      %v4046 = vrot.slane %v4038, 3
      %v4047 = vsel %vm3870, %v4046, %v4045
      %v4048 = vrot.slane %v4039, 2
      %v4049 = vsel %vm3873, %v4048, %v4047
      %v4050 = vrot.slane %v4040, 1
      %v4051 = vsel %vm3876, %v4050, %v4049
      %v4052 = vsel %vm3879, %v4041, %v4051
      %v4053 = vrot.slane %v4042, 7
      %v4054 = vsel %vm3882, %v4053, %v4052
      %v4055 = vrot.slane %v4043, 6
      %v4056 = vsel %vm3885, %v4055, %v4054
      %v4057 = vrot.slane %v4044, 5
      %v4058 = vsel %vm3888, %v4057, %v4056
      %v4059 = vpack.c.b16 %v4058, %v4058
      %4061 = vst.msk [vmem:[#allocation3 + $0x8] sm:$0xf] %vm3812, %v4059
      %v4062 = vld [vmem:[#allocation2] sm:$0x4]
      %v4063 = vld [vmem:[#allocation2 + $0x10] sm:$0x4]
      %v4064 = vld [vmem:[#allocation2 + $0x20] sm:$0x4]
      %v4065 = vld [vmem:[#allocation2 + $0x30] sm:$0x4]
      %v4066 = vld [vmem:[#allocation2 + $0x40] sm:$0x4]
      %v4067 = vld [vmem:[#allocation2 + $0x50] sm:$0x4]
      %v4068 = vld [vmem:[#allocation2 + $0x60] sm:$0x4]
      %v4069 = vld [vmem:[#allocation2 + $0x70] sm:$0x4]
      %v4078 = vunpack.c.l.b16 %v4062
      %v4079 = vunpack.c.l.b16 %v4063
      %v4080 = vunpack.c.l.b16 %v4064
      %v4081 = vunpack.c.l.b16 %v4065
      %v4082 = vunpack.c.l.b16 %v4066
      %v4083 = vunpack.c.l.b16 %v4067
      %v4084 = vunpack.c.l.b16 %v4068
      %v4085 = vunpack.c.l.b16 %v4069
      %v4086 = vrot.slane %v4078, 5
      %v4087 = vrot.slane %v4079, 4
      %v4088 = vsel %vm3870, %v4087, %v4086
      %v4089 = vrot.slane %v4080, 3
      %v4090 = vsel %vm3873, %v4089, %v4088
      %v4091 = vrot.slane %v4081, 2
      %v4092 = vsel %vm3876, %v4091, %v4090
      %v4093 = vrot.slane %v4082, 1
      %v4094 = vsel %vm3879, %v4093, %v4092
      %v4095 = vsel %vm3882, %v4083, %v4094
      %v4096 = vrot.slane %v4084, 7
      %v4097 = vsel %vm3885, %v4096, %v4095
      %v4098 = vrot.slane %v4085, 6
      %v4099 = vsel %vm3888, %v4098, %v4097
      %v4100 = vpack.c.b16 %v4099, %v4099
      %4101 = vrot.lane.b32.xlu0 %v4100, 64
      %v4102 = vpop.permute.xlu0 %4101
      %4104 = vst.msk [vmem:[#allocation3 + $0x8] sm:$0xf] %vm3935, %v4102
      %v4105 = vld [vmem:[#allocation2] sm:$0x8]
      %v4106 = vld [vmem:[#allocation2 + $0x10] sm:$0x8]
      %v4107 = vld [vmem:[#allocation2 + $0x20] sm:$0x8]
      %v4108 = vld [vmem:[#allocation2 + $0x30] sm:$0x8]
      %v4109 = vld [vmem:[#allocation2 + $0x40] sm:$0x8]
      %v4110 = vld [vmem:[#allocation2 + $0x50] sm:$0x8]
      %v4111 = vld [vmem:[#allocation2 + $0x60] sm:$0x8]
      %v4112 = vld [vmem:[#allocation2 + $0x70] sm:$0x8]
      %v4121 = vunpack.c.l.b16 %v4105
      %v4122 = vunpack.c.l.b16 %v4106
      %v4123 = vunpack.c.l.b16 %v4107
      %v4124 = vunpack.c.l.b16 %v4108
      %v4125 = vunpack.c.l.b16 %v4109
      %v4126 = vunpack.c.l.b16 %v4110
      %v4127 = vunpack.c.l.b16 %v4111
      %v4128 = vunpack.c.l.b16 %v4112
      %v4129 = vrot.slane %v4121, 6
      %v4130 = vrot.slane %v4122, 5
      %v4131 = vsel %vm3870, %v4130, %v4129
      %v4132 = vrot.slane %v4123, 4
      %v4133 = vsel %vm3873, %v4132, %v4131
      %v4134 = vrot.slane %v4124, 3
      %v4135 = vsel %vm3876, %v4134, %v4133
      %v4136 = vrot.slane %v4125, 2
      %v4137 = vsel %vm3879, %v4136, %v4135
      %v4138 = vrot.slane %v4126, 1
      %v4139 = vsel %vm3882, %v4138, %v4137
      %v4140 = vsel %vm3885, %v4127, %v4139
      %v4141 = vrot.slane %v4128, 7
      %v4142 = vsel %vm3888, %v4141, %v4140
      %v4143 = vpack.c.b16 %v4142, %v4142
      %4145 = vst.msk [vmem:[#allocation3 + $0xc] sm:$0xf] %vm3812, %v4143
      %v4146 = vld [vmem:[#allocation2] sm:$0x8]
      %v4147 = vld [vmem:[#allocation2 + $0x10] sm:$0x8]
      %v4148 = vld [vmem:[#allocation2 + $0x20] sm:$0x8]
      %v4149 = vld [vmem:[#allocation2 + $0x30] sm:$0x8]
      %v4150 = vld [vmem:[#allocation2 + $0x40] sm:$0x8]
      %v4151 = vld [vmem:[#allocation2 + $0x50] sm:$0x8]
      %v4152 = vld [vmem:[#allocation2 + $0x60] sm:$0x8]
      %v4153 = vld [vmem:[#allocation2 + $0x70] sm:$0x8]
      %v4162 = vunpack.c.l.b16 %v4146
      %v4163 = vunpack.c.l.b16 %v4147
      %v4164 = vunpack.c.l.b16 %v4148
      %v4165 = vunpack.c.l.b16 %v4149
      %v4166 = vunpack.c.l.b16 %v4150
      %v4167 = vunpack.c.l.b16 %v4151
      %v4168 = vunpack.c.l.b16 %v4152
      %v4169 = vunpack.c.l.b16 %v4153
      %v4170 = vrot.slane %v4162, 7
      %v4171 = vrot.slane %v4163, 6
      %v4172 = vsel %vm3870, %v4171, %v4170
      %v4173 = vrot.slane %v4164, 5
      %v4174 = vsel %vm3873, %v4173, %v4172
      %v4175 = vrot.slane %v4165, 4
      %v4176 = vsel %vm3876, %v4175, %v4174
      %v4177 = vrot.slane %v4166, 3
      %v4178 = vsel %vm3879, %v4177, %v4176
      %v4179 = vrot.slane %v4167, 2
      %v4180 = vsel %vm3882, %v4179, %v4178
      %v4181 = vrot.slane %v4168, 1
      %v4182 = vsel %vm3885, %v4181, %v4180
      %v4183 = vsel %vm3888, %v4169, %v4182
      %v4184 = vpack.c.b16 %v4183, %v4183
      %s4186 = scalar_lea.vmem [#allocation3], 16
      %4187 = vst.msk [vmem:[%s4186] sm:$0xf] %vm3812, %v4184
      %v4188 = vld [vmem:[#allocation2 + $0x4] sm:$0x1]
      %v4189 = vld [vmem:[#allocation2 + $0x14] sm:$0x1]
      %v4190 = vld [vmem:[#allocation2 + $0x24] sm:$0x1]
      %v4191 = vld [vmem:[#allocation2 + $0x34] sm:$0x1]
      %v4192 = vld [vmem:[#allocation2 + $0x44] sm:$0x1]
      %v4193 = vld [vmem:[#allocation2 + $0x54] sm:$0x1]
      %v4194 = vld [vmem:[#allocation2 + $0x64] sm:$0x1]
      %v4195 = vld [vmem:[#allocation2 + $0x74] sm:$0x1]
      %v4204 = vunpack.c.l.b16 %v4188
      %v4205 = vunpack.c.l.b16 %v4189
      %v4206 = vunpack.c.l.b16 %v4190
      %v4207 = vunpack.c.l.b16 %v4191
      %v4208 = vunpack.c.l.b16 %v4192
      %v4209 = vunpack.c.l.b16 %v4193
      %v4210 = vunpack.c.l.b16 %v4194
      %v4211 = vunpack.c.l.b16 %v4195
      %v4212 = vrot.slane %v4205, 7
      %v4213 = vsel %vm3870, %v4212, %v4204
      %v4214 = vrot.slane %v4206, 6
      %v4215 = vsel %vm3873, %v4214, %v4213
      %v4216 = vrot.slane %v4207, 5
      %v4217 = vsel %vm3876, %v4216, %v4215
      %v4218 = vrot.slane %v4208, 4
      %v4219 = vsel %vm3879, %v4218, %v4217
      %v4220 = vrot.slane %v4209, 3
      %v4221 = vsel %vm3882, %v4220, %v4219
      %v4222 = vrot.slane %v4210, 2
      %v4223 = vsel %vm3885, %v4222, %v4221
      %v4224 = vrot.slane %v4211, 1
      %v4225 = vsel %vm3888, %v4224, %v4223
      %v4226 = vpack.c.b16 %v4225, %v4225
      %4227 = vrot.lane.b32.xlu0 %v4226, 64
      %v4228 = vpop.permute.xlu0 %4227
      %4230 = vst.msk [vmem:[%s4186] sm:$0xf] %vm3935, %v4228
      %v4231 = vld [vmem:[#allocation2 + $0x4] sm:$0x1]
      %v4232 = vld [vmem:[#allocation2 + $0x14] sm:$0x1]
      %v4233 = vld [vmem:[#allocation2 + $0x24] sm:$0x1]
      %v4234 = vld [vmem:[#allocation2 + $0x34] sm:$0x1]
      %v4235 = vld [vmem:[#allocation2 + $0x44] sm:$0x1]
      %v4236 = vld [vmem:[#allocation2 + $0x54] sm:$0x1]
      %v4237 = vld [vmem:[#allocation2 + $0x64] sm:$0x1]
      %v4238 = vld [vmem:[#allocation2 + $0x74] sm:$0x1]
      %v4247 = vunpack.c.l.b16 %v4231
      %v4248 = vunpack.c.l.b16 %v4232
      %v4249 = vunpack.c.l.b16 %v4233
      %v4250 = vunpack.c.l.b16 %v4234
      %v4251 = vunpack.c.l.b16 %v4235
      %v4252 = vunpack.c.l.b16 %v4236
      %v4253 = vunpack.c.l.b16 %v4237
      %v4254 = vunpack.c.l.b16 %v4238
      %v4255 = vrot.slane %v4247, 1
      %v4256 = vsel %vm3870, %v4248, %v4255
      %v4257 = vrot.slane %v4249, 7
      %v4258 = vsel %vm3873, %v4257, %v4256
      %v4259 = vrot.slane %v4250, 6
      %v4260 = vsel %vm3876, %v4259, %v4258
      %v4261 = vrot.slane %v4251, 5
      %v4262 = vsel %vm3879, %v4261, %v4260
      %v4263 = vrot.slane %v4252, 4
      %v4264 = vsel %vm3882, %v4263, %v4262
      %v4265 = vrot.slane %v4253, 3
      %v4266 = vsel %vm3885, %v4265, %v4264
      %v4267 = vrot.slane %v4254, 2
      %v4268 = vsel %vm3888, %v4267, %v4266
      %v4269 = vpack.c.b16 %v4268, %v4268
      %4271 = vst.msk [vmem:[%s4186 + $0x4] sm:$0xf] %vm3812, %v4269
      %v4272 = vld [vmem:[#allocation2 + $0x4] sm:$0x2]
      %v4273 = vld [vmem:[#allocation2 + $0x14] sm:$0x2]
      %v4274 = vld [vmem:[#allocation2 + $0x24] sm:$0x2]
      %v4275 = vld [vmem:[#allocation2 + $0x34] sm:$0x2]
      %v4276 = vld [vmem:[#allocation2 + $0x44] sm:$0x2]
      %v4277 = vld [vmem:[#allocation2 + $0x54] sm:$0x2]
      %v4278 = vld [vmem:[#allocation2 + $0x64] sm:$0x2]
      %v4279 = vld [vmem:[#allocation2 + $0x74] sm:$0x2]
      %v4288 = vunpack.c.l.b16 %v4272
      %v4289 = vunpack.c.l.b16 %v4273
      %v4290 = vunpack.c.l.b16 %v4274
      %v4291 = vunpack.c.l.b16 %v4275
      %v4292 = vunpack.c.l.b16 %v4276
      %v4293 = vunpack.c.l.b16 %v4277
      %v4294 = vunpack.c.l.b16 %v4278
      %v4295 = vunpack.c.l.b16 %v4279
      %v4296 = vrot.slane %v4288, 2
      %v4297 = vrot.slane %v4289, 1
      %v4298 = vsel %vm3870, %v4297, %v4296
      %v4299 = vsel %vm3873, %v4290, %v4298
      %v4300 = vrot.slane %v4291, 7
      %v4301 = vsel %vm3876, %v4300, %v4299
      %v4302 = vrot.slane %v4292, 6
      %v4303 = vsel %vm3879, %v4302, %v4301
      %v4304 = vrot.slane %v4293, 5
      %v4305 = vsel %vm3882, %v4304, %v4303
      %v4306 = vrot.slane %v4294, 4
      %v4307 = vsel %vm3885, %v4306, %v4305
      %v4308 = vrot.slane %v4295, 3
      %v4309 = vsel %vm3888, %v4308, %v4307
      %v4310 = vpack.c.b16 %v4309, %v4309
      %4311 = vrot.lane.b32.xlu0 %v4310, 64
      %v4312 = vpop.permute.xlu0 %4311
      %4314 = vst.msk [vmem:[%s4186 + $0x4] sm:$0xf] %vm3935, %v4312
      %v4315 = vld [vmem:[#allocation2 + $0x4] sm:$0x2]
      %v4316 = vld [vmem:[#allocation2 + $0x14] sm:$0x2]
      %v4317 = vld [vmem:[#allocation2 + $0x24] sm:$0x2]
      %v4318 = vld [vmem:[#allocation2 + $0x34] sm:$0x2]
      %v4319 = vld [vmem:[#allocation2 + $0x44] sm:$0x2]
      %v4320 = vld [vmem:[#allocation2 + $0x54] sm:$0x2]
      %v4321 = vld [vmem:[#allocation2 + $0x64] sm:$0x2]
      %v4322 = vld [vmem:[#allocation2 + $0x74] sm:$0x2]
      %v4331 = vunpack.c.l.b16 %v4315
      %v4332 = vunpack.c.l.b16 %v4316
      %v4333 = vunpack.c.l.b16 %v4317
      %v4334 = vunpack.c.l.b16 %v4318
      %v4335 = vunpack.c.l.b16 %v4319
      %v4336 = vunpack.c.l.b16 %v4320
      %v4337 = vunpack.c.l.b16 %v4321
      %v4338 = vunpack.c.l.b16 %v4322
      %v4339 = vrot.slane %v4331, 3
      %v4340 = vrot.slane %v4332, 2
      %v4341 = vsel %vm3870, %v4340, %v4339
      %v4342 = vrot.slane %v4333, 1
      %v4343 = vsel %vm3873, %v4342, %v4341
      %v4344 = vsel %vm3876, %v4334, %v4343
      %v4345 = vrot.slane %v4335, 7
      %v4346 = vsel %vm3879, %v4345, %v4344
      %v4347 = vrot.slane %v4336, 6
      %v4348 = vsel %vm3882, %v4347, %v4346
      %v4349 = vrot.slane %v4337, 5
      %v4350 = vsel %vm3885, %v4349, %v4348
      %v4351 = vrot.slane %v4338, 4
      %v4352 = vsel %vm3888, %v4351, %v4350
      %v4353 = vpack.c.b16 %v4352, %v4352
      %4355 = vst.msk [vmem:[%s4186 + $0x8] sm:$0xf] %vm3812, %v4353
      %v4356 = vld [vmem:[#allocation2 + $0x4] sm:$0x4]
      %v4357 = vld [vmem:[#allocation2 + $0x14] sm:$0x4]
      %v4358 = vld [vmem:[#allocation2 + $0x24] sm:$0x4]
      %v4359 = vld [vmem:[#allocation2 + $0x34] sm:$0x4]
      %v4360 = vld [vmem:[#allocation2 + $0x44] sm:$0x4]
      %v4361 = vld [vmem:[#allocation2 + $0x54] sm:$0x4]
      %v4362 = vld [vmem:[#allocation2 + $0x64] sm:$0x4]
      %v4363 = vld [vmem:[#allocation2 + $0x74] sm:$0x4]
      %v4372 = vunpack.c.l.b16 %v4356
      %v4373 = vunpack.c.l.b16 %v4357
      %v4374 = vunpack.c.l.b16 %v4358
      %v4375 = vunpack.c.l.b16 %v4359
      %v4376 = vunpack.c.l.b16 %v4360
      %v4377 = vunpack.c.l.b16 %v4361
      %v4378 = vunpack.c.l.b16 %v4362
      %v4379 = vunpack.c.l.b16 %v4363
      %v4380 = vrot.slane %v4372, 4
      %v4381 = vrot.slane %v4373, 3
      %v4382 = vsel %vm3870, %v4381, %v4380
      %v4383 = vrot.slane %v4374, 2
      %v4384 = vsel %vm3873, %v4383, %v4382
      %v4385 = vrot.slane %v4375, 1
      %v4386 = vsel %vm3876, %v4385, %v4384
      %v4387 = vsel %vm3879, %v4376, %v4386
      %v4388 = vrot.slane %v4377, 7
      %v4389 = vsel %vm3882, %v4388, %v4387
      %v4390 = vrot.slane %v4378, 6
      %v4391 = vsel %vm3885, %v4390, %v4389
      %v4392 = vrot.slane %v4379, 5
      %v4393 = vsel %vm3888, %v4392, %v4391
      %v4394 = vpack.c.b16 %v4393, %v4393
      %4395 = vrot.lane.b32.xlu0 %v4394, 64
      %v4396 = vpop.permute.xlu0 %4395
      %4398 = vst.msk [vmem:[%s4186 + $0x8] sm:$0xf] %vm3935, %v4396
      %v4399 = vld [vmem:[#allocation2 + $0x4] sm:$0x4]
      %v4400 = vld [vmem:[#allocation2 + $0x14] sm:$0x4]
      %v4401 = vld [vmem:[#allocation2 + $0x24] sm:$0x4]
      %v4402 = vld [vmem:[#allocation2 + $0x34] sm:$0x4]
      %v4403 = vld [vmem:[#allocation2 + $0x44] sm:$0x4]
      %v4404 = vld [vmem:[#allocation2 + $0x54] sm:$0x4]
      %v4405 = vld [vmem:[#allocation2 + $0x64] sm:$0x4]
      %v4406 = vld [vmem:[#allocation2 + $0x74] sm:$0x4]
      %v4415 = vunpack.c.l.b16 %v4399
      %v4416 = vunpack.c.l.b16 %v4400
      %v4417 = vunpack.c.l.b16 %v4401
      %v4418 = vunpack.c.l.b16 %v4402
      %v4419 = vunpack.c.l.b16 %v4403
      %v4420 = vunpack.c.l.b16 %v4404
      %v4421 = vunpack.c.l.b16 %v4405
      %v4422 = vunpack.c.l.b16 %v4406
      %v4423 = vrot.slane %v4415, 5
      %v4424 = vrot.slane %v4416, 4
      %v4425 = vsel %vm3870, %v4424, %v4423
      %v4426 = vrot.slane %v4417, 3
      %v4427 = vsel %vm3873, %v4426, %v4425
      %v4428 = vrot.slane %v4418, 2
      %v4429 = vsel %vm3876, %v4428, %v4427
      %v4430 = vrot.slane %v4419, 1
      %v4431 = vsel %vm3879, %v4430, %v4429
      %v4432 = vsel %vm3882, %v4420, %v4431
      %v4433 = vrot.slane %v4421, 7
      %v4434 = vsel %vm3885, %v4433, %v4432
      %v4435 = vrot.slane %v4422, 6
      %v4436 = vsel %vm3888, %v4435, %v4434
      %v4437 = vpack.c.b16 %v4436, %v4436
      %4439 = vst.msk [vmem:[%s4186 + $0xc] sm:$0xf] %vm3812, %v4437
      %v4440 = vld [vmem:[#allocation2 + $0x4] sm:$0x8]
      %v4441 = vld [vmem:[#allocation2 + $0x14] sm:$0x8]
      %v4442 = vld [vmem:[#allocation2 + $0x24] sm:$0x8]
      %v4443 = vld [vmem:[#allocation2 + $0x34] sm:$0x8]
      %v4444 = vld [vmem:[#allocation2 + $0x44] sm:$0x8]
      %v4445 = vld [vmem:[#allocation2 + $0x54] sm:$0x8]
      %v4446 = vld [vmem:[#allocation2 + $0x64] sm:$0x8]
      %v4447 = vld [vmem:[#allocation2 + $0x74] sm:$0x8]
      %v4456 = vunpack.c.l.b16 %v4440
      %v4457 = vunpack.c.l.b16 %v4441
      %v4458 = vunpack.c.l.b16 %v4442
      %v4459 = vunpack.c.l.b16 %v4443
      %v4460 = vunpack.c.l.b16 %v4444
      %v4461 = vunpack.c.l.b16 %v4445
      %v4462 = vunpack.c.l.b16 %v4446
      %v4463 = vunpack.c.l.b16 %v4447
      %v4464 = vrot.slane %v4456, 6
      %v4465 = vrot.slane %v4457, 5
      %v4466 = vsel %vm3870, %v4465, %v4464
      %v4467 = vrot.slane %v4458, 4
      %v4468 = vsel %vm3873, %v4467, %v4466
      %v4469 = vrot.slane %v4459, 3
      %v4470 = vsel %vm3876, %v4469, %v4468
      %v4471 = vrot.slane %v4460, 2
      %v4472 = vsel %vm3879, %v4471, %v4470
      %v4473 = vrot.slane %v4461, 1
      %v4474 = vsel %vm3882, %v4473, %v4472
      %v4475 = vsel %vm3885, %v4462, %v4474
      %v4476 = vrot.slane %v4463, 7
      %v4477 = vsel %vm3888, %v4476, %v4475
      %v4478 = vpack.c.b16 %v4477, %v4477
      %s4480 = scalar_lea.vmem [#allocation3], 32
      %4481 = vst.msk [vmem:[%s4480] sm:$0xf] %vm3812, %v4478
      %v4482 = vld [vmem:[#allocation2 + $0x4] sm:$0x8]
      %v4483 = vld [vmem:[#allocation2 + $0x14] sm:$0x8]
      %v4484 = vld [vmem:[#allocation2 + $0x24] sm:$0x8]
      %v4485 = vld [vmem:[#allocation2 + $0x34] sm:$0x8]
      %v4486 = vld [vmem:[#allocation2 + $0x44] sm:$0x8]
      %v4487 = vld [vmem:[#allocation2 + $0x54] sm:$0x8]
      %v4488 = vld [vmem:[#allocation2 + $0x64] sm:$0x8]
      %v4489 = vld [vmem:[#allocation2 + $0x74] sm:$0x8]
      %v4498 = vunpack.c.l.b16 %v4482
      %v4499 = vunpack.c.l.b16 %v4483
      %v4500 = vunpack.c.l.b16 %v4484
      %v4501 = vunpack.c.l.b16 %v4485
      %v4502 = vunpack.c.l.b16 %v4486
      %v4503 = vunpack.c.l.b16 %v4487
      %v4504 = vunpack.c.l.b16 %v4488
      %v4505 = vunpack.c.l.b16 %v4489
      %v4506 = vrot.slane %v4498, 7
      %v4507 = vrot.slane %v4499, 6
      %v4508 = vsel %vm3870, %v4507, %v4506
      %v4509 = vrot.slane %v4500, 5
      %v4510 = vsel %vm3873, %v4509, %v4508
      %v4511 = vrot.slane %v4501, 4
      %v4512 = vsel %vm3876, %v4511, %v4510
      %v4513 = vrot.slane %v4502, 3
      %v4514 = vsel %vm3879, %v4513, %v4512
      %v4515 = vrot.slane %v4503, 2
      %v4516 = vsel %vm3882, %v4515, %v4514
      %v4517 = vrot.slane %v4504, 1
      %v4518 = vsel %vm3885, %v4517, %v4516
      %v4519 = vsel %vm3888, %v4505, %v4518
      %v4520 = vpack.c.b16 %v4519, %v4519
      %4521 = vrot.lane.b32.xlu0 %v4520, 64
      %v4522 = vpop.permute.xlu0 %4521
      %4524 = vst.msk [vmem:[%s4480] sm:$0xf] %vm3935, %v4522
      %v4525 = vld [vmem:[#allocation2 + $0x8] sm:$0x1]
      %v4526 = vld [vmem:[#allocation2 + $0x18] sm:$0x1]
      %v4527 = vld [vmem:[#allocation2 + $0x28] sm:$0x1]
      %v4528 = vld [vmem:[#allocation2 + $0x38] sm:$0x1]
      %v4529 = vld [vmem:[#allocation2 + $0x48] sm:$0x1]
      %v4530 = vld [vmem:[#allocation2 + $0x58] sm:$0x1]
      %v4531 = vld [vmem:[#allocation2 + $0x68] sm:$0x1]
      %v4532 = vld [vmem:[#allocation2 + $0x78] sm:$0x1]
      %v4541 = vunpack.c.l.b16 %v4525
      %v4542 = vunpack.c.l.b16 %v4526
      %v4543 = vunpack.c.l.b16 %v4527
      %v4544 = vunpack.c.l.b16 %v4528
      %v4545 = vunpack.c.l.b16 %v4529
      %v4546 = vunpack.c.l.b16 %v4530
      %v4547 = vunpack.c.l.b16 %v4531
      %v4548 = vunpack.c.l.b16 %v4532
      %v4549 = vrot.slane %v4542, 7
      %v4550 = vsel %vm3870, %v4549, %v4541
      %v4551 = vrot.slane %v4543, 6
      %v4552 = vsel %vm3873, %v4551, %v4550
      %v4553 = vrot.slane %v4544, 5
      %v4554 = vsel %vm3876, %v4553, %v4552
      %v4555 = vrot.slane %v4545, 4
      %v4556 = vsel %vm3879, %v4555, %v4554
      %v4557 = vrot.slane %v4546, 3
      %v4558 = vsel %vm3882, %v4557, %v4556
      %v4559 = vrot.slane %v4547, 2
      %v4560 = vsel %vm3885, %v4559, %v4558
      %v4561 = vrot.slane %v4548, 1
      %v4562 = vsel %vm3888, %v4561, %v4560
      %v4563 = vpack.c.b16 %v4562, %v4562
      %4565 = vst.msk [vmem:[%s4480 + $0x4] sm:$0xf] %vm3812, %v4563
      %v4566 = vld [vmem:[#allocation2 + $0x8] sm:$0x1]
      %v4567 = vld [vmem:[#allocation2 + $0x18] sm:$0x1]
      %v4568 = vld [vmem:[#allocation2 + $0x28] sm:$0x1]
      %v4569 = vld [vmem:[#allocation2 + $0x38] sm:$0x1]
      %v4570 = vld [vmem:[#allocation2 + $0x48] sm:$0x1]
      %v4571 = vld [vmem:[#allocation2 + $0x58] sm:$0x1]
      %v4572 = vld [vmem:[#allocation2 + $0x68] sm:$0x1]
      %v4573 = vld [vmem:[#allocation2 + $0x78] sm:$0x1]
      %v4582 = vunpack.c.l.b16 %v4566
      %v4583 = vunpack.c.l.b16 %v4567
      %v4584 = vunpack.c.l.b16 %v4568
      %v4585 = vunpack.c.l.b16 %v4569
      %v4586 = vunpack.c.l.b16 %v4570
      %v4587 = vunpack.c.l.b16 %v4571
      %v4588 = vunpack.c.l.b16 %v4572
      %v4589 = vunpack.c.l.b16 %v4573
      %v4590 = vrot.slane %v4582, 1
      %v4591 = vsel %vm3870, %v4583, %v4590
      %v4592 = vrot.slane %v4584, 7
      %v4593 = vsel %vm3873, %v4592, %v4591
      %v4594 = vrot.slane %v4585, 6
      %v4595 = vsel %vm3876, %v4594, %v4593
      %v4596 = vrot.slane %v4586, 5
      %v4597 = vsel %vm3879, %v4596, %v4595
      %v4598 = vrot.slane %v4587, 4
      %v4599 = vsel %vm3882, %v4598, %v4597
      %v4600 = vrot.slane %v4588, 3
      %v4601 = vsel %vm3885, %v4600, %v4599
      %v4602 = vrot.slane %v4589, 2
      %v4603 = vsel %vm3888, %v4602, %v4601
      %v4604 = vpack.c.b16 %v4603, %v4603
      %4605 = vrot.lane.b32.xlu0 %v4604, 64
      %v4606 = vpop.permute.xlu0 %4605
      %4608 = vst.msk [vmem:[%s4480 + $0x4] sm:$0xf] %vm3935, %v4606
      %v4609 = vld [vmem:[#allocation2 + $0x8] sm:$0x2]
      %v4610 = vld [vmem:[#allocation2 + $0x18] sm:$0x2]
      %v4611 = vld [vmem:[#allocation2 + $0x28] sm:$0x2]
      %v4612 = vld [vmem:[#allocation2 + $0x38] sm:$0x2]
      %v4613 = vld [vmem:[#allocation2 + $0x48] sm:$0x2]
      %v4614 = vld [vmem:[#allocation2 + $0x58] sm:$0x2]
      %v4615 = vld [vmem:[#allocation2 + $0x68] sm:$0x2]
      %v4616 = vld [vmem:[#allocation2 + $0x78] sm:$0x2]
      %v4625 = vunpack.c.l.b16 %v4609
      %v4626 = vunpack.c.l.b16 %v4610
      %v4627 = vunpack.c.l.b16 %v4611
      %v4628 = vunpack.c.l.b16 %v4612
      %v4629 = vunpack.c.l.b16 %v4613
      %v4630 = vunpack.c.l.b16 %v4614
      %v4631 = vunpack.c.l.b16 %v4615
      %v4632 = vunpack.c.l.b16 %v4616
      %v4633 = vrot.slane %v4625, 2
      %v4634 = vrot.slane %v4626, 1
      %v4635 = vsel %vm3870, %v4634, %v4633
      %v4636 = vsel %vm3873, %v4627, %v4635
      %v4637 = vrot.slane %v4628, 7
      %v4638 = vsel %vm3876, %v4637, %v4636
      %v4639 = vrot.slane %v4629, 6
      %v4640 = vsel %vm3879, %v4639, %v4638
      %v4641 = vrot.slane %v4630, 5
      %v4642 = vsel %vm3882, %v4641, %v4640
      %v4643 = vrot.slane %v4631, 4
      %v4644 = vsel %vm3885, %v4643, %v4642
      %v4645 = vrot.slane %v4632, 3
      %v4646 = vsel %vm3888, %v4645, %v4644
      %v4647 = vpack.c.b16 %v4646, %v4646
      %4649 = vst.msk [vmem:[%s4480 + $0x8] sm:$0xf] %vm3812, %v4647
      %v4650 = vld [vmem:[#allocation2 + $0x8] sm:$0x2]
      %v4651 = vld [vmem:[#allocation2 + $0x18] sm:$0x2]
      %v4652 = vld [vmem:[#allocation2 + $0x28] sm:$0x2]
      %v4653 = vld [vmem:[#allocation2 + $0x38] sm:$0x2]
      %v4654 = vld [vmem:[#allocation2 + $0x48] sm:$0x2]
      %v4655 = vld [vmem:[#allocation2 + $0x58] sm:$0x2]
      %v4656 = vld [vmem:[#allocation2 + $0x68] sm:$0x2]
      %v4657 = vld [vmem:[#allocation2 + $0x78] sm:$0x2]
      %v4666 = vunpack.c.l.b16 %v4650
      %v4667 = vunpack.c.l.b16 %v4651
      %v4668 = vunpack.c.l.b16 %v4652
      %v4669 = vunpack.c.l.b16 %v4653
      %v4670 = vunpack.c.l.b16 %v4654
      %v4671 = vunpack.c.l.b16 %v4655
      %v4672 = vunpack.c.l.b16 %v4656
      %v4673 = vunpack.c.l.b16 %v4657
      %v4674 = vrot.slane %v4666, 3
      %v4675 = vrot.slane %v4667, 2
      %v4676 = vsel %vm3870, %v4675, %v4674
      %v4677 = vrot.slane %v4668, 1
      %v4678 = vsel %vm3873, %v4677, %v4676
      %v4679 = vsel %vm3876, %v4669, %v4678
      %v4680 = vrot.slane %v4670, 7
      %v4681 = vsel %vm3879, %v4680, %v4679
      %v4682 = vrot.slane %v4671, 6
      %v4683 = vsel %vm3882, %v4682, %v4681
      %v4684 = vrot.slane %v4672, 5
      %v4685 = vsel %vm3885, %v4684, %v4683
      %v4686 = vrot.slane %v4673, 4
      %v4687 = vsel %vm3888, %v4686, %v4685
      %v4688 = vpack.c.b16 %v4687, %v4687
      %4689 = vrot.lane.b32.xlu0 %v4688, 64
      %v4690 = vpop.permute.xlu0 %4689
      %4692 = vst.msk [vmem:[%s4480 + $0x8] sm:$0xf] %vm3935, %v4690
      %v4693 = vld [vmem:[#allocation2 + $0x8] sm:$0x4]
      %v4694 = vld [vmem:[#allocation2 + $0x18] sm:$0x4]
      %v4695 = vld [vmem:[#allocation2 + $0x28] sm:$0x4]
      %v4696 = vld [vmem:[#allocation2 + $0x38] sm:$0x4]
      %v4697 = vld [vmem:[#allocation2 + $0x48] sm:$0x4]
      %v4698 = vld [vmem:[#allocation2 + $0x58] sm:$0x4]
      %v4699 = vld [vmem:[#allocation2 + $0x68] sm:$0x4]
      %v4700 = vld [vmem:[#allocation2 + $0x78] sm:$0x4]
      %v4709 = vunpack.c.l.b16 %v4693
      %v4710 = vunpack.c.l.b16 %v4694
      %v4711 = vunpack.c.l.b16 %v4695
      %v4712 = vunpack.c.l.b16 %v4696
      %v4713 = vunpack.c.l.b16 %v4697
      %v4714 = vunpack.c.l.b16 %v4698
      %v4715 = vunpack.c.l.b16 %v4699
      %v4716 = vunpack.c.l.b16 %v4700
      %v4717 = vrot.slane %v4709, 4
      %v4718 = vrot.slane %v4710, 3
      %v4719 = vsel %vm3870, %v4718, %v4717
      %v4720 = vrot.slane %v4711, 2
      %v4721 = vsel %vm3873, %v4720, %v4719
      %v4722 = vrot.slane %v4712, 1
      %v4723 = vsel %vm3876, %v4722, %v4721
      %v4724 = vsel %vm3879, %v4713, %v4723
      %v4725 = vrot.slane %v4714, 7
      %v4726 = vsel %vm3882, %v4725, %v4724
      %v4727 = vrot.slane %v4715, 6
      %v4728 = vsel %vm3885, %v4727, %v4726
      %v4729 = vrot.slane %v4716, 5
      %v4730 = vsel %vm3888, %v4729, %v4728
      %v4731 = vpack.c.b16 %v4730, %v4730
      %4733 = vst.msk [vmem:[%s4480 + $0xc] sm:$0xf] %vm3812, %v4731
      %v4734 = vld [vmem:[#allocation2 + $0x8] sm:$0x4]
      %v4735 = vld [vmem:[#allocation2 + $0x18] sm:$0x4]
      %v4736 = vld [vmem:[#allocation2 + $0x28] sm:$0x4]
      %v4737 = vld [vmem:[#allocation2 + $0x38] sm:$0x4]
      %v4738 = vld [vmem:[#allocation2 + $0x48] sm:$0x4]
      %v4739 = vld [vmem:[#allocation2 + $0x58] sm:$0x4]
      %v4740 = vld [vmem:[#allocation2 + $0x68] sm:$0x4]
      %v4741 = vld [vmem:[#allocation2 + $0x78] sm:$0x4]
      %v4750 = vunpack.c.l.b16 %v4734
      %v4751 = vunpack.c.l.b16 %v4735
      %v4752 = vunpack.c.l.b16 %v4736
      %v4753 = vunpack.c.l.b16 %v4737
      %v4754 = vunpack.c.l.b16 %v4738
      %v4755 = vunpack.c.l.b16 %v4739
      %v4756 = vunpack.c.l.b16 %v4740
      %v4757 = vunpack.c.l.b16 %v4741
      %v4758 = vrot.slane %v4750, 5
      %v4759 = vrot.slane %v4751, 4
      %v4760 = vsel %vm3870, %v4759, %v4758
      %v4761 = vrot.slane %v4752, 3
      %v4762 = vsel %vm3873, %v4761, %v4760
      %v4763 = vrot.slane %v4753, 2
      %v4764 = vsel %vm3876, %v4763, %v4762
      %v4765 = vrot.slane %v4754, 1
      %v4766 = vsel %vm3879, %v4765, %v4764
      %v4767 = vsel %vm3882, %v4755, %v4766
      %v4768 = vrot.slane %v4756, 7
      %v4769 = vsel %vm3885, %v4768, %v4767
      %v4770 = vrot.slane %v4757, 6
      %v4771 = vsel %vm3888, %v4770, %v4769
      %v4772 = vpack.c.b16 %v4771, %v4771
      %s4774 = scalar_lea.vmem [#allocation3], 48
      %4775 = vst.msk [vmem:[%s4774] sm:$0xf] %vm3812, %v4772
      %v4776 = vld [vmem:[#allocation2 + $0x8] sm:$0x8]
      %v4777 = vld [vmem:[#allocation2 + $0x18] sm:$0x8]
      %v4778 = vld [vmem:[#allocation2 + $0x28] sm:$0x8]
      %v4779 = vld [vmem:[#allocation2 + $0x38] sm:$0x8]
      %v4780 = vld [vmem:[#allocation2 + $0x48] sm:$0x8]
      %v4781 = vld [vmem:[#allocation2 + $0x58] sm:$0x8]
      %v4782 = vld [vmem:[#allocation2 + $0x68] sm:$0x8]
      %v4783 = vld [vmem:[#allocation2 + $0x78] sm:$0x8]
      %v4792 = vunpack.c.l.b16 %v4776
      %v4793 = vunpack.c.l.b16 %v4777
      %v4794 = vunpack.c.l.b16 %v4778
      %v4795 = vunpack.c.l.b16 %v4779
      %v4796 = vunpack.c.l.b16 %v4780
      %v4797 = vunpack.c.l.b16 %v4781
      %v4798 = vunpack.c.l.b16 %v4782
      %v4799 = vunpack.c.l.b16 %v4783
      %v4800 = vrot.slane %v4792, 6
      %v4801 = vrot.slane %v4793, 5
      %v4802 = vsel %vm3870, %v4801, %v4800
      %v4803 = vrot.slane %v4794, 4
      %v4804 = vsel %vm3873, %v4803, %v4802
      %v4805 = vrot.slane %v4795, 3
      %v4806 = vsel %vm3876, %v4805, %v4804
      %v4807 = vrot.slane %v4796, 2
      %v4808 = vsel %vm3879, %v4807, %v4806
      %v4809 = vrot.slane %v4797, 1
      %v4810 = vsel %vm3882, %v4809, %v4808
      %v4811 = vsel %vm3885, %v4798, %v4810
      %v4812 = vrot.slane %v4799, 7
      %v4813 = vsel %vm3888, %v4812, %v4811
      %v4814 = vpack.c.b16 %v4813, %v4813
      %4815 = vrot.lane.b32.xlu0 %v4814, 64
      %v4816 = vpop.permute.xlu0 %4815
      %4818 = vst.msk [vmem:[%s4774] sm:$0xf] %vm3935, %v4816
      %v4819 = vld [vmem:[#allocation2 + $0x8] sm:$0x8]
      %v4820 = vld [vmem:[#allocation2 + $0x18] sm:$0x8]
      %v4821 = vld [vmem:[#allocation2 + $0x28] sm:$0x8]
      %v4822 = vld [vmem:[#allocation2 + $0x38] sm:$0x8]
      %v4823 = vld [vmem:[#allocation2 + $0x48] sm:$0x8]
      %v4824 = vld [vmem:[#allocation2 + $0x58] sm:$0x8]
      %v4825 = vld [vmem:[#allocation2 + $0x68] sm:$0x8]
      %v4826 = vld [vmem:[#allocation2 + $0x78] sm:$0x8]
      %v4835 = vunpack.c.l.b16 %v4819
      %v4836 = vunpack.c.l.b16 %v4820
      %v4837 = vunpack.c.l.b16 %v4821
      %v4838 = vunpack.c.l.b16 %v4822
      %v4839 = vunpack.c.l.b16 %v4823
      %v4840 = vunpack.c.l.b16 %v4824
      %v4841 = vunpack.c.l.b16 %v4825
      %v4842 = vunpack.c.l.b16 %v4826
      %v4843 = vrot.slane %v4835, 7
      %v4844 = vrot.slane %v4836, 6
      %v4845 = vsel %vm3870, %v4844, %v4843
      %v4846 = vrot.slane %v4837, 5
      %v4847 = vsel %vm3873, %v4846, %v4845
      %v4848 = vrot.slane %v4838, 4
      %v4849 = vsel %vm3876, %v4848, %v4847
      %v4850 = vrot.slane %v4839, 3
      %v4851 = vsel %vm3879, %v4850, %v4849
      %v4852 = vrot.slane %v4840, 2
      %v4853 = vsel %vm3882, %v4852, %v4851
      %v4854 = vrot.slane %v4841, 1
      %v4855 = vsel %vm3885, %v4854, %v4853
      %v4856 = vsel %vm3888, %v4842, %v4855
      %v4857 = vpack.c.b16 %v4856, %v4856
      %4859 = vst.msk [vmem:[%s4774 + $0x4] sm:$0xf] %vm3812, %v4857
      %v4860 = vld [vmem:[#allocation2 + $0xc] sm:$0x1]
      %v4861 = vld [vmem:[#allocation2 + $0x1c] sm:$0x1]
      %v4862 = vld [vmem:[#allocation2 + $0x2c] sm:$0x1]
      %v4863 = vld [vmem:[#allocation2 + $0x3c] sm:$0x1]
      %v4864 = vld [vmem:[#allocation2 + $0x4c] sm:$0x1]
      %v4865 = vld [vmem:[#allocation2 + $0x5c] sm:$0x1]
      %v4866 = vld [vmem:[#allocation2 + $0x6c] sm:$0x1]
      %v4867 = vld [vmem:[#allocation2 + $0x7c] sm:$0x1]
      %v4876 = vunpack.c.l.b16 %v4860
      %v4877 = vunpack.c.l.b16 %v4861
      %v4878 = vunpack.c.l.b16 %v4862
      %v4879 = vunpack.c.l.b16 %v4863
      %v4880 = vunpack.c.l.b16 %v4864
      %v4881 = vunpack.c.l.b16 %v4865
      %v4882 = vunpack.c.l.b16 %v4866
      %v4883 = vunpack.c.l.b16 %v4867
      %v4884 = vrot.slane %v4877, 7
      %v4885 = vsel %vm3870, %v4884, %v4876
      %v4886 = vrot.slane %v4878, 6
      %v4887 = vsel %vm3873, %v4886, %v4885
      %v4888 = vrot.slane %v4879, 5
      %v4889 = vsel %vm3876, %v4888, %v4887
      %v4890 = vrot.slane %v4880, 4
      %v4891 = vsel %vm3879, %v4890, %v4889
      %v4892 = vrot.slane %v4881, 3
      %v4893 = vsel %vm3882, %v4892, %v4891
      %v4894 = vrot.slane %v4882, 2
      %v4895 = vsel %vm3885, %v4894, %v4893
      %v4896 = vrot.slane %v4883, 1
      %v4897 = vsel %vm3888, %v4896, %v4895
      %v4898 = vpack.c.b16 %v4897, %v4897
      %4899 = vrot.lane.b32.xlu0 %v4898, 64
      %v4900 = vpop.permute.xlu0 %4899
      %4902 = vst.msk [vmem:[%s4774 + $0x4] sm:$0xf] %vm3935, %v4900
      %v4903 = vld [vmem:[#allocation2 + $0xc] sm:$0x1]
      %v4904 = vld [vmem:[#allocation2 + $0x1c] sm:$0x1]
      %v4905 = vld [vmem:[#allocation2 + $0x2c] sm:$0x1]
      %v4906 = vld [vmem:[#allocation2 + $0x3c] sm:$0x1]
      %v4907 = vld [vmem:[#allocation2 + $0x4c] sm:$0x1]
      %v4908 = vld [vmem:[#allocation2 + $0x5c] sm:$0x1]
      %v4909 = vld [vmem:[#allocation2 + $0x6c] sm:$0x1]
      %v4910 = vld [vmem:[#allocation2 + $0x7c] sm:$0x1]
      %v4919 = vunpack.c.l.b16 %v4903
      %v4920 = vunpack.c.l.b16 %v4904
      %v4921 = vunpack.c.l.b16 %v4905
      %v4922 = vunpack.c.l.b16 %v4906
      %v4923 = vunpack.c.l.b16 %v4907
      %v4924 = vunpack.c.l.b16 %v4908
      %v4925 = vunpack.c.l.b16 %v4909
      %v4926 = vunpack.c.l.b16 %v4910
      %v4927 = vrot.slane %v4919, 1
      %v4928 = vsel %vm3870, %v4920, %v4927
      %v4929 = vrot.slane %v4921, 7
      %v4930 = vsel %vm3873, %v4929, %v4928
      %v4931 = vrot.slane %v4922, 6
      %v4932 = vsel %vm3876, %v4931, %v4930
      %v4933 = vrot.slane %v4923, 5
      %v4934 = vsel %vm3879, %v4933, %v4932
      %v4935 = vrot.slane %v4924, 4
      %v4936 = vsel %vm3882, %v4935, %v4934
      %v4937 = vrot.slane %v4925, 3
      %v4938 = vsel %vm3885, %v4937, %v4936
      %v4939 = vrot.slane %v4926, 2
      %v4940 = vsel %vm3888, %v4939, %v4938
      %v4941 = vpack.c.b16 %v4940, %v4940
      %4943 = vst.msk [vmem:[%s4774 + $0x8] sm:$0xf] %vm3812, %v4941
      %v4944 = vld [vmem:[#allocation2 + $0xc] sm:$0x2]
      %v4945 = vld [vmem:[#allocation2 + $0x1c] sm:$0x2]
      %v4946 = vld [vmem:[#allocation2 + $0x2c] sm:$0x2]
      %v4947 = vld [vmem:[#allocation2 + $0x3c] sm:$0x2]
      %v4948 = vld [vmem:[#allocation2 + $0x4c] sm:$0x2]
      %v4949 = vld [vmem:[#allocation2 + $0x5c] sm:$0x2]
      %v4950 = vld [vmem:[#allocation2 + $0x6c] sm:$0x2]
      %v4951 = vld [vmem:[#allocation2 + $0x7c] sm:$0x2]
      %v4960 = vunpack.c.l.b16 %v4944
      %v4961 = vunpack.c.l.b16 %v4945
      %v4962 = vunpack.c.l.b16 %v4946
      %v4963 = vunpack.c.l.b16 %v4947
      %v4964 = vunpack.c.l.b16 %v4948
      %v4965 = vunpack.c.l.b16 %v4949
      %v4966 = vunpack.c.l.b16 %v4950
      %v4967 = vunpack.c.l.b16 %v4951
      %v4968 = vrot.slane %v4960, 2
      %v4969 = vrot.slane %v4961, 1
      %v4970 = vsel %vm3870, %v4969, %v4968
      %v4971 = vsel %vm3873, %v4962, %v4970
      %v4972 = vrot.slane %v4963, 7
      %v4973 = vsel %vm3876, %v4972, %v4971
      %v4974 = vrot.slane %v4964, 6
      %v4975 = vsel %vm3879, %v4974, %v4973
      %v4976 = vrot.slane %v4965, 5
      %v4977 = vsel %vm3882, %v4976, %v4975
      %v4978 = vrot.slane %v4966, 4
      %v4979 = vsel %vm3885, %v4978, %v4977
      %v4980 = vrot.slane %v4967, 3
      %v4981 = vsel %vm3888, %v4980, %v4979
      %v4982 = vpack.c.b16 %v4981, %v4981
      %4983 = vrot.lane.b32.xlu0 %v4982, 64
      %v4984 = vpop.permute.xlu0 %4983
      %4986 = vst.msk [vmem:[%s4774 + $0x8] sm:$0xf] %vm3935, %v4984
      %v4987 = vld [vmem:[#allocation2 + $0xc] sm:$0x2]
      %v4988 = vld [vmem:[#allocation2 + $0x1c] sm:$0x2]
      %v4989 = vld [vmem:[#allocation2 + $0x2c] sm:$0x2]
      %v4990 = vld [vmem:[#allocation2 + $0x3c] sm:$0x2]
      %v4991 = vld [vmem:[#allocation2 + $0x4c] sm:$0x2]
      %v4992 = vld [vmem:[#allocation2 + $0x5c] sm:$0x2]
      %v4993 = vld [vmem:[#allocation2 + $0x6c] sm:$0x2]
      %v4994 = vld [vmem:[#allocation2 + $0x7c] sm:$0x2]
      %v5003 = vunpack.c.l.b16 %v4987
      %v5004 = vunpack.c.l.b16 %v4988
      %v5005 = vunpack.c.l.b16 %v4989
      %v5006 = vunpack.c.l.b16 %v4990
      %v5007 = vunpack.c.l.b16 %v4991
      %v5008 = vunpack.c.l.b16 %v4992
      %v5009 = vunpack.c.l.b16 %v4993
      %v5010 = vunpack.c.l.b16 %v4994
      %v5011 = vrot.slane %v5003, 3
      %v5012 = vrot.slane %v5004, 2
      %v5013 = vsel %vm3870, %v5012, %v5011
      %v5014 = vrot.slane %v5005, 1
      %v5015 = vsel %vm3873, %v5014, %v5013
      %v5016 = vsel %vm3876, %v5006, %v5015
      %v5017 = vrot.slane %v5007, 7
      %v5018 = vsel %vm3879, %v5017, %v5016
      %v5019 = vrot.slane %v5008, 6
      %v5020 = vsel %vm3882, %v5019, %v5018
      %v5021 = vrot.slane %v5009, 5
      %v5022 = vsel %vm3885, %v5021, %v5020
      %v5023 = vrot.slane %v5010, 4
      %v5024 = vsel %vm3888, %v5023, %v5022
      %v5025 = vpack.c.b16 %v5024, %v5024
      %5027 = vst.msk [vmem:[%s4774 + $0xc] sm:$0xf] %vm3812, %v5025
      %v5028 = vld [vmem:[#allocation2 + $0xc] sm:$0x4]
      %v5029 = vld [vmem:[#allocation2 + $0x1c] sm:$0x4]
      %v5030 = vld [vmem:[#allocation2 + $0x2c] sm:$0x4]
      %v5031 = vld [vmem:[#allocation2 + $0x3c] sm:$0x4]
      %v5032 = vld [vmem:[#allocation2 + $0x4c] sm:$0x4]
      %v5033 = vld [vmem:[#allocation2 + $0x5c] sm:$0x4]
      %v5034 = vld [vmem:[#allocation2 + $0x6c] sm:$0x4]
      %v5035 = vld [vmem:[#allocation2 + $0x7c] sm:$0x4]
      %v5044 = vunpack.c.l.b16 %v5028
      %v5045 = vunpack.c.l.b16 %v5029
      %v5046 = vunpack.c.l.b16 %v5030
      %v5047 = vunpack.c.l.b16 %v5031
      %v5048 = vunpack.c.l.b16 %v5032
      %v5049 = vunpack.c.l.b16 %v5033
      %v5050 = vunpack.c.l.b16 %v5034
      %v5051 = vunpack.c.l.b16 %v5035
      %v5052 = vrot.slane %v5044, 4
      %v5053 = vrot.slane %v5045, 3
      %v5054 = vsel %vm3870, %v5053, %v5052
      %v5055 = vrot.slane %v5046, 2
      %v5056 = vsel %vm3873, %v5055, %v5054
      %v5057 = vrot.slane %v5047, 1
      %v5058 = vsel %vm3876, %v5057, %v5056
      %v5059 = vsel %vm3879, %v5048, %v5058
      %v5060 = vrot.slane %v5049, 7
      %v5061 = vsel %vm3882, %v5060, %v5059
      %v5062 = vrot.slane %v5050, 6
      %v5063 = vsel %vm3885, %v5062, %v5061
      %v5064 = vrot.slane %v5051, 5
      %v5065 = vsel %vm3888, %v5064, %v5063
      %v5066 = vpack.c.b16 %v5065, %v5065
      %s5068 = scalar_lea.vmem [#allocation3], 64
      %5069 = vst.msk [vmem:[%s5068] sm:$0xf] %vm3812, %v5066
      %v5070 = vld [vmem:[#allocation3] sm:$0xff]
      %v5071 = vld [vmem:[#allocation3 + $0x8] sm:$0xff]
      %v5072 = vld [vmem:[%s3] sm:$0xf]
      %v5073 = vld [vmem:[%s3 + $0x4] sm:$0xf]
      %v5074 = vld [vmem:[%s3 + $0x8] sm:$0xf]
      %v5075 = vld [vmem:[%s3 + $0xc] sm:$0xf]
      %v5076 = vld [vmem:[%s3 + $0x10] sm:$0xf]
      %v5077 = vld [vmem:[%s3 + $0x14] sm:$0xf]
      %v5078 = vld [vmem:[%s3 + $0x18] sm:$0xf]
      %v5079 = vld [vmem:[%s3 + $0x1c] sm:$0xf]
      %v5080 = vld [vmem:[%s3 + $0x20] sm:$0xf]
      %v5081 = vld [vmem:[%s3 + $0x24] sm:$0xf]
      %v5082 = vld [vmem:[%s3 + $0x28] sm:$0xf]
      %v5083 = vld [vmem:[%s3 + $0x2c] sm:$0xf]
      %v5084 = vld [vmem:[%s3 + $0x30] sm:$0xf]
      %v5085 = vld [vmem:[%s3 + $0x34] sm:$0xf]
      %v5086 = vld [vmem:[%s3 + $0x38] sm:$0xf]
      %v5087 = vld [vmem:[%s3 + $0x3c] sm:$0xf]
      %v5088 = vld [vmem:[%s3 + $0x40] sm:$0xf]
      %v5089 = vld [vmem:[%s3 + $0x44] sm:$0xf]
      %v5090 = vld [vmem:[%s3 + $0x48] sm:$0xf]
      %v5091 = vld [vmem:[%s3 + $0x4c] sm:$0xf]
      %v5092 = vld [vmem:[%s3 + $0x50] sm:$0xf]
      %v5093 = vld [vmem:[%s3 + $0x54] sm:$0xf]
      %v5094 = vld [vmem:[%s3 + $0x58] sm:$0xf]
      %v5095 = vld [vmem:[%s3 + $0x5c] sm:$0xf]
      %v5096 = vld [vmem:[%s3 + $0x60] sm:$0xf]
      %v5097 = vld [vmem:[%s3 + $0x64] sm:$0xf]
      %v5098 = vld [vmem:[%s3 + $0x68] sm:$0xf]
      %v5099 = vld [vmem:[%s3 + $0x6c] sm:$0xf]
      %v5100 = vld [vmem:[%s3 + $0x70] sm:$0xf]
      %v5101 = vld [vmem:[%s3 + $0x74] sm:$0xf]
      %v5102 = vld [vmem:[%s3 + $0x78] sm:$0xf]
      %v5103 = vld [vmem:[%s3 + $0x7c] sm:$0xf]
      %v5104 = vld [vmem:[%s3 + $0x80] sm:$0xf]
      %v5105 = vld [vmem:[%s3 + $0x84] sm:$0xf]
      %v5106 = vld [vmem:[%s3 + $0x88] sm:$0xf]
      %v5107 = vld [vmem:[%s3 + $0x8c] sm:$0xf]
      %v5108 = vld [vmem:[%s3 + $0x90] sm:$0xf]
      %v5109 = vld [vmem:[%s3 + $0x94] sm:$0xf]
      %v5110 = vld [vmem:[%s3 + $0x98] sm:$0xf]
      %v5111 = vld [vmem:[%s3 + $0x9c] sm:$0xf]
      %v5112 = vld [vmem:[%s3 + $0xa0] sm:$0xf]
      %v5113 = vld [vmem:[%s3 + $0xa4] sm:$0xf]
      %v5114 = vld [vmem:[%s3 + $0xa8] sm:$0xf]
      %v5115 = vld [vmem:[%s3 + $0xac] sm:$0xf]
      %v5116 = vld [vmem:[%s3 + $0xb0] sm:$0xf]
      %v5117 = vld [vmem:[%s3 + $0xb4] sm:$0xf]
      %v5118 = vld [vmem:[%s3 + $0xb8] sm:$0xf]
      %v5119 = vld [vmem:[%s3 + $0xbc] sm:$0xf]
      %v5120 = vld [vmem:[%s3 + $0xc0] sm:$0xf]
      %v5121 = vld [vmem:[%s3 + $0xc4] sm:$0xf]
      %v5122 = vld [vmem:[%s3 + $0xc8] sm:$0xf]
      %v5123 = vld [vmem:[%s3 + $0xcc] sm:$0xf]
      %v5124 = vld [vmem:[%s3 + $0xd0] sm:$0xf]
      %v5125 = vld [vmem:[%s3 + $0xd4] sm:$0xf]
      %v5126 = vld [vmem:[%s3 + $0xd8] sm:$0xf]
      %v5127 = vld [vmem:[%s3 + $0xdc] sm:$0xf]
      %v5128 = vld [vmem:[%s4186] sm:$0xff]
      %v5129 = vld [vmem:[%s4186 + $0x8] sm:$0xff]
      %v5130 = vld [vmem:[%s3 + $0xe0] sm:$0xf]
      %v5131 = vld [vmem:[%s3 + $0xe4] sm:$0xf]
      %v5132 = vld [vmem:[%s3 + $0xe8] sm:$0xf]
      %v5133 = vld [vmem:[%s3 + $0xec] sm:$0xf]
      %v5134 = vld [vmem:[%s3 + $0xf0] sm:$0xf]
      %v5135 = vld [vmem:[%s3 + $0xf4] sm:$0xf]
      %v5136 = vld [vmem:[%s3 + $0xf8] sm:$0xf]
      %v5137 = vld [vmem:[%s3 + $0xfc] sm:$0xf]
      %v5138 = vld [vmem:[%s3 + $0x100] sm:$0xf]
      %v5139 = vld [vmem:[%s3 + $0x104] sm:$0xf]
      %v5140 = vld [vmem:[%s3 + $0x108] sm:$0xf]
      %v5141 = vld [vmem:[%s3 + $0x10c] sm:$0xf]
      %v5142 = vld [vmem:[%s3 + $0x110] sm:$0xf]
      %v5143 = vld [vmem:[%s3 + $0x114] sm:$0xf]
      %v5144 = vld [vmem:[%s3 + $0x118] sm:$0xf]
      %v5145 = vld [vmem:[%s3 + $0x11c] sm:$0xf]
      %v5146 = vld [vmem:[%s3 + $0x120] sm:$0xf]
      %v5147 = vld [vmem:[%s3 + $0x124] sm:$0xf]
      %v5148 = vld [vmem:[%s3 + $0x128] sm:$0xf]
      %v5149 = vld [vmem:[%s3 + $0x12c] sm:$0xf]
      %v5150 = vld [vmem:[%s3 + $0x130] sm:$0xf]
      %v5151 = vld [vmem:[%s3 + $0x134] sm:$0xf]
      %v5152 = vld [vmem:[%s3 + $0x138] sm:$0xf]
      %v5153 = vld [vmem:[%s3 + $0x13c] sm:$0xf]
      %v5154 = vld [vmem:[%s3 + $0x140] sm:$0xf]
      %v5155 = vld [vmem:[%s3 + $0x144] sm:$0xf]
      %v5156 = vld [vmem:[%s3 + $0x148] sm:$0xf]
      %v5157 = vld [vmem:[%s3 + $0x14c] sm:$0xf]
      %v5158 = vld [vmem:[%s3 + $0x150] sm:$0xf]
      %v5159 = vld [vmem:[%s3 + $0x154] sm:$0xf]
      %v5160 = vld [vmem:[%s3 + $0x158] sm:$0xf]
      %v5161 = vld [vmem:[%s3 + $0x15c] sm:$0xf]
      %v5162 = vld [vmem:[%s3 + $0x160] sm:$0xf]
      %v5163 = vld [vmem:[%s3 + $0x164] sm:$0xf]
      %v5164 = vld [vmem:[%s3 + $0x168] sm:$0xf]
      %v5165 = vld [vmem:[%s3 + $0x16c] sm:$0xf]
      %v5166 = vld [vmem:[%s3 + $0x170] sm:$0xf]
      %v5167 = vld [vmem:[%s3 + $0x174] sm:$0xf]
      %v5168 = vld [vmem:[%s3 + $0x178] sm:$0xf]
      %v5169 = vld [vmem:[%s3 + $0x17c] sm:$0xf]
      %v5170 = vld [vmem:[%s3 + $0x180] sm:$0xf]
      %v5171 = vld [vmem:[%s3 + $0x184] sm:$0xf]
      %v5172 = vld [vmem:[%s3 + $0x188] sm:$0xf]
      %v5173 = vld [vmem:[%s3 + $0x18c] sm:$0xf]
      %v5174 = vld [vmem:[%s3 + $0x190] sm:$0xf]
      %v5175 = vld [vmem:[%s3 + $0x194] sm:$0xf]
      %v5176 = vld [vmem:[%s3 + $0x198] sm:$0xf]
      %v5177 = vld [vmem:[%s3 + $0x19c] sm:$0xf]
      %v5178 = vld [vmem:[%s3 + $0x1a0] sm:$0xf]
      %v5179 = vld [vmem:[%s3 + $0x1a4] sm:$0xf]
      %v5180 = vld [vmem:[%s3 + $0x1a8] sm:$0xf]
      %v5181 = vld [vmem:[%s3 + $0x1ac] sm:$0xf]
      %v5182 = vld [vmem:[%s3 + $0x1b0] sm:$0xf]
      %v5183 = vld [vmem:[%s3 + $0x1b4] sm:$0xf]
      %v5184 = vld [vmem:[%s3 + $0x1b8] sm:$0xf]
      %v5185 = vld [vmem:[%s3 + $0x1bc] sm:$0xf]
      %v5188 = vunpack.c.l.b16 %v5128
      %v5189 = vunpack.c.h.b16 %v5128
      %v5190 = vunpack.c.l.b16 %v5129
      %v5191 = vunpack.c.h.b16 %v5129
      %v5192 = vpack.c.b16 %v5188, %v5188
      %v5193 = vpack.c.b16 %v5189, %v5189
      %v5194 = vpack.c.b16 %v5190, %v5190
      %v5195 = vpack.c.b16 %v5191, %v5191
      %v5255 = vunpack.c.l.b16 %v5130
      %v5256 = vunpack.c.l.b16 %v5131
      %v5257 = vunpack.c.l.b16 %v5132
      %v5258 = vunpack.c.l.b16 %v5133
      %v5259 = vunpack.c.l.b16 %v5134
      %v5260 = vunpack.c.l.b16 %v5135
      %v5261 = vunpack.c.l.b16 %v5136
      %v5262 = vunpack.c.l.b16 %v5137
      %v5263 = vunpack.c.l.b16 %v5138
      %v5264 = vunpack.c.l.b16 %v5139
      %v5265 = vunpack.c.l.b16 %v5140
      %v5266 = vunpack.c.l.b16 %v5141
      %v5267 = vunpack.c.l.b16 %v5142
      %v5268 = vunpack.c.l.b16 %v5143
      %v5269 = vunpack.c.l.b16 %v5144
      %v5270 = vunpack.c.l.b16 %v5145
      %v5271 = vunpack.c.l.b16 %v5146
      %v5272 = vunpack.c.l.b16 %v5147
      %v5273 = vunpack.c.l.b16 %v5148
      %v5274 = vunpack.c.l.b16 %v5149
      %v5275 = vunpack.c.l.b16 %v5150
      %v5276 = vunpack.c.l.b16 %v5151
      %v5277 = vunpack.c.l.b16 %v5152
      %v5278 = vunpack.c.l.b16 %v5153
      %v5279 = vunpack.c.l.b16 %v5154
      %v5280 = vunpack.c.l.b16 %v5155
      %v5281 = vunpack.c.l.b16 %v5156
      %v5282 = vunpack.c.l.b16 %v5157
      %v5283 = vunpack.c.l.b16 %v5158
      %v5284 = vunpack.c.l.b16 %v5159
      %v5285 = vunpack.c.l.b16 %v5160
      %v5286 = vunpack.c.l.b16 %v5161
      %v5287 = vunpack.c.l.b16 %v5162
      %v5288 = vunpack.c.l.b16 %v5163
      %v5289 = vunpack.c.l.b16 %v5164
      %v5290 = vunpack.c.l.b16 %v5165
      %v5291 = vunpack.c.l.b16 %v5166
      %v5292 = vunpack.c.l.b16 %v5167
      %v5293 = vunpack.c.l.b16 %v5168
      %v5294 = vunpack.c.l.b16 %v5169
      %v5295 = vunpack.c.l.b16 %v5170
      %v5296 = vunpack.c.l.b16 %v5171
      %v5297 = vunpack.c.l.b16 %v5172
      %v5298 = vunpack.c.l.b16 %v5173
      %v5299 = vunpack.c.l.b16 %v5174
      %v5300 = vunpack.c.l.b16 %v5175
      %v5301 = vunpack.c.l.b16 %v5176
      %v5302 = vunpack.c.l.b16 %v5177
      %v5303 = vunpack.c.l.b16 %v5178
      %v5304 = vunpack.c.l.b16 %v5179
      %v5305 = vunpack.c.l.b16 %v5180
      %v5306 = vunpack.c.l.b16 %v5181
      %v5307 = vunpack.c.l.b16 %v5182
      %v5308 = vunpack.c.l.b16 %v5183
      %v5309 = vunpack.c.l.b16 %v5184
      %v5310 = vunpack.c.l.b16 %v5185
      %v5311 = vpack.c.b16 %v5256, %v5255
      %v5312 = vpack.c.b16 %v5258, %v5257
      %v5313 = vpack.c.b16 %v5260, %v5259
      %v5314 = vpack.c.b16 %v5262, %v5261
      %v5315 = vpack.c.b16 %v5264, %v5263
      %v5316 = vpack.c.b16 %v5266, %v5265
      %v5317 = vpack.c.b16 %v5268, %v5267
      %v5318 = vpack.c.b16 %v5270, %v5269
      %v5319 = vpack.c.b16 %v5272, %v5271
      %v5320 = vpack.c.b16 %v5274, %v5273
      %v5321 = vpack.c.b16 %v5276, %v5275
      %v5322 = vpack.c.b16 %v5278, %v5277
      %v5323 = vpack.c.b16 %v5280, %v5279
      %v5324 = vpack.c.b16 %v5282, %v5281
      %v5325 = vpack.c.b16 %v5284, %v5283
      %v5326 = vpack.c.b16 %v5286, %v5285
      %v5327 = vpack.c.b16 %v5288, %v5287
      %v5328 = vpack.c.b16 %v5290, %v5289
      %v5329 = vpack.c.b16 %v5292, %v5291
      %v5330 = vpack.c.b16 %v5294, %v5293
      %v5331 = vpack.c.b16 %v5296, %v5295
      %v5332 = vpack.c.b16 %v5298, %v5297
      %v5333 = vpack.c.b16 %v5300, %v5299
      %v5334 = vpack.c.b16 %v5302, %v5301
      %v5335 = vpack.c.b16 %v5304, %v5303
      %v5336 = vpack.c.b16 %v5306, %v5305
      %v5337 = vpack.c.b16 %v5308, %v5307
      %v5338 = vpack.c.b16 %v5310, %v5309
      %v5368 = vsel %vm1791, %v5195, 0
      %5370 = vmatprep.subr.bf16.mxu0 0
      %5371 = vmatpush1.bf16.msra.mxu0 %v5318
      %5372 = vmatprep.subr.bf16.mxu0 0
      %5373 = vmatpush1.bf16.msra.mxu0 %v5317
      %5374 = vmatprep.subr.bf16.mxu0 0
      %5375 = vmatpush1.bf16.msra.mxu0 %v5316
      %5376 = vmatprep.subr.bf16.mxu0 0
      %5377 = vmatpush1.bf16.msra.mxu0 %v5315
      %5378 = vmatprep.subr.bf16.mxu0 0
      %5379 = vmatpush1.bf16.msra.mxu0 %v5314
      %5380 = vmatprep.subr.bf16.mxu0 0
      %5381 = vmatpush1.bf16.msra.mxu0 %v5313
      %5382 = vmatprep.subr.bf16.mxu0 0
      %5383 = vmatpush1.bf16.msra.mxu0 %v5312
      %5384 = vmatprep.subr.bf16.mxu0 0
      %5385 = vmatpush1.bf16.msra.mxu0 %v5311
      %5386 = vmatprep.subr.bf16.mxu0 0
      %5387 = vmatpush2.bf16.msra.mxu0 %v5326
      %5388 = vmatprep.subr.bf16.mxu0 0
      %5389 = vmatpush2.bf16.msra.mxu0 %v5325
      %5390 = vmatprep.subr.bf16.mxu0 0
      %5391 = vmatpush2.bf16.msra.mxu0 %v5324
      %5392 = vmatprep.subr.bf16.mxu0 0
      %5393 = vmatpush2.bf16.msra.mxu0 %v5323
      %5394 = vmatprep.subr.bf16.mxu0 0
      %5395 = vmatpush2.bf16.msra.mxu0 %v5322
      %5396 = vmatprep.subr.bf16.mxu0 0
      %5397 = vmatpush2.bf16.msra.mxu0 %v5321
      %5398 = vmatprep.subr.bf16.mxu0 0
      %5399 = vmatpush2.bf16.msra.mxu0 %v5320
      %5400 = vmatprep.subr.bf16.mxu0 0
      %5401 = vmatpush2.bf16.msra.mxu0 %v5319
      %5402 = vmatprep.mubr.bf16.mxu0 %v5193
      %5403 = vmatmul.mubr.bf16.gmra.mxu0 %v5192
      %v5404 = vpop.f32.mrf.mxu0
      %v5405 = vadd.f32 0.0, %v5404
      %v5406 = vpop.f32.mrf.mxu0
      %v5407 = vpop.f32.mrf.mxu0
      %v5408 = vpop.f32.mrf.mxu0
      %5409 = vdwg.mxu0
      %5410 = vmatprep.subr.bf16.mxu0 0
      %5411 = vmatpush1.bf16.msra.mxu0 %v5334
      %5412 = vmatprep.subr.bf16.mxu0 0
      %5413 = vmatpush1.bf16.msra.mxu0 %v5333
      %5414 = vmatprep.subr.bf16.mxu0 0
      %5415 = vmatpush1.bf16.msra.mxu0 %v5332
      %5416 = vmatprep.subr.bf16.mxu0 0
      %5417 = vmatpush1.bf16.msra.mxu0 %v5331
      %5418 = vmatprep.subr.bf16.mxu0 0
      %5419 = vmatpush1.bf16.msra.mxu0 %v5330
      %5420 = vmatprep.subr.bf16.mxu0 0
      %5421 = vmatpush1.bf16.msra.mxu0 %v5329
      %5422 = vmatprep.subr.bf16.mxu0 0
      %5423 = vmatpush1.bf16.msra.mxu0 %v5328
      %5424 = vmatprep.subr.bf16.mxu0 0
      %5425 = vmatpush1.bf16.msra.mxu0 %v5327
      %5426 = vmatprep.subr.bf16.mxu0 0
      %5427 = vmatpush2.bf16.msra.mxu0 0
      %5428 = vmatprep.subr.bf16.mxu0 0
      %5429 = vmatpush2.bf16.msra.mxu0 0
      %5430 = vmatprep.subr.bf16.mxu0 0
      %5431 = vmatpush2.bf16.msra.mxu0 0
      %5432 = vmatprep.subr.bf16.mxu0 0
      %5433 = vmatpush2.bf16.msra.mxu0 0
      %5434 = vmatprep.subr.bf16.mxu0 0
      %5435 = vmatpush2.bf16.msra.mxu0 %v5338
      %5436 = vmatprep.subr.bf16.mxu0 0
      %5437 = vmatpush2.bf16.msra.mxu0 %v5337
      %5438 = vmatprep.subr.bf16.mxu0 0
      %5439 = vmatpush2.bf16.msra.mxu0 %v5336
      %5440 = vmatprep.subr.bf16.mxu0 0
      %5441 = vmatpush2.bf16.msra.mxu0 %v5335
      %5442 = vmatprep.mubr.bf16.mxu0 %v5368
      %5443 = vmatmul.mubr.bf16.gmra.mxu0 %v5194
      %v5444 = vpop.f32.mrf.mxu0
      %v5445 = vadd.f32 %v5405, %v5444
      %v5446 = vpop.f32.mrf.mxu0
      %v5447 = vpop.f32.mrf.mxu0
      %v5448 = vpop.f32.mrf.mxu0
      %5449 = vdwg.mxu0
      %v5452 = vunpack.c.l.b16 %v5070
      %v5453 = vunpack.c.h.b16 %v5070
      %v5454 = vunpack.c.l.b16 %v5071
      %v5455 = vunpack.c.h.b16 %v5071
      %v5456 = vpack.c.b16 %v5452, %v5452
      %v5457 = vpack.c.b16 %v5453, %v5453
      %v5458 = vpack.c.b16 %v5454, %v5454
      %v5459 = vpack.c.b16 %v5455, %v5455
      %v5519 = vunpack.c.l.b16 %v5072
      %v5520 = vunpack.c.l.b16 %v5073
      %v5521 = vunpack.c.l.b16 %v5074
      %v5522 = vunpack.c.l.b16 %v5075
      %v5523 = vunpack.c.l.b16 %v5076
      %v5524 = vunpack.c.l.b16 %v5077
      %v5525 = vunpack.c.l.b16 %v5078
      %v5526 = vunpack.c.l.b16 %v5079
      %v5527 = vunpack.c.l.b16 %v5080
      %v5528 = vunpack.c.l.b16 %v5081
      %v5529 = vunpack.c.l.b16 %v5082
      %v5530 = vunpack.c.l.b16 %v5083
      %v5531 = vunpack.c.l.b16 %v5084
      %v5532 = vunpack.c.l.b16 %v5085
      %v5533 = vunpack.c.l.b16 %v5086
      %v5534 = vunpack.c.l.b16 %v5087
      %v5535 = vunpack.c.l.b16 %v5088
      %v5536 = vunpack.c.l.b16 %v5089
      %v5537 = vunpack.c.l.b16 %v5090
      %v5538 = vunpack.c.l.b16 %v5091
      %v5539 = vunpack.c.l.b16 %v5092
      %v5540 = vunpack.c.l.b16 %v5093
      %v5541 = vunpack.c.l.b16 %v5094
      %v5542 = vunpack.c.l.b16 %v5095
      %v5543 = vunpack.c.l.b16 %v5096
      %v5544 = vunpack.c.l.b16 %v5097
      %v5545 = vunpack.c.l.b16 %v5098
      %v5546 = vunpack.c.l.b16 %v5099
      %v5547 = vunpack.c.l.b16 %v5100
      %v5548 = vunpack.c.l.b16 %v5101
      %v5549 = vunpack.c.l.b16 %v5102
      %v5550 = vunpack.c.l.b16 %v5103
      %v5551 = vunpack.c.l.b16 %v5104
      %v5552 = vunpack.c.l.b16 %v5105
      %v5553 = vunpack.c.l.b16 %v5106
      %v5554 = vunpack.c.l.b16 %v5107
      %v5555 = vunpack.c.l.b16 %v5108
      %v5556 = vunpack.c.l.b16 %v5109
      %v5557 = vunpack.c.l.b16 %v5110
      %v5558 = vunpack.c.l.b16 %v5111
      %v5559 = vunpack.c.l.b16 %v5112
      %v5560 = vunpack.c.l.b16 %v5113
      %v5561 = vunpack.c.l.b16 %v5114
      %v5562 = vunpack.c.l.b16 %v5115
      %v5563 = vunpack.c.l.b16 %v5116
      %v5564 = vunpack.c.l.b16 %v5117
      %v5565 = vunpack.c.l.b16 %v5118
      %v5566 = vunpack.c.l.b16 %v5119
      %v5567 = vunpack.c.l.b16 %v5120
      %v5568 = vunpack.c.l.b16 %v5121
      %v5569 = vunpack.c.l.b16 %v5122
      %v5570 = vunpack.c.l.b16 %v5123
      %v5571 = vunpack.c.l.b16 %v5124
      %v5572 = vunpack.c.l.b16 %v5125
      %v5573 = vunpack.c.l.b16 %v5126
      %v5574 = vunpack.c.l.b16 %v5127
      %v5575 = vpack.c.b16 %v5520, %v5519
      %v5576 = vpack.c.b16 %v5522, %v5521
      %v5577 = vpack.c.b16 %v5524, %v5523
      %v5578 = vpack.c.b16 %v5526, %v5525
      %v5579 = vpack.c.b16 %v5528, %v5527
      %v5580 = vpack.c.b16 %v5530, %v5529
      %v5581 = vpack.c.b16 %v5532, %v5531
      %v5582 = vpack.c.b16 %v5534, %v5533
      %v5583 = vpack.c.b16 %v5536, %v5535
      %v5584 = vpack.c.b16 %v5538, %v5537
      %v5585 = vpack.c.b16 %v5540, %v5539
      %v5586 = vpack.c.b16 %v5542, %v5541
      %v5587 = vpack.c.b16 %v5544, %v5543
      %v5588 = vpack.c.b16 %v5546, %v5545
      %v5589 = vpack.c.b16 %v5548, %v5547
      %v5590 = vpack.c.b16 %v5550, %v5549
      %v5591 = vpack.c.b16 %v5552, %v5551
      %v5592 = vpack.c.b16 %v5554, %v5553
      %v5593 = vpack.c.b16 %v5556, %v5555
      %v5594 = vpack.c.b16 %v5558, %v5557
      %v5595 = vpack.c.b16 %v5560, %v5559
      %v5596 = vpack.c.b16 %v5562, %v5561
      %v5597 = vpack.c.b16 %v5564, %v5563
      %v5598 = vpack.c.b16 %v5566, %v5565
      %v5599 = vpack.c.b16 %v5568, %v5567
      %v5600 = vpack.c.b16 %v5570, %v5569
      %v5601 = vpack.c.b16 %v5572, %v5571
      %v5602 = vpack.c.b16 %v5574, %v5573
      %v5632 = vsel %vm1791, %v5459, 0
      %5634 = vmatprep.subr.bf16.mxu0 0
      %5635 = vmatpush1.bf16.msra.mxu0 %v5582
      %5636 = vmatprep.subr.bf16.mxu0 0
      %5637 = vmatpush1.bf16.msra.mxu0 %v5581
      %5638 = vmatprep.subr.bf16.mxu0 0
      %5639 = vmatpush1.bf16.msra.mxu0 %v5580
      %5640 = vmatprep.subr.bf16.mxu0 0
      %5641 = vmatpush1.bf16.msra.mxu0 %v5579
      %5642 = vmatprep.subr.bf16.mxu0 0
      %5643 = vmatpush1.bf16.msra.mxu0 %v5578
      %5644 = vmatprep.subr.bf16.mxu0 0
      %5645 = vmatpush1.bf16.msra.mxu0 %v5577
      %5646 = vmatprep.subr.bf16.mxu0 0
      %5647 = vmatpush1.bf16.msra.mxu0 %v5576
      %5648 = vmatprep.subr.bf16.mxu0 0
      %5649 = vmatpush1.bf16.msra.mxu0 %v5575
      %5650 = vmatprep.subr.bf16.mxu0 0
      %5651 = vmatpush2.bf16.msra.mxu0 %v5590
      %5652 = vmatprep.subr.bf16.mxu0 0
      %5653 = vmatpush2.bf16.msra.mxu0 %v5589
      %5654 = vmatprep.subr.bf16.mxu0 0
      %5655 = vmatpush2.bf16.msra.mxu0 %v5588
      %5656 = vmatprep.subr.bf16.mxu0 0
      %5657 = vmatpush2.bf16.msra.mxu0 %v5587
      %5658 = vmatprep.subr.bf16.mxu0 0
      %5659 = vmatpush2.bf16.msra.mxu0 %v5586
      %5660 = vmatprep.subr.bf16.mxu0 0
      %5661 = vmatpush2.bf16.msra.mxu0 %v5585
      %5662 = vmatprep.subr.bf16.mxu0 0
      %5663 = vmatpush2.bf16.msra.mxu0 %v5584
      %5664 = vmatprep.subr.bf16.mxu0 0
      %5665 = vmatpush2.bf16.msra.mxu0 %v5583
      %5666 = vmatprep.mubr.bf16.mxu0 %v5457
      %5667 = vmatmul.mubr.bf16.gmra.mxu0 %v5456
      %v5668 = vpop.f32.mrf.mxu0
      %v5669 = vadd.f32 %v5445, %v5668
      %v5670 = vpop.f32.mrf.mxu0
      %v5671 = vpop.f32.mrf.mxu0
      %v5672 = vpop.f32.mrf.mxu0
      %5673 = vdwg.mxu0
      %5674 = vmatprep.subr.bf16.mxu0 0
      %5675 = vmatpush1.bf16.msra.mxu0 %v5598
      %5676 = vmatprep.subr.bf16.mxu0 0
      %5677 = vmatpush1.bf16.msra.mxu0 %v5597
      %5678 = vmatprep.subr.bf16.mxu0 0
      %5679 = vmatpush1.bf16.msra.mxu0 %v5596
      %5680 = vmatprep.subr.bf16.mxu0 0
      %5681 = vmatpush1.bf16.msra.mxu0 %v5595
      %5682 = vmatprep.subr.bf16.mxu0 0
      %5683 = vmatpush1.bf16.msra.mxu0 %v5594
      %5684 = vmatprep.subr.bf16.mxu0 0
      %5685 = vmatpush1.bf16.msra.mxu0 %v5593
      %5686 = vmatprep.subr.bf16.mxu0 0
      %5687 = vmatpush1.bf16.msra.mxu0 %v5592
      %5688 = vmatprep.subr.bf16.mxu0 0
      %5689 = vmatpush1.bf16.msra.mxu0 %v5591
      %5690 = vmatprep.subr.bf16.mxu0 0
      %5691 = vmatpush2.bf16.msra.mxu0 0
      %5692 = vmatprep.subr.bf16.mxu0 0
      %5693 = vmatpush2.bf16.msra.mxu0 0
      %5694 = vmatprep.subr.bf16.mxu0 0
      %5695 = vmatpush2.bf16.msra.mxu0 0
      %5696 = vmatprep.subr.bf16.mxu0 0
      %5697 = vmatpush2.bf16.msra.mxu0 0
      %5698 = vmatprep.subr.bf16.mxu0 0
      %5699 = vmatpush2.bf16.msra.mxu0 %v5602
      %5700 = vmatprep.subr.bf16.mxu0 0
      %5701 = vmatpush2.bf16.msra.mxu0 %v5601
      %5702 = vmatprep.subr.bf16.mxu0 0
      %5703 = vmatpush2.bf16.msra.mxu0 %v5600
      %5704 = vmatprep.subr.bf16.mxu0 0
      %5705 = vmatpush2.bf16.msra.mxu0 %v5599
      %5706 = vmatprep.mubr.bf16.mxu0 %v5632
      %5707 = vmatmul.mubr.bf16.gmra.mxu0 %v5458
      %v5708 = vpop.f32.mrf.mxu0
      %v5709 = vadd.f32 %v5669, %v5708
      %v5710 = vpop.f32.mrf.mxu0
      %v5711 = vpop.f32.mrf.mxu0
      %v5712 = vpop.f32.mrf.mxu0
      %5713 = vdwg.mxu0
      %v5714 = vld [vmem:[%s4480] sm:$0xf]
      %v5715 = vld [vmem:[%s3 + $0x1c0] sm:$0xf]
      %v5716 = vld [vmem:[%s3 + $0x1c4] sm:$0xf]
      %v5717 = vld [vmem:[%s3 + $0x1c8] sm:$0xf]
      %v5718 = vld [vmem:[%s3 + $0x1cc] sm:$0xf]
      %v5719 = vld [vmem:[%s3 + $0x1d0] sm:$0xf]
      %v5720 = vld [vmem:[%s3 + $0x1d4] sm:$0xf]
      %v5721 = vld [vmem:[%s3 + $0x1d8] sm:$0xf]
      %v5722 = vld [vmem:[%s3 + $0x1dc] sm:$0xf]
      %v5731 = vunpack.c.l.b16 %v5715
      %v5732 = vunpack.c.l.b16 %v5716
      %v5733 = vunpack.c.l.b16 %v5717
      %v5734 = vunpack.c.l.b16 %v5718
      %v5735 = vunpack.c.l.b16 %v5719
      %v5736 = vunpack.c.l.b16 %v5720
      %v5737 = vunpack.c.l.b16 %v5721
      %v5738 = vunpack.c.l.b16 %v5722
      %v5739 = vpack.c.b16 %v5732, %v5731
      %v5740 = vpack.c.b16 %v5734, %v5733
      %v5741 = vpack.c.b16 %v5736, %v5735
      %v5742 = vpack.c.b16 %v5738, %v5737
      %v5748 = vsel %vm1791, %v5714, 0
      %5750 = vmatprep.subr.bf16.mxu0 0
      %5751 = vmatpush1.bf16.msra.mxu0 0
      %5752 = vmatprep.subr.bf16.mxu0 0
      %5753 = vmatpush1.bf16.msra.mxu0 0
      %5754 = vmatprep.subr.bf16.mxu0 0
      %5755 = vmatpush1.bf16.msra.mxu0 0
      %5756 = vmatprep.subr.bf16.mxu0 0
      %5757 = vmatpush1.bf16.msra.mxu0 0
      %5758 = vmatprep.subr.bf16.mxu0 0
      %5759 = vmatpush1.bf16.msra.mxu0 %v5742
      %5760 = vmatprep.subr.bf16.mxu0 0
      %5761 = vmatpush1.bf16.msra.mxu0 %v5741
      %5762 = vmatprep.subr.bf16.mxu0 0
      %5763 = vmatpush1.bf16.msra.mxu0 %v5740
      %5764 = vmatprep.subr.bf16.mxu0 0
      %5765 = vmatpush1.bf16.msra.mxu0 %v5739
      %5766 = vmatprep.subr.bf16.mxu0 0
      %5767 = vmatpush2.bf16.msra.mxu0 0
      %5768 = vmatprep.subr.bf16.mxu0 0
      %5769 = vmatpush2.bf16.msra.mxu0 0
      %5770 = vmatprep.subr.bf16.mxu0 0
      %5771 = vmatpush2.bf16.msra.mxu0 0
      %5772 = vmatprep.subr.bf16.mxu0 0
      %5773 = vmatpush2.bf16.msra.mxu0 0
      %5774 = vmatprep.subr.bf16.mxu0 0
      %5775 = vmatpush2.bf16.msra.mxu0 0
      %5776 = vmatprep.subr.bf16.mxu0 0
      %5777 = vmatpush2.bf16.msra.mxu0 0
      %5778 = vmatprep.subr.bf16.mxu0 0
      %5779 = vmatpush2.bf16.msra.mxu0 0
      %5780 = vmatprep.subr.bf16.mxu0 0
      %5781 = vmatpush2.bf16.msra.mxu0 0
      %5782 = vmatprep.mubr.bf16.mxu0 0
      %5783 = vmatmul.mubr.bf16.gmra.mxu0 %v5748
      %v5784 = vpop.f32.mrf.mxu0
      %v5785 = vadd.f32 0.0, %v5784
      %v5786 = vpop.f32.mrf.mxu0
      %v5787 = vpop.f32.mrf.mxu0
      %v5788 = vpop.f32.mrf.mxu0
      %5789 = vdwg.mxu0
      %v5790 = vadd.f32 %v5709, %v5785
      %v5791 = vld [vmem:[%s4] sm:$0x1]
      %v5793 = vlaneseq
      %v5794 = vshrl.u32 %v5793, 7
      %v5795 = vsub.s32 0, %v5794
      %v5796 = vrot.slane %v5791, %v5795
      %v5798 = vadd.f32 %v5790, %v5796
      %v5799 = vxor.u32 %v5798, 2147483648
      %v5800 = vmul.f32 %v5799, 1.442695
      %v5801 = vpow.pop %v5800
      %v5802 = vadd.f32 %v5801, 1.0
      %v5803 = vrcp.pop %v5802
      %v5804 = vmul.f32 1.0, %v5803
      %5806 = vrot.lane.b32.xlu0 %v5804, 64
      %v5807 = vpop.permute.xlu0 %5806
      %v5809 = vmul.f32 %v5798, %v5807
      %v5810 = vadd.f32 %v5809, 0.0
      %v5811 = vld [vmem:[%s4480] sm:$0xff]
      %v5812 = vld [vmem:[%s4480 + $0x8] sm:$0xff]
      %v5815 = vunpack.c.l.b16 %v5811
      %v5816 = vunpack.c.h.b16 %v5811
      %v5817 = vunpack.c.l.b16 %v5812
      %v5818 = vunpack.c.h.b16 %v5812
      %v5819 = vpack.c.b16 %v5815, %v5815
      %v5820 = vpack.c.b16 %v5816, %v5816
      %v5821 = vpack.c.b16 %v5817, %v5817
      %v5822 = vpack.c.b16 %v5818, %v5818
      %v5827 = vsel %vm1791, %v5822, 0
      %5829 = vmatprep.subr.bf16.mxu0 0
      %5830 = vmatpush1.bf16.msra.mxu0 %v5318
      %5831 = vmatprep.subr.bf16.mxu0 0
      %5832 = vmatpush1.bf16.msra.mxu0 %v5317
      %5833 = vmatprep.subr.bf16.mxu0 0
      %5834 = vmatpush1.bf16.msra.mxu0 %v5316
      %5835 = vmatprep.subr.bf16.mxu0 0
      %5836 = vmatpush1.bf16.msra.mxu0 %v5315
      %5837 = vmatprep.subr.bf16.mxu0 0
      %5838 = vmatpush1.bf16.msra.mxu0 %v5314
      %5839 = vmatprep.subr.bf16.mxu0 0
      %5840 = vmatpush1.bf16.msra.mxu0 %v5313
      %5841 = vmatprep.subr.bf16.mxu0 0
      %5842 = vmatpush1.bf16.msra.mxu0 %v5312
      %5843 = vmatprep.subr.bf16.mxu0 0
      %5844 = vmatpush1.bf16.msra.mxu0 %v5311
      %5845 = vmatprep.subr.bf16.mxu0 0
      %5846 = vmatpush2.bf16.msra.mxu0 %v5326
      %5847 = vmatprep.subr.bf16.mxu0 0
      %5848 = vmatpush2.bf16.msra.mxu0 %v5325
      %5849 = vmatprep.subr.bf16.mxu0 0
      %5850 = vmatpush2.bf16.msra.mxu0 %v5324
      %5851 = vmatprep.subr.bf16.mxu0 0
      %5852 = vmatpush2.bf16.msra.mxu0 %v5323
      %5853 = vmatprep.subr.bf16.mxu0 0
      %5854 = vmatpush2.bf16.msra.mxu0 %v5322
      %5855 = vmatprep.subr.bf16.mxu0 0
      %5856 = vmatpush2.bf16.msra.mxu0 %v5321
      %5857 = vmatprep.subr.bf16.mxu0 0
      %5858 = vmatpush2.bf16.msra.mxu0 %v5320
      %5859 = vmatprep.subr.bf16.mxu0 0
      %5860 = vmatpush2.bf16.msra.mxu0 %v5319
      %5861 = vmatprep.mubr.bf16.mxu0 %v5820
      %5862 = vmatmul.mubr.bf16.gmra.mxu0 %v5819
      %v5863 = vpop.f32.mrf.mxu0
      %v5864 = vadd.f32 0.0, %v5863
      %v5865 = vpop.f32.mrf.mxu0
      %v5866 = vpop.f32.mrf.mxu0
      %v5867 = vpop.f32.mrf.mxu0
      %5868 = vdwg.mxu0
      %5869 = vmatprep.subr.bf16.mxu0 0
      %5870 = vmatpush1.bf16.msra.mxu0 %v5334
      %5871 = vmatprep.subr.bf16.mxu0 0
      %5872 = vmatpush1.bf16.msra.mxu0 %v5333
      %5873 = vmatprep.subr.bf16.mxu0 0
      %5874 = vmatpush1.bf16.msra.mxu0 %v5332
      %5875 = vmatprep.subr.bf16.mxu0 0
      %5876 = vmatpush1.bf16.msra.mxu0 %v5331
      %5877 = vmatprep.subr.bf16.mxu0 0
      %5878 = vmatpush1.bf16.msra.mxu0 %v5330
      %5879 = vmatprep.subr.bf16.mxu0 0
      %5880 = vmatpush1.bf16.msra.mxu0 %v5329
      %5881 = vmatprep.subr.bf16.mxu0 0
      %5882 = vmatpush1.bf16.msra.mxu0 %v5328
      %5883 = vmatprep.subr.bf16.mxu0 0
      %5884 = vmatpush1.bf16.msra.mxu0 %v5327
      %5885 = vmatprep.subr.bf16.mxu0 0
      %5886 = vmatpush2.bf16.msra.mxu0 0
      %5887 = vmatprep.subr.bf16.mxu0 0
      %5888 = vmatpush2.bf16.msra.mxu0 0
      %5889 = vmatprep.subr.bf16.mxu0 0
      %5890 = vmatpush2.bf16.msra.mxu0 0
      %5891 = vmatprep.subr.bf16.mxu0 0
      %5892 = vmatpush2.bf16.msra.mxu0 0
      %5893 = vmatprep.subr.bf16.mxu0 0
      %5894 = vmatpush2.bf16.msra.mxu0 %v5338
      %5895 = vmatprep.subr.bf16.mxu0 0
      %5896 = vmatpush2.bf16.msra.mxu0 %v5337
      %5897 = vmatprep.subr.bf16.mxu0 0
      %5898 = vmatpush2.bf16.msra.mxu0 %v5336
      %5899 = vmatprep.subr.bf16.mxu0 0
      %5900 = vmatpush2.bf16.msra.mxu0 %v5335
      %5901 = vmatprep.mubr.bf16.mxu0 %v5827
      %5902 = vmatmul.mubr.bf16.gmra.mxu0 %v5821
      %v5903 = vpop.f32.mrf.mxu0
      %v5904 = vadd.f32 %v5864, %v5903
      %v5905 = vpop.f32.mrf.mxu0
      %v5906 = vpop.f32.mrf.mxu0
      %v5907 = vpop.f32.mrf.mxu0
      %5908 = vdwg.mxu0
      %5909 = vmatprep.subr.bf16.mxu0 0
      %5910 = vmatpush1.bf16.msra.mxu0 %v5582
      %5911 = vmatprep.subr.bf16.mxu0 0
      %5912 = vmatpush1.bf16.msra.mxu0 %v5581
      %5913 = vmatprep.subr.bf16.mxu0 0
      %5914 = vmatpush1.bf16.msra.mxu0 %v5580
      %5915 = vmatprep.subr.bf16.mxu0 0
      %5916 = vmatpush1.bf16.msra.mxu0 %v5579
      %5917 = vmatprep.subr.bf16.mxu0 0
      %5918 = vmatpush1.bf16.msra.mxu0 %v5578
      %5919 = vmatprep.subr.bf16.mxu0 0
      %5920 = vmatpush1.bf16.msra.mxu0 %v5577
      %5921 = vmatprep.subr.bf16.mxu0 0
      %5922 = vmatpush1.bf16.msra.mxu0 %v5576
      %5923 = vmatprep.subr.bf16.mxu0 0
      %5924 = vmatpush1.bf16.msra.mxu0 %v5575
      %5925 = vmatprep.subr.bf16.mxu0 0
      %5926 = vmatpush2.bf16.msra.mxu0 %v5590
      %5927 = vmatprep.subr.bf16.mxu0 0
      %5928 = vmatpush2.bf16.msra.mxu0 %v5589
      %5929 = vmatprep.subr.bf16.mxu0 0
      %5930 = vmatpush2.bf16.msra.mxu0 %v5588
      %5931 = vmatprep.subr.bf16.mxu0 0
      %5932 = vmatpush2.bf16.msra.mxu0 %v5587
      %5933 = vmatprep.subr.bf16.mxu0 0
      %5934 = vmatpush2.bf16.msra.mxu0 %v5586
      %5935 = vmatprep.subr.bf16.mxu0 0
      %5936 = vmatpush2.bf16.msra.mxu0 %v5585
      %5937 = vmatprep.subr.bf16.mxu0 0
      %5938 = vmatpush2.bf16.msra.mxu0 %v5584
      %5939 = vmatprep.subr.bf16.mxu0 0
      %5940 = vmatpush2.bf16.msra.mxu0 %v5583
      %5941 = vmatprep.mubr.bf16.mxu0 %v5193
      %5942 = vmatmul.mubr.bf16.gmra.mxu0 %v5192
      %v5943 = vpop.f32.mrf.mxu0
      %v5944 = vadd.f32 %v5904, %v5943
      %v5945 = vpop.f32.mrf.mxu0
      %v5946 = vpop.f32.mrf.mxu0
      %v5947 = vpop.f32.mrf.mxu0
      %5948 = vdwg.mxu0
      %5949 = vmatprep.subr.bf16.mxu0 0
      %5950 = vmatpush1.bf16.msra.mxu0 %v5598
      %5951 = vmatprep.subr.bf16.mxu0 0
      %5952 = vmatpush1.bf16.msra.mxu0 %v5597
      %5953 = vmatprep.subr.bf16.mxu0 0
      %5954 = vmatpush1.bf16.msra.mxu0 %v5596
      %5955 = vmatprep.subr.bf16.mxu0 0
      %5956 = vmatpush1.bf16.msra.mxu0 %v5595
      %5957 = vmatprep.subr.bf16.mxu0 0
      %5958 = vmatpush1.bf16.msra.mxu0 %v5594
      %5959 = vmatprep.subr.bf16.mxu0 0
      %5960 = vmatpush1.bf16.msra.mxu0 %v5593
      %5961 = vmatprep.subr.bf16.mxu0 0
      %5962 = vmatpush1.bf16.msra.mxu0 %v5592
      %5963 = vmatprep.subr.bf16.mxu0 0
      %5964 = vmatpush1.bf16.msra.mxu0 %v5591
      %5965 = vmatprep.subr.bf16.mxu0 0
      %5966 = vmatpush2.bf16.msra.mxu0 0
      %5967 = vmatprep.subr.bf16.mxu0 0
      %5968 = vmatpush2.bf16.msra.mxu0 0
      %5969 = vmatprep.subr.bf16.mxu0 0
      %5970 = vmatpush2.bf16.msra.mxu0 0
      %5971 = vmatprep.subr.bf16.mxu0 0
      %5972 = vmatpush2.bf16.msra.mxu0 0
      %5973 = vmatprep.subr.bf16.mxu0 0
      %5974 = vmatpush2.bf16.msra.mxu0 %v5602
      %5975 = vmatprep.subr.bf16.mxu0 0
      %5976 = vmatpush2.bf16.msra.mxu0 %v5601
      %5977 = vmatprep.subr.bf16.mxu0 0
      %5978 = vmatpush2.bf16.msra.mxu0 %v5600
      %5979 = vmatprep.subr.bf16.mxu0 0
      %5980 = vmatpush2.bf16.msra.mxu0 %v5599
      %5981 = vmatprep.mubr.bf16.mxu0 %v5368
      %5982 = vmatmul.mubr.bf16.gmra.mxu0 %v5194
      %v5983 = vpop.f32.mrf.mxu0
      %v5984 = vadd.f32 %v5944, %v5983
      %v5985 = vpop.f32.mrf.mxu0
      %v5986 = vpop.f32.mrf.mxu0
      %v5987 = vpop.f32.mrf.mxu0
      %5988 = vdwg.mxu0
      %v5989 = vld [vmem:[%s4774] sm:$0xf]
      %v5991 = vsel %vm1791, %v5989, 0
      %5993 = vmatprep.subr.bf16.mxu0 0
      %5994 = vmatpush1.bf16.msra.mxu0 0
      %5995 = vmatprep.subr.bf16.mxu0 0
      %5996 = vmatpush1.bf16.msra.mxu0 0
      %5997 = vmatprep.subr.bf16.mxu0 0
      %5998 = vmatpush1.bf16.msra.mxu0 0
      %5999 = vmatprep.subr.bf16.mxu0 0
      %6000 = vmatpush1.bf16.msra.mxu0 0
      %6001 = vmatprep.subr.bf16.mxu0 0
      %6002 = vmatpush1.bf16.msra.mxu0 %v5742
      %6003 = vmatprep.subr.bf16.mxu0 0
      %6004 = vmatpush1.bf16.msra.mxu0 %v5741
      %6005 = vmatprep.subr.bf16.mxu0 0
      %6006 = vmatpush1.bf16.msra.mxu0 %v5740
      %6007 = vmatprep.subr.bf16.mxu0 0
      %6008 = vmatpush1.bf16.msra.mxu0 %v5739
      %6009 = vmatprep.subr.bf16.mxu0 0
      %6010 = vmatpush2.bf16.msra.mxu0 0
      %6011 = vmatprep.subr.bf16.mxu0 0
      %6012 = vmatpush2.bf16.msra.mxu0 0
      %6013 = vmatprep.subr.bf16.mxu0 0
      %6014 = vmatpush2.bf16.msra.mxu0 0
      %6015 = vmatprep.subr.bf16.mxu0 0
      %6016 = vmatpush2.bf16.msra.mxu0 0
      %6017 = vmatprep.subr.bf16.mxu0 0
      %6018 = vmatpush2.bf16.msra.mxu0 0
      %6019 = vmatprep.subr.bf16.mxu0 0
      %6020 = vmatpush2.bf16.msra.mxu0 0
      %6021 = vmatprep.subr.bf16.mxu0 0
      %6022 = vmatpush2.bf16.msra.mxu0 0
      %6023 = vmatprep.subr.bf16.mxu0 0
      %6024 = vmatpush2.bf16.msra.mxu0 0
      %6025 = vmatprep.mubr.bf16.mxu0 0
      %6026 = vmatmul.mubr.bf16.gmra.mxu0 %v5991
      %v6027 = vpop.f32.mrf.mxu0
      %v6028 = vadd.f32 0.0, %v6027
      %v6029 = vpop.f32.mrf.mxu0
      %v6030 = vpop.f32.mrf.mxu0
      %v6031 = vpop.f32.mrf.mxu0
      %6032 = vdwg.mxu0
      %v6033 = vadd.f32 %v5984, %v6028
      %v6034 = vadd.f32 %v6033, %v5796
      %v6035 = vxor.u32 %v6034, 2147483648
      %v6036 = vmul.f32 %v6035, 1.442695
      %v6037 = vpow.pop %v6036
      %v6038 = vadd.f32 %v6037, 1.0
      %v6039 = vrcp.pop %v6038
      %v6040 = vmul.f32 1.0, %v6039
      %6042 = vrot.lane.b32.xlu0 %v6040, 64
      %v6043 = vpop.permute.xlu0 %6042
      %v6045 = vmul.f32 %v6034, %v6043
      %v6046 = vadd.f32 %v5810, %v6045
      %v6047 = vld [vmem:[%s4774] sm:$0xff]
      %v6048 = vld [vmem:[%s4774 + $0x8] sm:$0xff]
      %v6051 = vunpack.c.l.b16 %v6047
      %v6052 = vunpack.c.h.b16 %v6047
      %v6053 = vunpack.c.l.b16 %v6048
      %v6054 = vunpack.c.h.b16 %v6048
      %v6055 = vpack.c.b16 %v6051, %v6051
      %v6056 = vpack.c.b16 %v6052, %v6052
      %v6057 = vpack.c.b16 %v6053, %v6053
      %v6058 = vpack.c.b16 %v6054, %v6054
      %v6063 = vsel %vm1791, %v6058, 0
      %6065 = vmatprep.subr.bf16.mxu0 0
      %6066 = vmatpush1.bf16.msra.mxu0 %v5318
      %6067 = vmatprep.subr.bf16.mxu0 0
      %6068 = vmatpush1.bf16.msra.mxu0 %v5317
      %6069 = vmatprep.subr.bf16.mxu0 0
      %6070 = vmatpush1.bf16.msra.mxu0 %v5316
      %6071 = vmatprep.subr.bf16.mxu0 0
      %6072 = vmatpush1.bf16.msra.mxu0 %v5315
      %6073 = vmatprep.subr.bf16.mxu0 0
      %6074 = vmatpush1.bf16.msra.mxu0 %v5314
      %6075 = vmatprep.subr.bf16.mxu0 0
      %6076 = vmatpush1.bf16.msra.mxu0 %v5313
      %6077 = vmatprep.subr.bf16.mxu0 0
      %6078 = vmatpush1.bf16.msra.mxu0 %v5312
      %6079 = vmatprep.subr.bf16.mxu0 0
      %6080 = vmatpush1.bf16.msra.mxu0 %v5311
      %6081 = vmatprep.subr.bf16.mxu0 0
      %6082 = vmatpush2.bf16.msra.mxu0 %v5326
      %6083 = vmatprep.subr.bf16.mxu0 0
      %6084 = vmatpush2.bf16.msra.mxu0 %v5325
      %6085 = vmatprep.subr.bf16.mxu0 0
      %6086 = vmatpush2.bf16.msra.mxu0 %v5324
      %6087 = vmatprep.subr.bf16.mxu0 0
      %6088 = vmatpush2.bf16.msra.mxu0 %v5323
      %6089 = vmatprep.subr.bf16.mxu0 0
      %6090 = vmatpush2.bf16.msra.mxu0 %v5322
      %6091 = vmatprep.subr.bf16.mxu0 0
      %6092 = vmatpush2.bf16.msra.mxu0 %v5321
      %6093 = vmatprep.subr.bf16.mxu0 0
      %6094 = vmatpush2.bf16.msra.mxu0 %v5320
      %6095 = vmatprep.subr.bf16.mxu0 0
      %6096 = vmatpush2.bf16.msra.mxu0 %v5319
      %6097 = vmatprep.mubr.bf16.mxu0 %v6056
      %6098 = vmatmul.mubr.bf16.gmra.mxu0 %v6055
      %v6099 = vpop.f32.mrf.mxu0
      %v6100 = vadd.f32 0.0, %v6099
      %v6101 = vpop.f32.mrf.mxu0
      %v6102 = vpop.f32.mrf.mxu0
      %v6103 = vpop.f32.mrf.mxu0
      %6104 = vdwg.mxu0
      %6105 = vmatprep.subr.bf16.mxu0 0
      %6106 = vmatpush1.bf16.msra.mxu0 %v5334
      %6107 = vmatprep.subr.bf16.mxu0 0
      %6108 = vmatpush1.bf16.msra.mxu0 %v5333
      %6109 = vmatprep.subr.bf16.mxu0 0
      %6110 = vmatpush1.bf16.msra.mxu0 %v5332
      %6111 = vmatprep.subr.bf16.mxu0 0
      %6112 = vmatpush1.bf16.msra.mxu0 %v5331
      %6113 = vmatprep.subr.bf16.mxu0 0
      %6114 = vmatpush1.bf16.msra.mxu0 %v5330
      %6115 = vmatprep.subr.bf16.mxu0 0
      %6116 = vmatpush1.bf16.msra.mxu0 %v5329
      %6117 = vmatprep.subr.bf16.mxu0 0
      %6118 = vmatpush1.bf16.msra.mxu0 %v5328
      %6119 = vmatprep.subr.bf16.mxu0 0
      %6120 = vmatpush1.bf16.msra.mxu0 %v5327
      %6121 = vmatprep.subr.bf16.mxu0 0
      %6122 = vmatpush2.bf16.msra.mxu0 0
      %6123 = vmatprep.subr.bf16.mxu0 0
      %6124 = vmatpush2.bf16.msra.mxu0 0
      %6125 = vmatprep.subr.bf16.mxu0 0
      %6126 = vmatpush2.bf16.msra.mxu0 0
      %6127 = vmatprep.subr.bf16.mxu0 0
      %6128 = vmatpush2.bf16.msra.mxu0 0
      %6129 = vmatprep.subr.bf16.mxu0 0
      %6130 = vmatpush2.bf16.msra.mxu0 %v5338
      %6131 = vmatprep.subr.bf16.mxu0 0
      %6132 = vmatpush2.bf16.msra.mxu0 %v5337
      %6133 = vmatprep.subr.bf16.mxu0 0
      %6134 = vmatpush2.bf16.msra.mxu0 %v5336
      %6135 = vmatprep.subr.bf16.mxu0 0
      %6136 = vmatpush2.bf16.msra.mxu0 %v5335
      %6137 = vmatprep.mubr.bf16.mxu0 %v6063
      %6138 = vmatmul.mubr.bf16.gmra.mxu0 %v6057
      %v6139 = vpop.f32.mrf.mxu0
      %v6140 = vadd.f32 %v6100, %v6139
      %v6141 = vpop.f32.mrf.mxu0
      %v6142 = vpop.f32.mrf.mxu0
      %v6143 = vpop.f32.mrf.mxu0
      %6144 = vdwg.mxu0
      %6145 = vmatprep.subr.bf16.mxu0 0
      %6146 = vmatpush1.bf16.msra.mxu0 %v5582
      %6147 = vmatprep.subr.bf16.mxu0 0
      %6148 = vmatpush1.bf16.msra.mxu0 %v5581
      %6149 = vmatprep.subr.bf16.mxu0 0
      %6150 = vmatpush1.bf16.msra.mxu0 %v5580
      %6151 = vmatprep.subr.bf16.mxu0 0
      %6152 = vmatpush1.bf16.msra.mxu0 %v5579
      %6153 = vmatprep.subr.bf16.mxu0 0
      %6154 = vmatpush1.bf16.msra.mxu0 %v5578
      %6155 = vmatprep.subr.bf16.mxu0 0
      %6156 = vmatpush1.bf16.msra.mxu0 %v5577
      %6157 = vmatprep.subr.bf16.mxu0 0
      %6158 = vmatpush1.bf16.msra.mxu0 %v5576
      %6159 = vmatprep.subr.bf16.mxu0 0
      %6160 = vmatpush1.bf16.msra.mxu0 %v5575
      %6161 = vmatprep.subr.bf16.mxu0 0
      %6162 = vmatpush2.bf16.msra.mxu0 %v5590
      %6163 = vmatprep.subr.bf16.mxu0 0
      %6164 = vmatpush2.bf16.msra.mxu0 %v5589
      %6165 = vmatprep.subr.bf16.mxu0 0
      %6166 = vmatpush2.bf16.msra.mxu0 %v5588
      %6167 = vmatprep.subr.bf16.mxu0 0
      %6168 = vmatpush2.bf16.msra.mxu0 %v5587
      %6169 = vmatprep.subr.bf16.mxu0 0
      %6170 = vmatpush2.bf16.msra.mxu0 %v5586
      %6171 = vmatprep.subr.bf16.mxu0 0
      %6172 = vmatpush2.bf16.msra.mxu0 %v5585
      %6173 = vmatprep.subr.bf16.mxu0 0
      %6174 = vmatpush2.bf16.msra.mxu0 %v5584
      %6175 = vmatprep.subr.bf16.mxu0 0
      %6176 = vmatpush2.bf16.msra.mxu0 %v5583
      %6177 = vmatprep.mubr.bf16.mxu0 %v5820
      %6178 = vmatmul.mubr.bf16.gmra.mxu0 %v5819
      %v6179 = vpop.f32.mrf.mxu0
      %v6180 = vadd.f32 %v6140, %v6179
      %v6181 = vpop.f32.mrf.mxu0
      %v6182 = vpop.f32.mrf.mxu0
      %v6183 = vpop.f32.mrf.mxu0
      %6184 = vdwg.mxu0
      %6185 = vmatprep.subr.bf16.mxu0 0
      %6186 = vmatpush1.bf16.msra.mxu0 %v5598
      %6187 = vmatprep.subr.bf16.mxu0 0
      %6188 = vmatpush1.bf16.msra.mxu0 %v5597
      %6189 = vmatprep.subr.bf16.mxu0 0
      %6190 = vmatpush1.bf16.msra.mxu0 %v5596
      %6191 = vmatprep.subr.bf16.mxu0 0
      %6192 = vmatpush1.bf16.msra.mxu0 %v5595
      %6193 = vmatprep.subr.bf16.mxu0 0
      %6194 = vmatpush1.bf16.msra.mxu0 %v5594
      %6195 = vmatprep.subr.bf16.mxu0 0
      %6196 = vmatpush1.bf16.msra.mxu0 %v5593
      %6197 = vmatprep.subr.bf16.mxu0 0
      %6198 = vmatpush1.bf16.msra.mxu0 %v5592
      %6199 = vmatprep.subr.bf16.mxu0 0
      %6200 = vmatpush1.bf16.msra.mxu0 %v5591
      %6201 = vmatprep.subr.bf16.mxu0 0
      %6202 = vmatpush2.bf16.msra.mxu0 0
      %6203 = vmatprep.subr.bf16.mxu0 0
      %6204 = vmatpush2.bf16.msra.mxu0 0
      %6205 = vmatprep.subr.bf16.mxu0 0
      %6206 = vmatpush2.bf16.msra.mxu0 0
      %6207 = vmatprep.subr.bf16.mxu0 0
      %6208 = vmatpush2.bf16.msra.mxu0 0
      %6209 = vmatprep.subr.bf16.mxu0 0
      %6210 = vmatpush2.bf16.msra.mxu0 %v5602
      %6211 = vmatprep.subr.bf16.mxu0 0
      %6212 = vmatpush2.bf16.msra.mxu0 %v5601
      %6213 = vmatprep.subr.bf16.mxu0 0
      %6214 = vmatpush2.bf16.msra.mxu0 %v5600
      %6215 = vmatprep.subr.bf16.mxu0 0
      %6216 = vmatpush2.bf16.msra.mxu0 %v5599
      %6217 = vmatprep.mubr.bf16.mxu0 %v5827
      %6218 = vmatmul.mubr.bf16.gmra.mxu0 %v5821
      %v6219 = vpop.f32.mrf.mxu0
      %v6220 = vadd.f32 %v6180, %v6219
      %v6221 = vpop.f32.mrf.mxu0
      %v6222 = vpop.f32.mrf.mxu0
      %v6223 = vpop.f32.mrf.mxu0
      %6224 = vdwg.mxu0
      %v6225 = vld [vmem:[%s5068] sm:$0xf]
      %v6227 = vsel %vm1791, %v6225, 0
      %6229 = vmatprep.subr.bf16.mxu0 0
      %6230 = vmatpush1.bf16.msra.mxu0 0
      %6231 = vmatprep.subr.bf16.mxu0 0
      %6232 = vmatpush1.bf16.msra.mxu0 0
      %6233 = vmatprep.subr.bf16.mxu0 0
      %6234 = vmatpush1.bf16.msra.mxu0 0
      %6235 = vmatprep.subr.bf16.mxu0 0
      %6236 = vmatpush1.bf16.msra.mxu0 0
      %6237 = vmatprep.subr.bf16.mxu0 0
      %6238 = vmatpush1.bf16.msra.mxu0 %v5742
      %6239 = vmatprep.subr.bf16.mxu0 0
      %6240 = vmatpush1.bf16.msra.mxu0 %v5741
      %6241 = vmatprep.subr.bf16.mxu0 0
      %6242 = vmatpush1.bf16.msra.mxu0 %v5740
      %6243 = vmatprep.subr.bf16.mxu0 0
      %6244 = vmatpush1.bf16.msra.mxu0 %v5739
      %6245 = vmatprep.subr.bf16.mxu0 0
      %6246 = vmatpush2.bf16.msra.mxu0 0
      %6247 = vmatprep.subr.bf16.mxu0 0
      %6248 = vmatpush2.bf16.msra.mxu0 0
      %6249 = vmatprep.subr.bf16.mxu0 0
      %6250 = vmatpush2.bf16.msra.mxu0 0
      %6251 = vmatprep.subr.bf16.mxu0 0
      %6252 = vmatpush2.bf16.msra.mxu0 0
      %6253 = vmatprep.subr.bf16.mxu0 0
      %6254 = vmatpush2.bf16.msra.mxu0 0
      %6255 = vmatprep.subr.bf16.mxu0 0
      %6256 = vmatpush2.bf16.msra.mxu0 0
      %6257 = vmatprep.subr.bf16.mxu0 0
      %6258 = vmatpush2.bf16.msra.mxu0 0
      %6259 = vmatprep.subr.bf16.mxu0 0
      %6260 = vmatpush2.bf16.msra.mxu0 0
      %6261 = vmatprep.mubr.bf16.mxu0 0
      %6262 = vmatmul.mubr.bf16.gmra.mxu0 %v6227
      %v6263 = vpop.f32.mrf.mxu0
      %v6264 = vadd.f32 0.0, %v6263
      %v6265 = vpop.f32.mrf.mxu0
      %v6266 = vpop.f32.mrf.mxu0
      %v6267 = vpop.f32.mrf.mxu0
      %6268 = vdwg.mxu0
      %v6269 = vadd.f32 %v6220, %v6264
      %v6270 = vadd.f32 %v6269, %v5796
      %v6271 = vxor.u32 %v6270, 2147483648
      %v6272 = vmul.f32 %v6271, 1.442695
      %v6273 = vpow.pop %v6272
      %v6274 = vadd.f32 %v6273, 1.0
      %v6275 = vrcp.pop %v6274
      %v6276 = vmul.f32 1.0, %v6275
      %6278 = vrot.lane.b32.xlu0 %v6276, 64
      %v6279 = vpop.permute.xlu0 %6278
      %v6281 = vmul.f32 %v6270, %v6279
      %v6282 = vadd.f32 %v6046, %v6281
      %v6283 = vmul.f32 %v6282, 0.33333334
      %v6284 = vld [vmem:[%s5] sm:$0xff]
      %v6285 = vld [vmem:[%s5 + $0x8] sm:$0xff]
      %v6286 = vld [vmem:[%s5 + $0x10] sm:$0xff]
      %v6287 = vld [vmem:[%s5 + $0x18] sm:$0xff]
      %v6288 = vld [vmem:[%s5 + $0x20] sm:$0xff]
      %v6289 = vld [vmem:[%s5 + $0x28] sm:$0xff]
      %v6290 = vld [vmem:[%s5 + $0x30] sm:$0xff]
      %v6291 = vld [vmem:[%s5 + $0x38] sm:$0xff]
      %v6292 = vld [vmem:[%s6] sm:$0x1]
      %v6294 = vlaneseq
      %v6295 = vshrl.u32 %v6294, 7
      %v6296 = vsub.s32 0, %v6295
      %v6297 = vrot.slane %v6292, %v6296
      %v6300 = vsel %vm1791, %v6283, 0
      %6302 = vmatprep.subr.mxu0 0.0
      %6303 = vmatpush1.msra.mxu0 0.0
      %6304 = vmatprep.subr.mxu0 0.0
      %6305 = vmatpush1.msra.mxu0 0.0
      %6306 = vmatprep.subr.mxu0 0.0
      %6307 = vmatpush1.msra.mxu0 0.0
      %6308 = vmatprep.subr.mxu0 0.0
      %6309 = vmatpush1.msra.mxu0 0.0
      %6310 = vmatprep.subr.mxu0 0.0
      %6311 = vmatpush1.msra.mxu0 0.0
      %6312 = vmatprep.subr.mxu0 0.0
      %6313 = vmatpush1.msra.mxu0 0.0
      %6314 = vmatprep.subr.mxu0 0.0
      %6315 = vmatpush1.msra.mxu0 0.0
      %6316 = vmatprep.subr.mxu0 0.0
      %6317 = vmatpush1.msra.mxu0 0.0
      %6318 = vmatprep.subr.mxu0 0.0
      %6319 = vmatpush1.msra.mxu0 %v6291
      %6320 = vmatprep.subr.mxu0 0.0
      %6321 = vmatpush1.msra.mxu0 %v6290
      %6322 = vmatprep.subr.mxu0 0.0
      %6323 = vmatpush1.msra.mxu0 %v6289
      %6324 = vmatprep.subr.mxu0 0.0
      %6325 = vmatpush1.msra.mxu0 %v6288
      %6326 = vmatprep.subr.mxu0 0.0
      %6327 = vmatpush1.msra.mxu0 %v6287
      %6328 = vmatprep.subr.mxu0 0.0
      %6329 = vmatpush1.msra.mxu0 %v6286
      %6330 = vmatprep.subr.mxu0 0.0
      %6331 = vmatpush1.msra.mxu0 %v6285
      %6332 = vmatprep.subr.mxu0 0.0
      %6333 = vmatpush1.msra.mxu0 %v6284
      %6334 = vmatprep.subr.mxu0 0.0
      %6335 = vmatpush2.msra.mxu0 0.0
      %6336 = vmatprep.subr.mxu0 0.0
      %6337 = vmatpush2.msra.mxu0 0.0
      %6338 = vmatprep.subr.mxu0 0.0
      %6339 = vmatpush2.msra.mxu0 0.0
      %6340 = vmatprep.subr.mxu0 0.0
      %6341 = vmatpush2.msra.mxu0 0.0
      %6342 = vmatprep.subr.mxu0 0.0
      %6343 = vmatpush2.msra.mxu0 0.0
      %6344 = vmatprep.subr.mxu0 0.0
      %6345 = vmatpush2.msra.mxu0 0.0
      %6346 = vmatprep.subr.mxu0 0.0
      %6347 = vmatpush2.msra.mxu0 0.0
      %6348 = vmatprep.subr.mxu0 0.0
      %6349 = vmatpush2.msra.mxu0 0.0
      %6350 = vmatprep.subr.mxu0 0.0
      %6351 = vmatpush2.msra.mxu0 0.0
      %6352 = vmatprep.subr.mxu0 0.0
      %6353 = vmatpush2.msra.mxu0 0.0
      %6354 = vmatprep.subr.mxu0 0.0
      %6355 = vmatpush2.msra.mxu0 0.0
      %6356 = vmatprep.subr.mxu0 0.0
      %6357 = vmatpush2.msra.mxu0 0.0
      %6358 = vmatprep.subr.mxu0 0.0
      %6359 = vmatpush2.msra.mxu0 0.0
      %6360 = vmatprep.subr.mxu0 0.0
      %6361 = vmatpush2.msra.mxu0 0.0
      %6362 = vmatprep.subr.mxu0 0.0
      %6363 = vmatpush2.msra.mxu0 0.0
      %6364 = vmatprep.subr.mxu0 0.0
      %6365 = vmatpush2.msra.mxu0 0.0
      %6366 = vmatprep.mubr.f32.mxu0 0.0
      %6367 = vmatmul.mubr.f32.gmra.mxu0 %v6300
      %v6368 = vpop.f32.mrf.mxu0
      %v6369 = vadd.f32 %v6297, %v6368
      %v6370 = vpop.f32.mrf.mxu0
      %6371 = vdwg.mxu0
      %v6372 = vld [vmem:[%s7] sm:$0xff]
      %v6373 = vld [vmem:[%s7 + $0x8] sm:$0xff]
      %v6374 = vld [vmem:[%s7 + $0x10] sm:$0xff]
      %v6375 = vld [vmem:[%s7 + $0x18] sm:$0xff]
      %v6376 = vld [vmem:[%s7 + $0x20] sm:$0xff]
      %v6377 = vld [vmem:[%s7 + $0x28] sm:$0xff]
      %v6378 = vld [vmem:[%s7 + $0x30] sm:$0xff]
      %v6379 = vld [vmem:[%s7 + $0x38] sm:$0xff]
      %v6380 = vld [vmem:[%s7 + $0x40] sm:$0xff]
      %v6381 = vld [vmem:[%s7 + $0x48] sm:$0xff]
      %v6382 = vld [vmem:[%s7 + $0x50] sm:$0xff]
      %v6383 = vld [vmem:[%s7 + $0x58] sm:$0xff]
      %v6384 = vld [vmem:[%s7 + $0x60] sm:$0xff]
      %v6385 = vld [vmem:[%s7 + $0x68] sm:$0xff]
      %v6386 = vld [vmem:[%s7 + $0x70] sm:$0xff]
      %v6387 = vld [vmem:[%s7 + $0x78] sm:$0xff]
      %v6388 = vld [vmem:[%s8] sm:$0x1]
      %v6390 = vlaneseq
      %v6391 = vshrl.u32 %v6390, 7
      %v6392 = vsub.s32 0, %v6391
      %v6393 = vrot.slane %v6388, %v6392
      %6395 = vmatprep.subr.mxu0 0.0
      %6396 = vmatpush1.msra.mxu0 %v6387
      %6397 = vmatprep.subr.mxu0 0.0
      %6398 = vmatpush1.msra.mxu0 %v6386
      %6399 = vmatprep.subr.mxu0 0.0
      %6400 = vmatpush1.msra.mxu0 %v6385
      %6401 = vmatprep.subr.mxu0 0.0
      %6402 = vmatpush1.msra.mxu0 %v6384
      %6403 = vmatprep.subr.mxu0 0.0
      %6404 = vmatpush1.msra.mxu0 %v6383
      %6405 = vmatprep.subr.mxu0 0.0
      %6406 = vmatpush1.msra.mxu0 %v6382
      %6407 = vmatprep.subr.mxu0 0.0
      %6408 = vmatpush1.msra.mxu0 %v6381
      %6409 = vmatprep.subr.mxu0 0.0
      %6410 = vmatpush1.msra.mxu0 %v6380
      %6411 = vmatprep.subr.mxu0 0.0
      %6412 = vmatpush1.msra.mxu0 %v6379
      %6413 = vmatprep.subr.mxu0 0.0
      %6414 = vmatpush1.msra.mxu0 %v6378
      %6415 = vmatprep.subr.mxu0 0.0
      %6416 = vmatpush1.msra.mxu0 %v6377
      %6417 = vmatprep.subr.mxu0 0.0
      %6418 = vmatpush1.msra.mxu0 %v6376
      %6419 = vmatprep.subr.mxu0 0.0
      %6420 = vmatpush1.msra.mxu0 %v6375
      %6421 = vmatprep.subr.mxu0 0.0
      %6422 = vmatpush1.msra.mxu0 %v6374
      %6423 = vmatprep.subr.mxu0 0.0
      %6424 = vmatpush1.msra.mxu0 %v6373
      %6425 = vmatprep.subr.mxu0 0.0
      %6426 = vmatpush1.msra.mxu0 %v6372
      %6427 = vmatprep.subr.mxu0 0.0
      %6428 = vmatpush2.msra.mxu0 0.0
      %6429 = vmatprep.subr.mxu0 0.0
      %6430 = vmatpush2.msra.mxu0 0.0
      %6431 = vmatprep.subr.mxu0 0.0
      %6432 = vmatpush2.msra.mxu0 0.0
      %6433 = vmatprep.subr.mxu0 0.0
      %6434 = vmatpush2.msra.mxu0 0.0
      %6435 = vmatprep.subr.mxu0 0.0
      %6436 = vmatpush2.msra.mxu0 0.0
      %6437 = vmatprep.subr.mxu0 0.0
      %6438 = vmatpush2.msra.mxu0 0.0
      %6439 = vmatprep.subr.mxu0 0.0
      %6440 = vmatpush2.msra.mxu0 0.0
      %6441 = vmatprep.subr.mxu0 0.0
      %6442 = vmatpush2.msra.mxu0 0.0
      %6443 = vmatprep.subr.mxu0 0.0
      %6444 = vmatpush2.msra.mxu0 0.0
      %6445 = vmatprep.subr.mxu0 0.0
      %6446 = vmatpush2.msra.mxu0 0.0
      %6447 = vmatprep.subr.mxu0 0.0
      %6448 = vmatpush2.msra.mxu0 0.0
      %6449 = vmatprep.subr.mxu0 0.0
      %6450 = vmatpush2.msra.mxu0 0.0
      %6451 = vmatprep.subr.mxu0 0.0
      %6452 = vmatpush2.msra.mxu0 0.0
      %6453 = vmatprep.subr.mxu0 0.0
      %6454 = vmatpush2.msra.mxu0 0.0
      %6455 = vmatprep.subr.mxu0 0.0
      %6456 = vmatpush2.msra.mxu0 0.0
      %6457 = vmatprep.subr.mxu0 0.0
      %6458 = vmatpush2.msra.mxu0 0.0
      %6459 = vmatprep.mubr.f32.mxu0 0.0
      %6460 = vmatmul.mubr.f32.gmra.mxu0 %v6369
      %v6461 = vpop.f32.mrf.mxu0
      %v6462 = vadd.f32 %v6393, %v6461
      %v6463 = vpop.f32.mrf.mxu0
      %6464 = vdwg.mxu0
      %6465 = vst [vmem:[%s335] sm:$0xff] %v6462
      %p6466 = scmp.lt.s32.totalorder %s20, 1
      %s6467 = scalar_select %p6466, %s20, 1
      %s6468 = smul.addr %s6467, 8
      %s6469 = scalar_lea.vmem %s9, %s6468
      // Predicated region
      $region57: #{gcnn_forward.1} parent=55 // pred_check
        %p6470 = pneg %p232
      $region58: #{gcnn_forward.1} parent=55 // pred_check_branch
        %6472 = sbr.rel (%p6470) target = $region60
      $region59: #{gcnn_forward.1} parent=55 // pred_region
        _
      $region60: #{gcnn_forward.1} parent=55 // pred_fallthru
        _
    $region56: #{gcnn_forward.1} parent=5 // pred_fallthru
      _
    %p6473 = scmp.le.s32.totalorder 2, %s15
    // Predicated region
    $region61: #{gcnn_forward.1} parent=5 // pred_check
      %p6474 = pneg %p6473
    $region62: #{gcnn_forward.1} parent=5 // pred_check_branch
      %6476 = sbr.rel (%p6474) target = $region64
    $region63: #{gcnn_forward.1} parent=5 // pred_region
      %s6477 = ssub.s32 %s15, 2
      // Predicated region
      $region65: #{gcnn_forward.1} parent=63 // pred_check
        %p6478 = pneg %p238
      $region66: #{gcnn_forward.1} parent=63 // pred_check_branch
        %6480 = sbr.rel (%p6478) target = $region68
      $region67: #{gcnn_forward.1} parent=63 // pred_region
        %p6481 = scmp.lt.s32.totalorder %s21, 1
        %s6482 = scalar_select %p6481, %s21, 1
        %s6483 = smul.addr %s6482, 8
        %s6484 = scalar_lea.vmem %s9, %s6483
      $region68: #{gcnn_forward.1} parent=63 // pred_fallthru
        _
    $region64: #{gcnn_forward.1} parent=5 // pred_fallthru
      _
  $region6: #{gcnn_forward.1} parent=0 // loop_footer
    %s19 = sadd.s32 1, %s15
  $region7: #{gcnn_forward.1} parent=0 // loop_footer_branch
    %14 = sbr.rel target = $region3
  $region8: #{gcnn_forward.1} parent=0 // loop_exit
    _

</llo_original>
